<compile_context>
chip_gen: v7x
topology: tpu7x:2x2x1
jax: 0.10.0
libtpu: 0.0.40
codegen_flags: <defaults>
</compile_context>

<pallas_src>
import functools

import jax
import jax.numpy as jnp
from jax import lax
from jax.experimental import pallas as pl
from jax.experimental.pallas import tpu as pltpu

ALPHA = 0.25      # focal loss alpha
GAMMA = 2.0       # focal loss gamma (== 2 -> pt*pt in the kernel)
BETA = 1.0 / 9.0  # smooth-L1 transition point


def _point_pillar_loss_kernel(psm_ref, pos_ref, rm_ref, tg_ref, out_ref,
                              acc_cls, acc_reg, acc_pos):
    j = pl.program_id(1)
    nt = pl.num_programs(1)

    @pl.when(j == 0)
    def _init():
        acc_cls[...] = jnp.zeros_like(acc_cls)
        acc_reg[...] = jnp.zeros_like(acc_reg)
        acc_pos[...] = jnp.zeros_like(acc_pos)
        out_ref[...] = jnp.zeros_like(out_ref)

    # ---------------- shared positive mask (cls label == reg weight) -------
    # NOTE: assumes pos_equal_one is strictly {0, 1} (no -1 "ignore" labels),
    # so positives == one_hot target and (positives + negatives) == 1.
    lab = pos_ref[0].astype(jnp.float32)                   # (A, T)
    t = (lab > 0).astype(jnp.float32)

    # ---------------- classification: sigmoid focal BCE --------------------
    x = psm_ref[0].astype(jnp.float32)                     # (A, T) logits
    e = jnp.exp(-jnp.abs(x))                               # shared exp(-|x|)
    sig = jnp.where(x >= 0, 1.0, e) / (1.0 + e)            # stable sigmoid
    alpha_w = t * ALPHA + (1.0 - t) * (1.0 - ALPHA)
    pt = t + sig - 2.0 * t * sig                           # t*(1-s)+(1-t)*s
    bce = jnp.maximum(x, 0.0) - x * t + jnp.log1p(e)
    acc_cls[...] += alpha_w * pt * pt * bce                # unnormalized
    acc_pos[...] += t

    # ---------------- regression: sin-diff + weighted smooth-L1 ------------
    rm4 = rm_ref[0].astype(jnp.float32)                    # (A, 7, T)
    tg4 = tg_ref[0].astype(jnp.float32)
    tgc = jnp.where(jnp.isnan(tg4), rm4, tg4)              # NaN target -> zero diff
    code = lax.broadcasted_iota(jnp.int32, rm4.shape, 1)
    d_lin = jnp.where(code == 6, 0.0, rm4 - tgc)           # linear codes only
    n = jnp.abs(d_lin)
    sl1 = jnp.where(n < BETA, (0.5 / BETA) * n * n, n - 0.5 * BETA)
    s = jnp.sum(sl1, axis=1)                               # (A, T) per-box sum
    # angle code (row 6): sin(r)cos(t) - cos(r)sin(t) == sin(r - t).
    # (NaN angle targets give 0 contribution here; the torch original yields
    #  NaN in that degenerate case.)
    d_ang = jnp.sin(rm4[:, 6, :] - tgc[:, 6, :])           # (A, T)
    na = jnp.abs(d_ang)
    s = s + jnp.where(na < BETA, (0.5 / BETA) * na * na, na - 0.5 * BETA)
    acc_reg[...] += s * t                                  # per-box pos weight

    @pl.when(j == nt - 1)
    def _finalize():
        cls_s = jnp.sum(acc_cls[...])
        reg_s = jnp.sum(acc_reg[...])
        np_s = jnp.sum(acc_pos[...])
        lane = lax.broadcasted_iota(jnp.int32, (1, 128), 1)
        row = jnp.where(lane == 0, cls_s,
              jnp.where(lane == 1, reg_s,
              jnp.where(lane == 2, np_s, 0.0)))
        out_ref[...] = row.reshape(out_ref.shape)


def _pick_tile(hw, cap=2048):
    """Largest lane tile (multiple of 128, <= cap) dividing HW; else HW."""
    if hw % 128 != 0:
        # TODO(synk): pad HW to a 128 multiple (labels padded with -1) instead
        # of falling back to a single full-row tile.
        return hw
    cand = min(cap, hw)
    cand -= cand % 128
    while cand >= 128:
        if hw % cand == 0:
            return cand
        cand -= 128
    return hw


@functools.partial(jax.jit, static_argnames=("cls_weight", "reg_coe"))
def point_pillar_loss(psm, rm, targets, pos_equal_one,
                      cls_weight=1.0, reg_coe=2.0):
    """Forward pass of PointPillarLoss (domain=None path).

    psm:            (B, anchor_num, H, W)        cls logits   (NCHW)
    rm:             (B, 7*anchor_num, H, W)      reg preds    (NCHW)
    targets:        (B, H, W, 7*anchor_num)      reg targets
    pos_equal_one:  (B, H, W, anchor_num)        positive mask (strictly 0/1)
    """
    B, A, H, W = psm.shape
    HW = H * W
    assert rm.shape == (B, 7 * A, H, W)
    assert targets.shape == (B, H, W, 7 * A)
    assert pos_equal_one.shape == (B, H, W, A)

    T = _pick_tile(HW)
    nt = HW // T

    # Network outputs stay in native NCHW memory layout (free reshapes).
    psm_r = psm.reshape(B, A, HW)
    rm_r = rm.reshape(B, A, 7, HW)
    # Single small (N-sized) relayout of the positive mask; it is DMA'd once
    # and serves both as the cls label and the per-box regression weight.
    pos_t = jnp.transpose(pos_equal_one.reshape(B, HW, A),
                          (0, 2, 1)).astype(jnp.float32)           # (B, A, HW)
    # TODO(synk): this 7N targets transpose is the one remaining extra HBM
    # round trip; it disappears if the target producer emits anchor/code-major
    # targets.  Consuming targets natively would cost 56-byte DMA rows plus an
    # in-kernel general transpose, a worse trade on current Mosaic.
    tg_r = jnp.transpose(targets.reshape(B, HW, 7 * A),
                         (0, 2, 1)).reshape(B, A, 7, HW)

    out = pl.pallas_call(
        _point_pillar_loss_kernel,
        grid=(B, nt),
        in_specs=[
            pl.BlockSpec((1, A, T), lambda b, j: (b, 0, j)),        # psm
            pl.BlockSpec((1, A, T), lambda b, j: (b, 0, j)),        # pos mask
            pl.BlockSpec((1, A, 7, T), lambda b, j: (b, 0, 0, j)),  # rm
            pl.BlockSpec((1, A, 7, T), lambda b, j: (b, 0, 0, j)),  # targets
        ],
        out_specs=pl.BlockSpec((1, 1, 128), lambda b, j: (b, 0, 0)),
        out_shape=jax.ShapeDtypeStruct((B, 1, 128), jnp.float32),
        scratch_shapes=[
            pltpu.VMEM((A, T), jnp.float32),   # cls partial sums
            pltpu.VMEM((A, T), jnp.float32),   # reg partial sums
            pltpu.VMEM((A, T), jnp.float32),   # positive count partials
        ],
        compiler_params=pltpu.CompilerParams(
            dimension_semantics=("parallel", "arbitrary"),
            vmem_limit_bytes=32 * 1024 * 1024),
    )(psm_r, pos_t, rm_r, tg_r)

    cls_sum = out[:, 0, 0]
    reg_sum = out[:, 0, 1]
    npos = out[:, 0, 2]
    norm = jnp.maximum(npos, 1.0)                      # per-batch normalizer
    conf_loss = jnp.sum(cls_sum / norm) / B * cls_weight
    reg_loss = jnp.sum(reg_sum / norm) / B * reg_coe
    total_loss = reg_loss + conf_loss
    return total_loss, conf_loss, reg_loss


# --------------------- pure-JAX reference (for checking) -------------------
def _reference(psm, rm, targets, pos_equal_one, cls_weight, reg_coe):
    B = psm.shape[0]
    cls_preds = jnp.transpose(psm, (0, 2, 3, 1)).reshape(B, -1, 1)
    labels = pos_equal_one.reshape(B, -1)
    positives = (labels > 0).astype(jnp.float32)
    negatives = (labels == 0).astype(jnp.float32)
    cls_w = negatives + positives
    reg_w = positives
    pos_norm = jnp.maximum(jnp.sum(positives, axis=1, keepdims=True), 1.0)
    cls_w = cls_w / pos_norm
    reg_w = reg_w / pos_norm
    one_hot = jax.nn.one_hot(labels.astype(jnp.int32), 2, dtype=psm.dtype)[..., 1:]

    x = cls_preds
    t = one_hot
    sig = jax.nn.sigmoid(x)
    alpha_w = t * ALPHA + (1 - t) * (1 - ALPHA)
    pt = t * (1.0 - sig) + (1.0 - t) * sig
    focal_w = alpha_w * jnp.power(pt, GAMMA)
    bce = jnp.maximum(x, 0.0) - x * t + jnp.log1p(jnp.exp(-jnp.abs(x)))
    cls_loss = focal_w * bce * cls_w[..., None]
    conf_loss = jnp.sum(cls_loss) / B * cls_weight

    rm_f = jnp.transpose(rm, (0, 2, 3, 1)).reshape(B, -1, 7)
    tg_f = targets.reshape(B, -1, 7)
    p6 = jnp.sin(rm_f[..., 6:7]) * jnp.cos(tg_f[..., 6:7])
    t6 = jnp.cos(rm_f[..., 6:7]) * jnp.sin(tg_f[..., 6:7])
    b1 = jnp.concatenate([rm_f[..., :6], p6], axis=-1)
    b2 = jnp.concatenate([tg_f[..., :6], t6], axis=-1)
    b2 = jnp.where(jnp.isnan(b2), b1, b2)
    n = jnp.abs(b1 - b2)
    sl1 = jnp.where(n < BETA, 0.5 * n * n / BETA, n - 0.5 * BETA)
    sl1 = sl1 * reg_w[..., None]
    reg_loss = jnp.sum(sl1) / B * reg_coe
    return reg_loss + conf_loss, conf_loss, reg_loss


if __name__ == "__main__":
    # args = {'cls_weight': 1.0, 'reg': 2.0}
    CLS_WEIGHT, REG_COE = 1.0, 2.0
    configs = [
        (2, 2, 64, 64),   # HW=4096 -> T=2048, 2 spatial tiles (pipelined path)
        (2, 2, 16, 16),   # HW=256  -> single tile (init+finalize same step)
        (1, 2, 12, 20),   # HW=240  -> non-128 fallback tile, B=1
    ]
    key = jax.random.PRNGKey(0)
    for (B, A, H, W) in configs:
        key, k1, k2, k3, k4 = jax.random.split(key, 5)
        psm = jax.random.normal(k1, (B, A, H, W), jnp.float32)
        rm = jax.random.normal(k2, (B, 7 * A, H, W), jnp.float32)
        targets = jax.random.normal(k3, (B, H, W, 7 * A), jnp.float32)
        pos_equal_one = jax.random.bernoulli(
            k4, p=0.1, shape=(B, H, W, A)).astype(jnp.float32)

        total, conf, reg = point_pillar_loss(
            psm, rm, targets, pos_equal_one,
            cls_weight=CLS_WEIGHT, reg_coe=REG_COE)
        jax.block_until_ready(total)

        ref_total, ref_conf, ref_reg = _reference(
            psm, rm, targets, pos_equal_one, CLS_WEIGHT, REG_COE)
        assert jnp.allclose(total, ref_total, rtol=1e-4, atol=1e-4), (
            (B, A, H, W), total, ref_total)
        assert jnp.allclose(conf, ref_conf, rtol=1e-4, atol=1e-4), (
            (B, A, H, W), conf, ref_conf)
        assert jnp.allclose(reg, ref_reg, rtol=1e-4, atol=1e-4), (
            (B, A, H, W), reg, ref_reg)

    print("KERNEL_OK")
</pallas_src>

<mosaic_0001>
module attributes {stable_mosaic.version = 11 : i64} {
  func.func @_point_pillar_loss_kernel(%arg0: i32, %arg1: i32, %arg2: memref<1x2x2048xf32, #tpu.memory_space<vmem>>, %arg3: memref<1x2x2048xf32, #tpu.memory_space<vmem>>, %arg4: memref<1x2x7x2048xf32, #tpu.memory_space<vmem>>, %arg5: memref<1x2x7x2048xf32, #tpu.memory_space<vmem>>, %arg6: memref<1x1x128xf32, #tpu.memory_space<vmem>>, %arg7: memref<2x2048xf32, #tpu.memory_space<vmem>>, %arg8: memref<2x2048xf32, #tpu.memory_space<vmem>>, %arg9: memref<2x2048xf32, #tpu.memory_space<vmem>>) attributes {dimension_semantics = [#tpu.dimension_semantics<parallel>, #tpu.dimension_semantics<arbitrary>], iteration_bounds = array<i64: 2, 2>, scalar_prefetch = 0 : i64, scratch_operands = 3 : i64, tpu.core_type = #tpu.core_type<tc>, window_params = [{transform_indices = @transform_0, window_bounds = array<i64: 1, 2, 2048>}, {transform_indices = @transform_1, window_bounds = array<i64: 1, 2, 2048>}, {transform_indices = @transform_2, window_bounds = array<i64: 1, 2, 7, 2048>}, {transform_indices = @transform_3, window_bounds = array<i64: 1, 2, 7, 2048>}, {transform_indices = @transform_4, window_bounds = array<i64: 1, 1, 128>}]} {
    %c0_i32 = arith.constant 0 : i32
    %0 = arith.cmpi eq, %arg1, %c0_i32 : i32
    %1 = arith.extui %0 : i1 to i32
    %c0_i32_0 = arith.constant 0 : i32
    %2 = arith.cmpi ne, %1, %c0_i32_0 : i32
    scf.if %2 {
      %cst_44 = arith.constant 0.000000e+00 : f32
      %94 = vector.broadcast %cst_44 : f32 to vector<2x2048xf32>
      %c0_45 = arith.constant 0 : index
      %c0_46 = arith.constant 0 : index
      %95 = vector.load %arg7[%c0_45, %c0_46] : memref<2x2048xf32, #tpu.memory_space<vmem>>, vector<2x2048xf32>
      tpu.vector_store %arg7[%c0_45, %c0_46], %94 {strides = array<i32>} : memref<2x2048xf32, #tpu.memory_space<vmem>>, vector<2x2048xf32>,
      %cst_47 = arith.constant 0.000000e+00 : f32
      %96 = vector.broadcast %cst_47 : f32 to vector<2x2048xf32>
      %c0_48 = arith.constant 0 : index
      %c0_49 = arith.constant 0 : index
      %97 = vector.load %arg8[%c0_48, %c0_49] : memref<2x2048xf32, #tpu.memory_space<vmem>>, vector<2x2048xf32>
      tpu.vector_store %arg8[%c0_48, %c0_49], %96 {strides = array<i32>} : memref<2x2048xf32, #tpu.memory_space<vmem>>, vector<2x2048xf32>,
      %cst_50 = arith.constant 0.000000e+00 : f32
      %98 = vector.broadcast %cst_50 : f32 to vector<2x2048xf32>
      %c0_51 = arith.constant 0 : index
      %c0_52 = arith.constant 0 : index
      %99 = vector.load %arg9[%c0_51, %c0_52] : memref<2x2048xf32, #tpu.memory_space<vmem>>, vector<2x2048xf32>
      tpu.vector_store %arg9[%c0_51, %c0_52], %98 {strides = array<i32>} : memref<2x2048xf32, #tpu.memory_space<vmem>>, vector<2x2048xf32>,
      %cst_53 = arith.constant 0.000000e+00 : f32
      %100 = vector.broadcast %cst_53 : f32 to vector<1x1x128xf32>
      %c0_54 = arith.constant 0 : index
      %c0_55 = arith.constant 0 : index
      %c0_56 = arith.constant 0 : index
      %101 = vector.load %arg6[%c0_54, %c0_55, %c0_56] : memref<1x1x128xf32, #tpu.memory_space<vmem>>, vector<1x1x128xf32>
      tpu.vector_store %arg6[%c0_54, %c0_55, %c0_56], %100 {strides = array<i32>} : memref<1x1x128xf32, #tpu.memory_space<vmem>>, vector<1x1x128xf32>,
    } else {
    }
    %c0 = arith.constant 0 : index
    %c0_1 = arith.constant 0 : index
    %c0_2 = arith.constant 0 : index
    %3 = vector.load %arg3[%c0, %c0_1, %c0_2] : memref<1x2x2048xf32, #tpu.memory_space<vmem>>, vector<1x2x2048xf32>
    %4 = vector.shape_cast %3 : vector<1x2x2048xf32> to vector<2x2048xf32>
    %cst = arith.constant 0.000000e+00 : f32
    %5 = vector.broadcast %cst : f32 to vector<2x2048xf32>
    %6 = arith.cmpf ogt, %4, %5 : vector<2x2048xf32>
    %7 = arith.extui %6 : vector<2x2048xi1> to vector<2x2048xi32>
    %8 = arith.sitofp %7 : vector<2x2048xi32> to vector<2x2048xf32>
    %c0_3 = arith.constant 0 : index
    %c0_4 = arith.constant 0 : index
    %c0_5 = arith.constant 0 : index
    %9 = vector.load %arg2[%c0_3, %c0_4, %c0_5] : memref<1x2x2048xf32, #tpu.memory_space<vmem>>, vector<1x2x2048xf32>
    %10 = vector.shape_cast %9 : vector<1x2x2048xf32> to vector<2x2048xf32>
    %11 = math.absf %10 : vector<2x2048xf32>
    %cst_6 = arith.constant 0.000000e+00 : f32
    %12 = vector.broadcast %cst_6 : f32 to vector<2x2048xf32>
    %13 = arith.subf %12, %11 : vector<2x2048xf32>
    %14 = math.exp %13 : vector<2x2048xf32>
    %cst_7 = arith.constant 0.000000e+00 : f32
    %15 = vector.broadcast %cst_7 : f32 to vector<2x2048xf32>
    %16 = arith.cmpf oge, %10, %15 : vector<2x2048xf32>
    %cst_8 = arith.constant 1.000000e+00 : f32
    %17 = vector.broadcast %cst_8 : f32 to vector<2x2048xf32>
    %18 = arith.select %16, %17, %14 : vector<2x2048xi1>, vector<2x2048xf32>
    %cst_9 = arith.constant 1.000000e+00 : f32
    %19 = vector.broadcast %cst_9 : f32 to vector<2x2048xf32>
    %20 = arith.addf %19, %14 : vector<2x2048xf32>
    %21 = arith.divf %18, %20 : vector<2x2048xf32>
    %cst_10 = arith.constant 2.500000e-01 : f32
    %22 = vector.broadcast %cst_10 : f32 to vector<2x2048xf32>
    %23 = arith.mulf %8, %22 : vector<2x2048xf32>
    %cst_11 = arith.constant 1.000000e+00 : f32
    %24 = vector.broadcast %cst_11 : f32 to vector<2x2048xf32>
    %25 = arith.subf %24, %8 : vector<2x2048xf32>
    %cst_12 = arith.constant 7.500000e-01 : f32
    %26 = vector.broadcast %cst_12 : f32 to vector<2x2048xf32>
    %27 = arith.mulf %25, %26 : vector<2x2048xf32>
    %28 = arith.addf %23, %27 : vector<2x2048xf32>
    %29 = arith.addf %8, %21 : vector<2x2048xf32>
    %cst_13 = arith.constant 2.000000e+00 : f32
    %30 = vector.broadcast %cst_13 : f32 to vector<2x2048xf32>
    %31 = arith.mulf %30, %8 : vector<2x2048xf32>
    %32 = arith.mulf %31, %21 : vector<2x2048xf32>
    %33 = arith.subf %29, %32 : vector<2x2048xf32>
    %cst_14 = arith.constant 0.000000e+00 : f32
    %34 = vector.broadcast %cst_14 : f32 to vector<2x2048xf32>
    %35 = arith.maximumf %10, %34 : vector<2x2048xf32>
    %36 = arith.mulf %10, %8 : vector<2x2048xf32>
    %37 = arith.subf %35, %36 : vector<2x2048xf32>
    %38 = math.log1p %14 : vector<2x2048xf32>
    %39 = arith.addf %37, %38 : vector<2x2048xf32>
    %c0_15 = arith.constant 0 : index
    %c0_16 = arith.constant 0 : index
    %40 = vector.load %arg7[%c0_15, %c0_16] : memref<2x2048xf32, #tpu.memory_space<vmem>>, vector<2x2048xf32>
    %41 = arith.mulf %28, %33 : vector<2x2048xf32>
    %42 = arith.mulf %41, %33 : vector<2x2048xf32>
    %43 = arith.mulf %42, %39 : vector<2x2048xf32>
    %44 = arith.addf %40, %43 : vector<2x2048xf32>
    %c0_17 = arith.constant 0 : index
    %c0_18 = arith.constant 0 : index
    %45 = vector.load %arg7[%c0_17, %c0_18] : memref<2x2048xf32, #tpu.memory_space<vmem>>, vector<2x2048xf32>
    tpu.vector_store %arg7[%c0_17, %c0_18], %44 {strides = array<i32>} : memref<2x2048xf32, #tpu.memory_space<vmem>>, vector<2x2048xf32>,
    %c0_19 = arith.constant 0 : index
    %c0_20 = arith.constant 0 : index
    %46 = vector.load %arg9[%c0_19, %c0_20] : memref<2x2048xf32, #tpu.memory_space<vmem>>, vector<2x2048xf32>
    %47 = arith.addf %46, %8 : vector<2x2048xf32>
    %c0_21 = arith.constant 0 : index
    %c0_22 = arith.constant 0 : index
    %48 = vector.load %arg9[%c0_21, %c0_22] : memref<2x2048xf32, #tpu.memory_space<vmem>>, vector<2x2048xf32>
    tpu.vector_store %arg9[%c0_21, %c0_22], %47 {strides = array<i32>} : memref<2x2048xf32, #tpu.memory_space<vmem>>, vector<2x2048xf32>,
    %c0_23 = arith.constant 0 : index
    %c0_24 = arith.constant 0 : index
    %c0_25 = arith.constant 0 : index
    %c0_26 = arith.constant 0 : index
    %49 = vector.load %arg4[%c0_23, %c0_24, %c0_25, %c0_26] : memref<1x2x7x2048xf32, #tpu.memory_space<vmem>>, vector<1x2x7x2048xf32>
    %50 = vector.shape_cast %49 : vector<1x2x7x2048xf32> to vector<2x7x2048xf32>
    %c0_27 = arith.constant 0 : index
    %c0_28 = arith.constant 0 : index
    %c0_29 = arith.constant 0 : index
    %c0_30 = arith.constant 0 : index
    %51 = vector.load %arg5[%c0_27, %c0_28, %c0_29, %c0_30] : memref<1x2x7x2048xf32, #tpu.memory_space<vmem>>, vector<1x2x7x2048xf32>
    %52 = vector.shape_cast %51 : vector<1x2x7x2048xf32> to vector<2x7x2048xf32>
    %53 = arith.cmpf one, %52, %52 : vector<2x7x2048xf32>
    %54 = arith.select %53, %50, %52 : vector<2x7x2048xi1>, vector<2x7x2048xf32>
    %55 = tpu.iota {dimensions = array<i32: 1>} : vector<2x7x2048xi32>
    %c6_i32 = arith.constant 6 : i32
    %56 = vector.broadcast %c6_i32 : i32 to vector<2x7x2048xi32>
    %57 = arith.cmpi eq, %55, %56 : vector<2x7x2048xi32>
    %58 = arith.subf %50, %54 : vector<2x7x2048xf32>
    %cst_31 = arith.constant 0.000000e+00 : f32
    %59 = vector.broadcast %cst_31 : f32 to vector<2x7x2048xf32>
    %60 = arith.select %57, %59, %58 : vector<2x7x2048xi1>, vector<2x7x2048xf32>
    %61 = math.absf %60 : vector<2x7x2048xf32>
    %cst_32 = arith.constant 0.111111112 : f32
    %62 = vector.broadcast %cst_32 : f32 to vector<2x7x2048xf32>
    %63 = arith.cmpf olt, %61, %62 : vector<2x7x2048xf32>
    %cst_33 = arith.constant 4.500000e+00 : f32
    %64 = vector.broadcast %cst_33 : f32 to vector<2x7x2048xf32>
    %65 = arith.mulf %64, %61 : vector<2x7x2048xf32>
    %66 = arith.mulf %65, %61 : vector<2x7x2048xf32>
    %cst_34 = arith.constant 0.055555556 : f32
    %67 = vector.broadcast %cst_34 : f32 to vector<2x7x2048xf32>
    %68 = arith.subf %61, %67 : vector<2x7x2048xf32>
    %69 = arith.select %63, %66, %68 : vector<2x7x2048xi1>, vector<2x7x2048xf32>
    %cst_35 = arith.constant dense<0.000000e+00> : vector<2x2048xf32>
    %70 = vector.multi_reduction <add>, %69, %cst_35 [1] : vector<2x7x2048xf32> to vector<2x2048xf32>
    %71 = vector.extract_strided_slice %50 {offsets = [0, 6, 0], sizes = [2, 1, 2048], strides = [1, 1, 1]} : vector<2x7x2048xf32> to vector<2x1x2048xf32>
    %72 = vector.shape_cast %71 : vector<2x1x2048xf32> to vector<2x2048xf32>
    %73 = vector.extract_strided_slice %54 {offsets = [0, 6, 0], sizes = [2, 1, 2048], strides = [1, 1, 1]} : vector<2x7x2048xf32> to vector<2x1x2048xf32>
    %74 = vector.shape_cast %73 : vector<2x1x2048xf32> to vector<2x2048xf32>
    %75 = arith.subf %72, %74 : vector<2x2048xf32>
    %76 = math.sin %75 : vector<2x2048xf32>
    %77 = math.absf %76 : vector<2x2048xf32>
    %cst_36 = arith.constant 0.111111112 : f32
    %78 = vector.broadcast %cst_36 : f32 to vector<2x2048xf32>
    %79 = arith.cmpf olt, %77, %78 : vector<2x2048xf32>
    %cst_37 = arith.constant 4.500000e+00 : f32
    %80 = vector.broadcast %cst_37 : f32 to vector<2x2048xf32>
    %81 = arith.mulf %80, %77 : vector<2x2048xf32>
    %82 = arith.mulf %81, %77 : vector<2x2048xf32>
    %cst_38 = arith.constant 0.055555556 : f32
    %83 = vector.broadcast %cst_38 : f32 to vector<2x2048xf32>
    %84 = arith.subf %77, %83 : vector<2x2048xf32>
    %85 = arith.select %79, %82, %84 : vector<2x2048xi1>, vector<2x2048xf32>
    %86 = arith.addf %70, %85 : vector<2x2048xf32>
    %c0_39 = arith.constant 0 : index
    %c0_40 = arith.constant 0 : index
    %87 = vector.load %arg8[%c0_39, %c0_40] : memref<2x2048xf32, #tpu.memory_space<vmem>>, vector<2x2048xf32>
    %88 = arith.mulf %86, %8 : vector<2x2048xf32>
    %89 = arith.addf %87, %88 : vector<2x2048xf32>
    %c0_41 = arith.constant 0 : index
    %c0_42 = arith.constant 0 : index
    %90 = vector.load %arg8[%c0_41, %c0_42] : memref<2x2048xf32, #tpu.memory_space<vmem>>, vector<2x2048xf32>
    tpu.vector_store %arg8[%c0_41, %c0_42], %89 {strides = array<i32>} : memref<2x2048xf32, #tpu.memory_space<vmem>>, vector<2x2048xf32>,
    %c1_i32 = arith.constant 1 : i32
    %91 = arith.cmpi eq, %arg1, %c1_i32 : i32
    %92 = arith.extui %91 : i1 to i32
    %c0_i32_43 = arith.constant 0 : i32
    %93 = arith.cmpi ne, %92, %c0_i32_43 : i32
    scf.if %93 {
      %c0_44 = arith.constant 0 : index
      %c0_45 = arith.constant 0 : index
      %94 = vector.load %arg7[%c0_44, %c0_45] : memref<2x2048xf32, #tpu.memory_space<vmem>>, vector<2x2048xf32>
      %95 = vector.shape_cast %94 : vector<2x2048xf32> to vector<1x2x2048xf32>
      %cst_46 = arith.constant dense<0.000000e+00> : vector<1xf32>
      %96 = vector.multi_reduction <add>, %95, %cst_46 [1, 2] : vector<1x2x2048xf32> to vector<1xf32>
      %97 = vector.shape_cast %96 : vector<1xf32> to vector<1x1x1xf32>
      %98 = vector.extract %97[0, 0, 0] : f32 from vector<1x1x1xf32>
      %c0_47 = arith.constant 0 : index
      %c0_48 = arith.constant 0 : index
      %99 = vector.load %arg8[%c0_47, %c0_48] : memref<2x2048xf32, #tpu.memory_space<vmem>>, vector<2x2048xf32>
      %100 = vector.shape_cast %99 : vector<2x2048xf32> to vector<1x2x2048xf32>
      %cst_49 = arith.constant dense<0.000000e+00> : vector<1xf32>
      %101 = vector.multi_reduction <add>, %100, %cst_49 [1, 2] : vector<1x2x2048xf32> to vector<1xf32>
      %102 = vector.shape_cast %101 : vector<1xf32> to vector<1x1x1xf32>
      %103 = vector.extract %102[0, 0, 0] : f32 from vector<1x1x1xf32>
      %c0_50 = arith.constant 0 : index
      %c0_51 = arith.constant 0 : index
      %104 = vector.load %arg9[%c0_50, %c0_51] : memref<2x2048xf32, #tpu.memory_space<vmem>>, vector<2x2048xf32>
      %105 = vector.shape_cast %104 : vector<2x2048xf32> to vector<1x2x2048xf32>
      %cst_52 = arith.constant dense<0.000000e+00> : vector<1xf32>
      %106 = vector.multi_reduction <add>, %105, %cst_52 [1, 2] : vector<1x2x2048xf32> to vector<1xf32>
      %107 = vector.shape_cast %106 : vector<1xf32> to vector<1x1x1xf32>
      %108 = vector.extract %107[0, 0, 0] : f32 from vector<1x1x1xf32>
      %109 = tpu.iota {dimensions = array<i32: 1>} : vector<1x128xi32>
      %c0_i32_53 = arith.constant 0 : i32
      %110 = vector.broadcast %c0_i32_53 : i32 to vector<1x128xi32>
      %111 = arith.cmpi eq, %109, %110 : vector<1x128xi32>
      %c1_i32_54 = arith.constant 1 : i32
      %112 = vector.broadcast %c1_i32_54 : i32 to vector<1x128xi32>
      %113 = arith.cmpi eq, %109, %112 : vector<1x128xi32>
      %c2_i32 = arith.constant 2 : i32
      %114 = vector.broadcast %c2_i32 : i32 to vector<1x128xi32>
      %115 = arith.cmpi eq, %109, %114 : vector<1x128xi32>
      %cst_55 = arith.constant 0.000000e+00 : f32
      %116 = vector.broadcast %108 : f32 to vector<1x128xf32>
      %117 = vector.broadcast %cst_55 : f32 to vector<1x128xf32>
      %118 = arith.select %115, %116, %117 : vector<1x128xi1>, vector<1x128xf32>
      %119 = vector.broadcast %103 : f32 to vector<1x128xf32>
      %120 = arith.select %113, %119, %118 : vector<1x128xi1>, vector<1x128xf32>
      %121 = vector.broadcast %98 : f32 to vector<1x128xf32>
      %122 = arith.select %111, %121, %120 : vector<1x128xi1>, vector<1x128xf32>
      %123 = vector.shape_cast %122 : vector<1x128xf32> to vector<1x1x128xf32>
      %c0_56 = arith.constant 0 : index
      %c0_57 = arith.constant 0 : index
      %c0_58 = arith.constant 0 : index
      %124 = vector.load %arg6[%c0_56, %c0_57, %c0_58] : memref<1x1x128xf32, #tpu.memory_space<vmem>>, vector<1x1x128xf32>
      tpu.vector_store %arg6[%c0_56, %c0_57, %c0_58], %123 {strides = array<i32>} : memref<1x1x128xf32, #tpu.memory_space<vmem>>, vector<1x1x128xf32>,
    } else {
    }
    return
  }
  func.func @transform_0(%arg0: i32, %arg1: i32) -> (i32, i32, i32) {
    %c0_i32 = arith.constant 0 : i32
    %c0_i32_0 = arith.constant 0 : i32
    return %arg0, %c0_i32, %arg1 : i32, i32, i32
  }
  func.func @transform_1(%arg0: i32, %arg1: i32) -> (i32, i32, i32) {
    %c0_i32 = arith.constant 0 : i32
    %c0_i32_0 = arith.constant 0 : i32
    return %arg0, %c0_i32, %arg1 : i32, i32, i32
  }
  func.func @transform_2(%arg0: i32, %arg1: i32) -> (i32, i32, i32, i32) {
    %c0_i32 = arith.constant 0 : i32
    %c0_i32_0 = arith.constant 0 : i32
    %c0_i32_1 = arith.constant 0 : i32
    return %arg0, %c0_i32, %c0_i32_0, %arg1 : i32, i32, i32, i32
  }
  func.func @transform_3(%arg0: i32, %arg1: i32) -> (i32, i32, i32, i32) {
    %c0_i32 = arith.constant 0 : i32
    %c0_i32_0 = arith.constant 0 : i32
    %c0_i32_1 = arith.constant 0 : i32
    return %arg0, %c0_i32, %c0_i32_0, %arg1 : i32, i32, i32, i32
  }
  func.func @transform_4(%arg0: i32, %arg1: i32) -> (i32, i32, i32) {
    %c0_i32 = arith.constant 0 : i32
    %c0_i32_0 = arith.constant 0 : i32
    %c0_i32_1 = arith.constant 0 : i32
    return %arg0, %c0_i32, %c0_i32_0 : i32, i32, i32
  }
}

</mosaic_0001>

<llo_original>
// kernel: point_pillar_loss.1
$region0: #{point_pillar_loss.1}
  #allocation0 [shape = 'u32[]', space=smem, size = 0x4, offset = 0x4, fixed_abs, tag = 'smem constant byte address 0x4 - core index']
  #allocation1 [shape = 'u32[144,128]{1,0:T(1,128)}', space=vmem, size = 0x12000, scoped, tag = 'internal scratch']
  #allocation2 [shape = 'f32[2,2048]{1,0:T(2,128)}', space=vmem, size = 0x4000, scoped, tag = 'scratch operand']
  #allocation3 [shape = 'f32[2,2048]{1,0:T(2,128)}', space=vmem, size = 0x4000, scoped, tag = 'scratch operand']
  #allocation4 [shape = 'f32[2,2048]{1,0:T(2,128)}', space=vmem, size = 0x4000, scoped, tag = 'scratch operand']
  %s0 = inlined_call_operand.vmem [shape: f32[2,2,4096], index: 0, kind: input, shape index: {}]
  %s1 = inlined_call_operand.vmem [shape: f32[2,2,4096], index: 1, kind: input, shape index: {}]
  %s2 = inlined_call_operand.vmem [shape: f32[2,2,7,4096], index: 2, kind: input, shape index: {}]
  %s3 = inlined_call_operand.vmem [shape: f32[2,2,7,4096], index: 3, kind: input, shape index: {}]
  %s4 = inlined_call_operand.vmem [shape: f32[2,1,128], index: 4, kind: output, shape index: {}]
  %s5 = sld [smem:[#allocation0]]
  $region103: #{point_pillar_loss.1} parent=0
    _
  %s7 = ssub.s32 1, %s5
  %s8 = scalar_select 0, %s7, %s5
  $region1: #{point_pillar_loss.1} parent=0
    #allocation5 [shape = 'u8[262144]{0}', space=vmem, size = 0x40000, scoped, tag = 'input window, operand 2']
    #allocation6 [shape = 'u8[262144]{0}', space=vmem, size = 0x40000, scoped, tag = 'input window, operand 3']
    loop: start=0, step=1, limit=6
    $region2: #{point_pillar_loss.1} parent=1 // loop_pre_header
      _
    $region3: #{point_pillar_loss.1} parent=1 // loop_header
      %s10 = sphi 0, %s14
      %p11 = scmp.ge.s32.totalorder %s10, 6
      %s17 = sphi 0, %s29
      %s18 = sphi 0, %s25
      %s19 = sphi 0, %s17
      %s20 = sphi 0, %s18
      %s21 = sphi 0, %s19
      %s22 = sphi 0, %s20
      %s34 = sphi 0, %s36
      %s37 = sphi 0, %s34
      %s38 = sphi 0, %s37
      %s54 = sphi 0, %s38
      %s62 = sphi 0, %s64
      %s65 = sphi 0, %s62
      %s66 = sphi 0, %s65
      %s82 = sphi 0, %s66
      %s90 = sphi 0, %s92
      %s93 = sphi 0, %s90
      %s94 = sphi 0, %s93
      %s110 = sphi 0, %s94
      %s118 = sphi 0, %s120
      %s121 = sphi 0, %s118
      %s122 = sphi 0, %s121
      %s138 = sphi 0, %s122
      %s144 = sphi 0, %s146
      %s147 = sphi 0, %s144
      %s148 = sphi 0, %s147
      %s164 = sphi 0, %s148
    $region4: #{point_pillar_loss.1} parent=1 // loop_header_branch
      %13 = sbr.rel (%p11) target = $region8
    $region5: #{point_pillar_loss.1} parent=1 // loop_body
      %s15 = ssub.s32 %s10, 1
      %s16 = ssub.s32 %s10, 2
      %s23 = sadd.s32 1, %s18
      %p24 = scmp.ge.s32.totalorder %s23, 2
      %s25 = scalar_select %p24, 0, %s23
      %s26 = sadd.s32 1, %s17
      %s27 = scalar_select %p24, %s26, %s17
      %p28 = scmp.ge.s32.totalorder %s27, 2
      %s29 = scalar_select %p28, 0, %s27
      %s30 = ssub.s32 %s17, %s29
      %s31 = ssub.s32 %s18, %s25
      %s32 = sor.u32 %s30, %s31
      %p33 = scmp.eq.s32.totalorder %s32, 0
      %s35 = sadd.s32 %s34, 1
      %s36 = scalar_select %p33, %s34, %s35
      %p39 = pneg %p33
      %p40 = scmp.eq.s32.totalorder %s10, 3
      %p41 = por %p39, %p40
      %p42 = scmp.ne.s32.totalorder %s34, %s37
      %p43 = scmp.eq.s32.totalorder %s10, 0
      %p44 = por %p42, %p43
      %p45 = scmp.ne.s32.totalorder %s34, %s37
      %p46 = scmp.eq.s32.totalorder %s15, 3
      %p47 = por %p45, %p46
      %p48 = scmp.ne.s32.totalorder %s37, %s38
      %p49 = scmp.eq.s32.totalorder %s15, 0
      %p50 = por %p48, %p49
      %p51 = scmp.ne.s32.totalorder %s37, %s38
      %p52 = scmp.eq.s32.totalorder %s16, 3
      %p53 = por %p51, %p52
      %p55 = scmp.ne.s32.totalorder %s38, %s54
      %p56 = scmp.eq.s32.totalorder %s16, 0
      %p57 = por %p55, %p56
      %s58 = ssub.s32 %s17, %s29
      %s59 = ssub.s32 %s18, %s25
      %s60 = sor.u32 %s58, %s59
      %p61 = scmp.eq.s32.totalorder %s60, 0
      %s63 = sadd.s32 %s62, 1
      %s64 = scalar_select %p61, %s62, %s63
      %p67 = pneg %p61
      %p68 = scmp.eq.s32.totalorder %s10, 3
      %p69 = por %p67, %p68
      %p70 = scmp.ne.s32.totalorder %s62, %s65
      %p71 = scmp.eq.s32.totalorder %s10, 0
      %p72 = por %p70, %p71
      %p73 = scmp.ne.s32.totalorder %s62, %s65
      %p74 = scmp.eq.s32.totalorder %s15, 3
      %p75 = por %p73, %p74
      %p76 = scmp.ne.s32.totalorder %s65, %s66
      %p77 = scmp.eq.s32.totalorder %s15, 0
      %p78 = por %p76, %p77
      %p79 = scmp.ne.s32.totalorder %s65, %s66
      %p80 = scmp.eq.s32.totalorder %s16, 3
      %p81 = por %p79, %p80
      %p83 = scmp.ne.s32.totalorder %s66, %s82
      %p84 = scmp.eq.s32.totalorder %s16, 0
      %p85 = por %p83, %p84
      %s86 = ssub.s32 %s17, %s29
      %s87 = ssub.s32 %s18, %s25
      %s88 = sor.u32 %s86, %s87
      %p89 = scmp.eq.s32.totalorder %s88, 0
      %s91 = sadd.s32 %s90, 1
      %s92 = scalar_select %p89, %s90, %s91
      %p95 = pneg %p89
      %p96 = scmp.eq.s32.totalorder %s10, 3
      %p97 = por %p95, %p96
      %p98 = scmp.ne.s32.totalorder %s90, %s93
      %p99 = scmp.eq.s32.totalorder %s10, 0
      %p100 = por %p98, %p99
      %p101 = scmp.ne.s32.totalorder %s90, %s93
      %p102 = scmp.eq.s32.totalorder %s15, 3
      %p103 = por %p101, %p102
      %p104 = scmp.ne.s32.totalorder %s93, %s94
      %p105 = scmp.eq.s32.totalorder %s15, 0
      %p106 = por %p104, %p105
      %p107 = scmp.ne.s32.totalorder %s93, %s94
      %p108 = scmp.eq.s32.totalorder %s16, 3
      %p109 = por %p107, %p108
      %p111 = scmp.ne.s32.totalorder %s94, %s110
      %p112 = scmp.eq.s32.totalorder %s16, 0
      %p113 = por %p111, %p112
      %s114 = ssub.s32 %s17, %s29
      %s115 = ssub.s32 %s18, %s25
      %s116 = sor.u32 %s114, %s115
      %p117 = scmp.eq.s32.totalorder %s116, 0
      %s119 = sadd.s32 %s118, 1
      %s120 = scalar_select %p117, %s118, %s119
      %p123 = pneg %p117
      %p124 = scmp.eq.s32.totalorder %s10, 3
      %p125 = por %p123, %p124
      %p126 = scmp.ne.s32.totalorder %s118, %s121
      %p127 = scmp.eq.s32.totalorder %s10, 0
      %p128 = por %p126, %p127
      %p129 = scmp.ne.s32.totalorder %s118, %s121
      %p130 = scmp.eq.s32.totalorder %s15, 3
      %p131 = por %p129, %p130
      %p132 = scmp.ne.s32.totalorder %s121, %s122
      %p133 = scmp.eq.s32.totalorder %s15, 0
      %p134 = por %p132, %p133
      %p135 = scmp.ne.s32.totalorder %s121, %s122
      %p136 = scmp.eq.s32.totalorder %s16, 3
      %p137 = por %p135, %p136
      %p139 = scmp.ne.s32.totalorder %s122, %s138
      %p140 = scmp.eq.s32.totalorder %s16, 0
      %p141 = por %p139, %p140
      %s142 = ssub.s32 %s17, %s29
      %p143 = scmp.eq.s32.totalorder %s142, 0
      %s145 = sadd.s32 %s144, 1
      %s146 = scalar_select %p143, %s144, %s145
      %p149 = pneg %p143
      %p150 = scmp.eq.s32.totalorder %s10, 3
      %p151 = por %p149, %p150
      %p152 = scmp.ne.s32.totalorder %s144, %s147
      %p153 = scmp.eq.s32.totalorder %s10, 0
      %p154 = por %p152, %p153
      %p155 = scmp.ne.s32.totalorder %s144, %s147
      %p156 = scmp.eq.s32.totalorder %s15, 3
      %p157 = por %p155, %p156
      %p158 = scmp.ne.s32.totalorder %s147, %s148
      %p159 = scmp.eq.s32.totalorder %s15, 0
      %p160 = por %p158, %p159
      %p161 = scmp.ne.s32.totalorder %s147, %s148
      %p162 = scmp.eq.s32.totalorder %s16, 3
      %p163 = por %p161, %p162
      %p165 = scmp.ne.s32.totalorder %s148, %s164
      %p166 = scmp.eq.s32.totalorder %s16, 0
      %p167 = por %p165, %p166
      %p168 = scmp.le.s32.totalorder 1, %s10
      %p169 = scmp.lt.s32.totalorder %s10, 5
      %p170 = pnand %p168, %p169
      %p171 = pneg %p170
      // Predicated region
      $region9: #{point_pillar_loss.1} parent=5 // pred_check
        _
      $region10: #{point_pillar_loss.1} parent=5 // pred_check_branch
        %173 = sbr.rel (%p170) target = $region12
      $region11: #{point_pillar_loss.1} parent=5 // pred_region
        %s174 = ssub.s32 %s10, 1
      $region12: #{point_pillar_loss.1} parent=5 // pred_fallthru
        _
      %p175 = scmp.lt.s32.totalorder %s10, 4
      // Predicated region
      $region13: #{point_pillar_loss.1} parent=5 // pred_check
        %p176 = pneg %p175
      $region14: #{point_pillar_loss.1} parent=5 // pred_check_branch
        %178 = sbr.rel (%p176) target = $region16
      $region15: #{point_pillar_loss.1} parent=5 // pred_region
        // Predicated region
        $region17: #{point_pillar_loss.1} parent=15 // pred_check
          %p179 = pneg %p44
        $region18: #{point_pillar_loss.1} parent=15 // pred_check_branch
          %181 = sbr.rel (%p179) target = $region20
        $region19: #{point_pillar_loss.1} parent=15 // pred_region
          %s182 = smul.u32 16, %s18
          %p183 = scmp.lt.s32.totalorder %s17, 1
          %s184 = scalar_select %p183, %s17, 1
          %p185 = scmp.lt.s32.totalorder %s182, 31
          %s186 = scalar_select %p185, %s182, 31
          %s187 = smul.addr %s184, 32
          %s188 = sadd.s32 %s186, %s187
          %s189 = smul.addr %s188, 2
          %s190 = scalar_lea.vmem %s0, %s189
          %s191 = smul.u32 16, %s18
        $region20: #{point_pillar_loss.1} parent=15 // pred_fallthru
          _
        // Predicated region
        $region21: #{point_pillar_loss.1} parent=15 // pred_check
          %p192 = pneg %p72
        $region22: #{point_pillar_loss.1} parent=15 // pred_check_branch
          %194 = sbr.rel (%p192) target = $region24
        $region23: #{point_pillar_loss.1} parent=15 // pred_region
          %s195 = smul.u32 16, %s18
          %p196 = scmp.lt.s32.totalorder %s17, 1
          %s197 = scalar_select %p196, %s17, 1
          %p198 = scmp.lt.s32.totalorder %s195, 31
          %s199 = scalar_select %p198, %s195, 31
          %s200 = smul.addr %s197, 32
          %s201 = sadd.s32 %s199, %s200
          %s202 = smul.addr %s201, 2
          %s203 = scalar_lea.vmem %s1, %s202
          %s204 = smul.u32 16, %s18
        $region24: #{point_pillar_loss.1} parent=15 // pred_fallthru
          _
        // Predicated region
        $region25: #{point_pillar_loss.1} parent=15 // pred_check
          %p205 = pneg %p100
        $region26: #{point_pillar_loss.1} parent=15 // pred_check_branch
          %207 = sbr.rel (%p205) target = $region28
        $region27: #{point_pillar_loss.1} parent=15 // pred_region
          %s208 = sand.u32 %s90, 1
          %s209 = sand.u32 %s90, 1
          %s210 = smul.addr %s209, 256
          %s211 = scalar_lea.vmem [#allocation5], %s210
          %s212 = smul.u32 16, %s18
          %s213 = smul.addr %s17, 64
          %s214 = sadd.s32 %s212, %s213
          %s215 = smul.addr %s214, 8
          %s216 = scalar_lea.vmem %s2, %s215
          // Predicated region
          $region29: #{point_pillar_loss.1} parent=27 // pred_check
            _
          $region30: #{point_pillar_loss.1} parent=27 // pred_check_branch
            %218 = sbr.rel (0) target = $region32
          $region31: #{point_pillar_loss.1} parent=27 // pred_region
            // Predicated region
            $region33: #{point_pillar_loss.1} parent=31 // pred_check
              _
            $region34: #{point_pillar_loss.1} parent=31 // pred_check_branch
              %220 = sbr.rel (0) target = $region36
            $region35: #{point_pillar_loss.1} parent=31 // pred_region
              loop: start=0, step=1, limit=1
              $region37: #{point_pillar_loss.1} parent=35 // loop_pre_header
                _
              $region38: #{point_pillar_loss.1} parent=35 // loop_header
                %s222 = sphi 0, %s226
                %p223 = scmp.ge.s32.totalorder %s222, 1
                %s227 = sphi %s216, %s216
                %s228 = sphi %s211, %s211
              $region39: #{point_pillar_loss.1} parent=35 // loop_header_branch
                %225 = sbr.rel (%p223) target = $region43
              $region40: #{point_pillar_loss.1} parent=35 // loop_body
                %v229 = vld [vmem:[%s227] sm:$0xff]
                %230 = vst [vmem:[%s228] sm:$0xff] %v229
                %v231 = vld [vmem:[%s227 + $0x8] sm:$0xff]
                %232 = vst [vmem:[%s228 + $0x8] sm:$0xff] %v231
                %v233 = vld [vmem:[%s227 + $0x10] sm:$0xff]
                %234 = vst [vmem:[%s228 + $0x10] sm:$0xff] %v233
                %v235 = vld [vmem:[%s227 + $0x18] sm:$0xff]
                %236 = vst [vmem:[%s228 + $0x18] sm:$0xff] %v235
                %v237 = vld [vmem:[%s227 + $0x20] sm:$0xff]
                %238 = vst [vmem:[%s228 + $0x20] sm:$0xff] %v237
                %v239 = vld [vmem:[%s227 + $0x28] sm:$0xff]
                %240 = vst [vmem:[%s228 + $0x28] sm:$0xff] %v239
                %v241 = vld [vmem:[%s227 + $0x30] sm:$0xff]
                %242 = vst [vmem:[%s228 + $0x30] sm:$0xff] %v241
                %v243 = vld [vmem:[%s227 + $0x38] sm:$0xff]
                %244 = vst [vmem:[%s228 + $0x38] sm:$0xff] %v243
                %v245 = vld [vmem:[%s227 + $0x40] sm:$0xff]
                %246 = vst [vmem:[%s228 + $0x40] sm:$0xff] %v245
                %v247 = vld [vmem:[%s227 + $0x48] sm:$0xff]
                %248 = vst [vmem:[%s228 + $0x48] sm:$0xff] %v247
                %v249 = vld [vmem:[%s227 + $0x50] sm:$0xff]
                %250 = vst [vmem:[%s228 + $0x50] sm:$0xff] %v249
                %v251 = vld [vmem:[%s227 + $0x58] sm:$0xff]
                %252 = vst [vmem:[%s228 + $0x58] sm:$0xff] %v251
                %v253 = vld [vmem:[%s227 + $0x60] sm:$0xff]
                %254 = vst [vmem:[%s228 + $0x60] sm:$0xff] %v253
                %v255 = vld [vmem:[%s227 + $0x68] sm:$0xff]
                %256 = vst [vmem:[%s228 + $0x68] sm:$0xff] %v255
                %v257 = vld [vmem:[%s227 + $0x70] sm:$0xff]
                %258 = vst [vmem:[%s228 + $0x70] sm:$0xff] %v257
                %v259 = vld [vmem:[%s227 + $0x78] sm:$0xff]
                %260 = vst [vmem:[%s228 + $0x78] sm:$0xff] %v259
                %v261 = vld [vmem:[%s227 + $0x100] sm:$0xff]
                %262 = vst [vmem:[%s228 + $0x80] sm:$0xff] %v261
                %v263 = vld [vmem:[%s227 + $0x108] sm:$0xff]
                %264 = vst [vmem:[%s228 + $0x88] sm:$0xff] %v263
                %v265 = vld [vmem:[%s227 + $0x110] sm:$0xff]
                %266 = vst [vmem:[%s228 + $0x90] sm:$0xff] %v265
                %v267 = vld [vmem:[%s227 + $0x118] sm:$0xff]
                %268 = vst [vmem:[%s228 + $0x98] sm:$0xff] %v267
                %v269 = vld [vmem:[%s227 + $0x120] sm:$0xff]
                %270 = vst [vmem:[%s228 + $0xa0] sm:$0xff] %v269
                %v271 = vld [vmem:[%s227 + $0x128] sm:$0xff]
                %272 = vst [vmem:[%s228 + $0xa8] sm:$0xff] %v271
                %v273 = vld [vmem:[%s227 + $0x130] sm:$0xff]
                %274 = vst [vmem:[%s228 + $0xb0] sm:$0xff] %v273
                %v275 = vld [vmem:[%s227 + $0x138] sm:$0xff]
                %276 = vst [vmem:[%s228 + $0xb8] sm:$0xff] %v275
                %v277 = vld [vmem:[%s227 + $0x140] sm:$0xff]
                %278 = vst [vmem:[%s228 + $0xc0] sm:$0xff] %v277
                %v279 = vld [vmem:[%s227 + $0x148] sm:$0xff]
                %280 = vst [vmem:[%s228 + $0xc8] sm:$0xff] %v279
                %v281 = vld [vmem:[%s227 + $0x150] sm:$0xff]
                %282 = vst [vmem:[%s228 + $0xd0] sm:$0xff] %v281
                %v283 = vld [vmem:[%s227 + $0x158] sm:$0xff]
                %284 = vst [vmem:[%s228 + $0xd8] sm:$0xff] %v283
                %v285 = vld [vmem:[%s227 + $0x160] sm:$0xff]
                %286 = vst [vmem:[%s228 + $0xe0] sm:$0xff] %v285
                %v287 = vld [vmem:[%s227 + $0x168] sm:$0xff]
                %288 = vst [vmem:[%s228 + $0xe8] sm:$0xff] %v287
                %v289 = vld [vmem:[%s227 + $0x170] sm:$0xff]
                %290 = vst [vmem:[%s228 + $0xf0] sm:$0xff] %v289
                %v291 = vld [vmem:[%s227 + $0x178] sm:$0xff]
                %292 = vst [vmem:[%s228 + $0xf8] sm:$0xff] %v291
              $region41: #{point_pillar_loss.1} parent=35 // loop_footer
                %s226 = sadd.s32 1, %s222
              $region42: #{point_pillar_loss.1} parent=35 // loop_footer_branch
                %221 = sbr.rel target = $region38
              $region43: #{point_pillar_loss.1} parent=35 // loop_exit
                _
            $region36: #{point_pillar_loss.1} parent=31 // pred_fallthru
              _
            // Predicated region
            $region44: #{point_pillar_loss.1} parent=31 // pred_check
              _
            $region45: #{point_pillar_loss.1} parent=31 // pred_check_branch
              %294 = sbr.rel target = $region47
            $region46: #{point_pillar_loss.1} parent=31 // pred_region
              _
            $region47: #{point_pillar_loss.1} parent=31 // pred_fallthru
              _
          $region32: #{point_pillar_loss.1} parent=27 // pred_fallthru
            _
          %295 = vnop
        $region28: #{point_pillar_loss.1} parent=15 // pred_fallthru
          _
        // Predicated region
        $region48: #{point_pillar_loss.1} parent=15 // pred_check
          %p296 = pneg %p128
        $region49: #{point_pillar_loss.1} parent=15 // pred_check_branch
          %298 = sbr.rel (%p296) target = $region51
        $region50: #{point_pillar_loss.1} parent=15 // pred_region
          %s299 = sand.u32 %s118, 1
          %s300 = sand.u32 %s118, 1
          %s301 = smul.addr %s300, 256
          %s302 = scalar_lea.vmem [#allocation6], %s301
          %s303 = smul.u32 16, %s18
          %s304 = smul.addr %s17, 64
          %s305 = sadd.s32 %s303, %s304
          %s306 = smul.addr %s305, 8
          %s307 = scalar_lea.vmem %s3, %s306
          // Predicated region
          $region52: #{point_pillar_loss.1} parent=50 // pred_check
            _
          $region53: #{point_pillar_loss.1} parent=50 // pred_check_branch
            %309 = sbr.rel (0) target = $region55
          $region54: #{point_pillar_loss.1} parent=50 // pred_region
            // Predicated region
            $region56: #{point_pillar_loss.1} parent=54 // pred_check
              _
            $region57: #{point_pillar_loss.1} parent=54 // pred_check_branch
              %311 = sbr.rel (0) target = $region59
            $region58: #{point_pillar_loss.1} parent=54 // pred_region
              loop: start=0, step=1, limit=1
              $region60: #{point_pillar_loss.1} parent=58 // loop_pre_header
                _
              $region61: #{point_pillar_loss.1} parent=58 // loop_header
                %s313 = sphi 0, %s317
                %p314 = scmp.ge.s32.totalorder %s313, 1
                %s318 = sphi %s307, %s307
                %s319 = sphi %s302, %s302
              $region62: #{point_pillar_loss.1} parent=58 // loop_header_branch
                %316 = sbr.rel (%p314) target = $region66
              $region63: #{point_pillar_loss.1} parent=58 // loop_body
                %v320 = vld [vmem:[%s318] sm:$0xff]
                %321 = vst [vmem:[%s319] sm:$0xff] %v320
                %v322 = vld [vmem:[%s318 + $0x8] sm:$0xff]
                %323 = vst [vmem:[%s319 + $0x8] sm:$0xff] %v322
                %v324 = vld [vmem:[%s318 + $0x10] sm:$0xff]
                %325 = vst [vmem:[%s319 + $0x10] sm:$0xff] %v324
                %v326 = vld [vmem:[%s318 + $0x18] sm:$0xff]
                %327 = vst [vmem:[%s319 + $0x18] sm:$0xff] %v326
                %v328 = vld [vmem:[%s318 + $0x20] sm:$0xff]
                %329 = vst [vmem:[%s319 + $0x20] sm:$0xff] %v328
                %v330 = vld [vmem:[%s318 + $0x28] sm:$0xff]
                %331 = vst [vmem:[%s319 + $0x28] sm:$0xff] %v330
                %v332 = vld [vmem:[%s318 + $0x30] sm:$0xff]
                %333 = vst [vmem:[%s319 + $0x30] sm:$0xff] %v332
                %v334 = vld [vmem:[%s318 + $0x38] sm:$0xff]
                %335 = vst [vmem:[%s319 + $0x38] sm:$0xff] %v334
                %v336 = vld [vmem:[%s318 + $0x40] sm:$0xff]
                %337 = vst [vmem:[%s319 + $0x40] sm:$0xff] %v336
                %v338 = vld [vmem:[%s318 + $0x48] sm:$0xff]
                %339 = vst [vmem:[%s319 + $0x48] sm:$0xff] %v338
                %v340 = vld [vmem:[%s318 + $0x50] sm:$0xff]
                %341 = vst [vmem:[%s319 + $0x50] sm:$0xff] %v340
                %v342 = vld [vmem:[%s318 + $0x58] sm:$0xff]
                %343 = vst [vmem:[%s319 + $0x58] sm:$0xff] %v342
                %v344 = vld [vmem:[%s318 + $0x60] sm:$0xff]
                %345 = vst [vmem:[%s319 + $0x60] sm:$0xff] %v344
                %v346 = vld [vmem:[%s318 + $0x68] sm:$0xff]
                %347 = vst [vmem:[%s319 + $0x68] sm:$0xff] %v346
                %v348 = vld [vmem:[%s318 + $0x70] sm:$0xff]
                %349 = vst [vmem:[%s319 + $0x70] sm:$0xff] %v348
                %v350 = vld [vmem:[%s318 + $0x78] sm:$0xff]
                %351 = vst [vmem:[%s319 + $0x78] sm:$0xff] %v350
                %v352 = vld [vmem:[%s318 + $0x100] sm:$0xff]
                %353 = vst [vmem:[%s319 + $0x80] sm:$0xff] %v352
                %v354 = vld [vmem:[%s318 + $0x108] sm:$0xff]
                %355 = vst [vmem:[%s319 + $0x88] sm:$0xff] %v354
                %v356 = vld [vmem:[%s318 + $0x110] sm:$0xff]
                %357 = vst [vmem:[%s319 + $0x90] sm:$0xff] %v356
                %v358 = vld [vmem:[%s318 + $0x118] sm:$0xff]
                %359 = vst [vmem:[%s319 + $0x98] sm:$0xff] %v358
                %v360 = vld [vmem:[%s318 + $0x120] sm:$0xff]
                %361 = vst [vmem:[%s319 + $0xa0] sm:$0xff] %v360
                %v362 = vld [vmem:[%s318 + $0x128] sm:$0xff]
                %363 = vst [vmem:[%s319 + $0xa8] sm:$0xff] %v362
                %v364 = vld [vmem:[%s318 + $0x130] sm:$0xff]
                %365 = vst [vmem:[%s319 + $0xb0] sm:$0xff] %v364
                %v366 = vld [vmem:[%s318 + $0x138] sm:$0xff]
                %367 = vst [vmem:[%s319 + $0xb8] sm:$0xff] %v366
                %v368 = vld [vmem:[%s318 + $0x140] sm:$0xff]
                %369 = vst [vmem:[%s319 + $0xc0] sm:$0xff] %v368
                %v370 = vld [vmem:[%s318 + $0x148] sm:$0xff]
                %371 = vst [vmem:[%s319 + $0xc8] sm:$0xff] %v370
                %v372 = vld [vmem:[%s318 + $0x150] sm:$0xff]
                %373 = vst [vmem:[%s319 + $0xd0] sm:$0xff] %v372
                %v374 = vld [vmem:[%s318 + $0x158] sm:$0xff]
                %375 = vst [vmem:[%s319 + $0xd8] sm:$0xff] %v374
                %v376 = vld [vmem:[%s318 + $0x160] sm:$0xff]
                %377 = vst [vmem:[%s319 + $0xe0] sm:$0xff] %v376
                %v378 = vld [vmem:[%s318 + $0x168] sm:$0xff]
                %379 = vst [vmem:[%s319 + $0xe8] sm:$0xff] %v378
                %v380 = vld [vmem:[%s318 + $0x170] sm:$0xff]
                %381 = vst [vmem:[%s319 + $0xf0] sm:$0xff] %v380
                %v382 = vld [vmem:[%s318 + $0x178] sm:$0xff]
                %383 = vst [vmem:[%s319 + $0xf8] sm:$0xff] %v382
              $region64: #{point_pillar_loss.1} parent=58 // loop_footer
                %s317 = sadd.s32 1, %s313
              $region65: #{point_pillar_loss.1} parent=58 // loop_footer_branch
                %312 = sbr.rel target = $region61
              $region66: #{point_pillar_loss.1} parent=58 // loop_exit
                _
            $region59: #{point_pillar_loss.1} parent=54 // pred_fallthru
              _
            // Predicated region
            $region67: #{point_pillar_loss.1} parent=54 // pred_check
              _
            $region68: #{point_pillar_loss.1} parent=54 // pred_check_branch
              %385 = sbr.rel target = $region70
            $region69: #{point_pillar_loss.1} parent=54 // pred_region
              _
            $region70: #{point_pillar_loss.1} parent=54 // pred_fallthru
              _
          $region55: #{point_pillar_loss.1} parent=50 // pred_fallthru
            _
          %386 = vnop
        $region51: #{point_pillar_loss.1} parent=15 // pred_fallthru
          _
      $region16: #{point_pillar_loss.1} parent=5 // pred_fallthru
        _
      %p387 = scmp.le.s32.totalorder 1, %s10
      %p388 = scmp.lt.s32.totalorder %s10, 5
      %p389 = pnand %p387, %p388
      %p390 = pneg %p389
      // Predicated region
      $region71: #{point_pillar_loss.1} parent=5 // pred_check
        _
      $region72: #{point_pillar_loss.1} parent=5 // pred_check_branch
        %392 = sbr.rel (%p389) target = $region74
      $region73: #{point_pillar_loss.1} parent=5 // pred_region
        %s393 = ssub.s32 %s10, 1
        %s394 = sand.u32 %s93, 1
        %s395 = sand.u32 %s93, 1
        %s396 = smul.addr %s395, 256
        %s397 = scalar_lea.vmem [#allocation5], %s396
        // Predicated region
        $region75: #{point_pillar_loss.1} parent=73 // pred_check
          %p398 = pneg %p106
        $region76: #{point_pillar_loss.1} parent=73 // pred_check_branch
          %400 = sbr.rel (%p398) target = $region78
        $region77: #{point_pillar_loss.1} parent=73 // pred_region
          _
        $region78: #{point_pillar_loss.1} parent=73 // pred_fallthru
          _
        %s401 = sand.u32 %s121, 1
        %s402 = sand.u32 %s121, 1
        %s403 = smul.addr %s402, 256
        %s404 = scalar_lea.vmem [#allocation6], %s403
        // Predicated region
        $region79: #{point_pillar_loss.1} parent=73 // pred_check
          %p405 = pneg %p134
        $region80: #{point_pillar_loss.1} parent=73 // pred_check_branch
          %407 = sbr.rel (%p405) target = $region82
        $region81: #{point_pillar_loss.1} parent=73 // pred_region
          _
        $region82: #{point_pillar_loss.1} parent=73 // pred_fallthru
          _
        %s408 = smul.u32 16, %s20
        %p409 = scmp.lt.s32.totalorder %s19, 1
        %s410 = scalar_select %p409, %s19, 1
        %p411 = scmp.lt.s32.totalorder %s408, 31
        %s412 = scalar_select %p411, %s408, 31
        %s413 = smul.addr %s410, 32
        %s414 = sadd.s32 %s412, %s413
        %s415 = smul.addr %s414, 2
        %s416 = scalar_lea.vmem %s0, %s415
        %p417 = pneg %p50
        %p418 = pneg %p47
        %s419 = smul.u32 16, %s20
        %p420 = scmp.lt.s32.totalorder %s19, 1
        %s421 = scalar_select %p420, %s19, 1
        %p422 = scmp.lt.s32.totalorder %s419, 31
        %s423 = scalar_select %p422, %s419, 31
        %s424 = smul.addr %s421, 32
        %s425 = sadd.s32 %s423, %s424
        %s426 = smul.addr %s425, 2
        %s427 = scalar_lea.vmem %s1, %s426
        %p428 = pneg %p78
        %p429 = pneg %p75
        %s430 = sand.u32 %s93, 1
        %s431 = sand.u32 %s93, 1
        %s432 = smul.addr %s431, 256
        %s433 = scalar_lea.vmem [#allocation5], %s432
        %p434 = pneg %p106
        %p435 = pneg %p103
        %s436 = sand.u32 %s121, 1
        %s437 = sand.u32 %s121, 1
        %s438 = smul.addr %s437, 256
        %s439 = scalar_lea.vmem [#allocation6], %s438
        %p440 = pneg %p134
        %p441 = pneg %p131
        %p442 = pneg %p160
        %p443 = pneg %p157
        %p444 = scmp.lt.s32.totalorder %s19, 1
        %s445 = scalar_select %p444, %s19, 1
        %s446 = scalar_lea.vmem %s4, %s445
        %s447 = smul.u32 16, %s20
        %p448 = scmp.lt.s32.totalorder %s19, 1
        %s449 = scalar_select %p448, %s19, 1
        %p450 = scmp.lt.s32.totalorder %s447, 31
        %s451 = scalar_select %p450, %s447, 31
        %s452 = smul.addr %s449, 32
        %s453 = sadd.s32 %s451, %s452
        %s454 = smul.addr %s453, 2
        %s455 = scalar_lea.vmem %s0, %s454
        %s456 = smul.u32 16, %s20
        %s457 = smul.u32 16, %s20
        %p458 = scmp.lt.s32.totalorder %s19, 1
        %s459 = scalar_select %p458, %s19, 1
        %p460 = scmp.lt.s32.totalorder %s457, 31
        %s461 = scalar_select %p460, %s457, 31
        %s462 = smul.addr %s459, 32
        %s463 = sadd.s32 %s461, %s462
        %s464 = smul.addr %s463, 2
        %s465 = scalar_lea.vmem %s1, %s464
        %s466 = smul.u32 16, %s20
        %s467 = smul.u32 16, %s20
        %s468 = smul.u32 16, %s20
        %p469 = scmp.lt.s32.totalorder %s19, 1
        %s470 = scalar_select %p469, %s19, 1
        %s471 = scalar_lea.vmem %s4, %s470
        %p472 = scmp.eq.s32.totalorder %s20, 0
        // Predicated region
        $region83: #{point_pillar_loss.1} parent=73 // pred_check
          %p473 = pneg %p472
        $region84: #{point_pillar_loss.1} parent=73 // pred_check_branch
          %475 = sbr.rel (%p473) target = $region86
        $region85: #{point_pillar_loss.1} parent=73 // pred_region
          %476 = vst [vmem:[#allocation2] sm:$0xff] 0.0
          %477 = vst [vmem:[#allocation2 + $0x8] sm:$0xff] 0.0
          %478 = vst [vmem:[#allocation2 + $0x10] sm:$0xff] 0.0
          %479 = vst [vmem:[#allocation2 + $0x18] sm:$0xff] 0.0
          %480 = vst [vmem:[#allocation3] sm:$0xff] 0.0
          %481 = vst [vmem:[#allocation3 + $0x8] sm:$0xff] 0.0
          %482 = vst [vmem:[#allocation3 + $0x10] sm:$0xff] 0.0
          %483 = vst [vmem:[#allocation3 + $0x18] sm:$0xff] 0.0
          %484 = vst [vmem:[#allocation4] sm:$0xff] 0.0
          %485 = vst [vmem:[#allocation4 + $0x8] sm:$0xff] 0.0
          %486 = vst [vmem:[#allocation4 + $0x10] sm:$0xff] 0.0
          %487 = vst [vmem:[#allocation4 + $0x18] sm:$0xff] 0.0
          %488 = vst [vmem:[%s471] sm:$0x1] 0.0
        $region86: #{point_pillar_loss.1} parent=73 // pred_fallthru
          _
        %v489 = vld [vmem:[%s465] sm:$0xff]
        %v490 = vld [vmem:[%s465 + $0x8] sm:$0xff]
        %v491 = vld [vmem:[%s465 + $0x10] sm:$0xff]
        %v492 = vld [vmem:[%s465 + $0x18] sm:$0xff]
        %vm493 = vcmp.gt.f32.partialorder %v489, 0.0
        %vm494 = vcmp.gt.f32.partialorder %v490, 0.0
        %vm495 = vcmp.gt.f32.partialorder %v491, 0.0
        %vm496 = vcmp.gt.f32.partialorder %v492, 0.0
        %v497 = vsel %vm493, 1, 0
        %v498 = vsel %vm494, 1, 0
        %v499 = vsel %vm495, 1, 0
        %v500 = vsel %vm496, 1, 0
        %v501 = vcvt.s32.f32 %v497
        %v502 = vcvt.s32.f32 %v498
        %v503 = vcvt.s32.f32 %v499
        %v504 = vcvt.s32.f32 %v500
        %v505 = vld [vmem:[%s455] sm:$0xff]
        %v506 = vld [vmem:[%s455 + $0x8] sm:$0xff]
        %v507 = vld [vmem:[%s455 + $0x10] sm:$0xff]
        %v508 = vld [vmem:[%s455 + $0x18] sm:$0xff]
        %v509 = vand.u32 2147483647, %v505
        %v510 = vand.u32 2147483647, %v506
        %v511 = vand.u32 2147483647, %v507
        %v512 = vand.u32 2147483647, %v508
        %v513 = vsub.f32 0.0, %v509
        %v514 = vsub.f32 0.0, %v510
        %v515 = vsub.f32 0.0, %v511
        %v516 = vsub.f32 0.0, %v512
        %v517 = vmul.f32 %v513, 1.442695
        %v518 = vpow.pop %v517
        %v519 = vmul.f32 %v514, 1.442695
        %v520 = vpow.pop %v519
        %v521 = vmul.f32 %v515, 1.442695
        %v522 = vpow.pop %v521
        %v523 = vmul.f32 %v516, 1.442695
        %v524 = vpow.pop %v523
        %vm525 = vcmp.ge.f32.partialorder %v505, 0.0
        %vm526 = vcmp.ge.f32.partialorder %v506, 0.0
        %vm527 = vcmp.ge.f32.partialorder %v507, 0.0
        %vm528 = vcmp.ge.f32.partialorder %v508, 0.0
        %v529 = vsel %vm525, 1.0, %v518
        %v530 = vsel %vm526, 1.0, %v520
        %v531 = vsel %vm527, 1.0, %v522
        %v532 = vsel %vm528, 1.0, %v524
        %v533 = vadd.f32 %v518, 1.0
        %v534 = vadd.f32 %v520, 1.0
        %v535 = vadd.f32 %v522, 1.0
        %v536 = vadd.f32 %v524, 1.0
        %v537 = vrcp.pop %v533
        %v538 = vmul.f32 %v529, %v537
        %v539 = vrcp.pop %v534
        %v540 = vmul.f32 %v530, %v539
        %v541 = vrcp.pop %v535
        %v542 = vmul.f32 %v531, %v541
        %v543 = vrcp.pop %v536
        %v544 = vmul.f32 %v532, %v543
        %v545 = vmul.f32 %v501, 0.25
        %v546 = vmul.f32 %v502, 0.25
        %v547 = vmul.f32 %v503, 0.25
        %v548 = vmul.f32 %v504, 0.25
        %v549 = vsub.f32 1.0, %v501
        %v550 = vsub.f32 1.0, %v502
        %v551 = vsub.f32 1.0, %v503
        %v552 = vsub.f32 1.0, %v504
        %v553 = vmul.f32 %v549, 0.75
        %v554 = vmul.f32 %v550, 0.75
        %v555 = vmul.f32 %v551, 0.75
        %v556 = vmul.f32 %v552, 0.75
        %v557 = vadd.f32 %v545, %v553
        %v558 = vadd.f32 %v546, %v554
        %v559 = vadd.f32 %v547, %v555
        %v560 = vadd.f32 %v548, %v556
        %v561 = vadd.f32 %v501, %v538
        %v562 = vadd.f32 %v502, %v540
        %v563 = vadd.f32 %v503, %v542
        %v564 = vadd.f32 %v504, %v544
        %v565 = vmul.f32 %v501, 2.0
        %v566 = vmul.f32 %v502, 2.0
        %v567 = vmul.f32 %v503, 2.0
        %v568 = vmul.f32 %v504, 2.0
        %v569 = vmul.f32 %v565, %v538
        %v570 = vmul.f32 %v566, %v540
        %v571 = vmul.f32 %v567, %v542
        %v572 = vmul.f32 %v568, %v544
        %v573 = vsub.f32 %v561, %v569
        %v574 = vsub.f32 %v562, %v570
        %v575 = vsub.f32 %v563, %v571
        %v576 = vsub.f32 %v564, %v572
        %v577 = vmax.f32 %v505, 0.0
        %v578 = vmax.f32 %v506, 0.0
        %v579 = vmax.f32 %v507, 0.0
        %v580 = vmax.f32 %v508, 0.0
        %v581 = vmul.f32 %v505, %v501
        %v582 = vmul.f32 %v506, %v502
        %v583 = vmul.f32 %v507, %v503
        %v584 = vmul.f32 %v508, %v504
        %v585 = vsub.f32 %v577, %v581
        %v586 = vsub.f32 %v578, %v582
        %v587 = vsub.f32 %v579, %v583
        %v588 = vsub.f32 %v580, %v584
        %v589 = vadd.f32 %v518, 1.0
        %v590 = vlog2.pop %v589
        %v591 = vmul.f32 %v590, 0.6931472
        %v592 = vmul.f32 -0.5, %v518
        %v593 = vadd.f32 %v592, 1.0
        %v594 = vmul.f32 %v593, %v518
        %v595 = vand.u32 2147483647, %v518
        %vm596 = vcmp.lt.f32.partialorder %v595, 0.0004427343
        %v597 = vsel %vm596, %v594, %v591
        %v598 = vadd.f32 %v520, 1.0
        %v599 = vlog2.pop %v598
        %v600 = vmul.f32 %v599, 0.6931472
        %v601 = vmul.f32 -0.5, %v520
        %v602 = vadd.f32 %v601, 1.0
        %v603 = vmul.f32 %v602, %v520
        %v604 = vand.u32 2147483647, %v520
        %vm605 = vcmp.lt.f32.partialorder %v604, 0.0004427343
        %v606 = vsel %vm605, %v603, %v600
        %v607 = vadd.f32 %v522, 1.0
        %v608 = vlog2.pop %v607
        %v609 = vmul.f32 %v608, 0.6931472
        %v610 = vmul.f32 -0.5, %v522
        %v611 = vadd.f32 %v610, 1.0
        %v612 = vmul.f32 %v611, %v522
        %v613 = vand.u32 2147483647, %v522
        %vm614 = vcmp.lt.f32.partialorder %v613, 0.0004427343
        %v615 = vsel %vm614, %v612, %v609
        %v616 = vadd.f32 %v524, 1.0
        %v617 = vlog2.pop %v616
        %v618 = vmul.f32 %v617, 0.6931472
        %v619 = vmul.f32 -0.5, %v524
        %v620 = vadd.f32 %v619, 1.0
        %v621 = vmul.f32 %v620, %v524
        %v622 = vand.u32 2147483647, %v524
        %vm623 = vcmp.lt.f32.partialorder %v622, 0.0004427343
        %v624 = vsel %vm623, %v621, %v618
        %v625 = vadd.f32 %v585, %v597
        %v626 = vadd.f32 %v586, %v606
        %v627 = vadd.f32 %v587, %v615
        %v628 = vadd.f32 %v588, %v624
        %v629 = vld [vmem:[#allocation2] sm:$0xff]
        %v630 = vld [vmem:[#allocation2 + $0x8] sm:$0xff]
        %v631 = vld [vmem:[#allocation2 + $0x10] sm:$0xff]
        %v632 = vld [vmem:[#allocation2 + $0x18] sm:$0xff]
        %v633 = vmul.f32 %v557, %v573
        %v634 = vmul.f32 %v558, %v574
        %v635 = vmul.f32 %v559, %v575
        %v636 = vmul.f32 %v560, %v576
        %v637 = vmul.f32 %v633, %v573
        %v638 = vmul.f32 %v634, %v574
        %v639 = vmul.f32 %v635, %v575
        %v640 = vmul.f32 %v636, %v576
        %v641 = vmul.f32 %v637, %v625
        %v642 = vmul.f32 %v638, %v626
        %v643 = vmul.f32 %v639, %v627
        %v644 = vmul.f32 %v640, %v628
        %v645 = vadd.f32 %v629, %v641
        %v646 = vadd.f32 %v630, %v642
        %v647 = vadd.f32 %v631, %v643
        %v648 = vadd.f32 %v632, %v644
        %649 = vst [vmem:[#allocation2] sm:$0xff] %v645
        %650 = vst [vmem:[#allocation2 + $0x8] sm:$0xff] %v646
        %651 = vst [vmem:[#allocation2 + $0x10] sm:$0xff] %v647
        %652 = vst [vmem:[#allocation2 + $0x18] sm:$0xff] %v648
        %v653 = vld [vmem:[#allocation4] sm:$0xff]
        %v654 = vld [vmem:[#allocation4 + $0x8] sm:$0xff]
        %v655 = vld [vmem:[#allocation4 + $0x10] sm:$0xff]
        %v656 = vld [vmem:[#allocation4 + $0x18] sm:$0xff]
        %v657 = vadd.f32 %v653, %v501
        %v658 = vadd.f32 %v654, %v502
        %v659 = vadd.f32 %v655, %v503
        %v660 = vadd.f32 %v656, %v504
        %661 = vst [vmem:[#allocation4] sm:$0xff] %v657
        %662 = vst [vmem:[#allocation4 + $0x8] sm:$0xff] %v658
        %663 = vst [vmem:[#allocation4 + $0x10] sm:$0xff] %v659
        %664 = vst [vmem:[#allocation4 + $0x18] sm:$0xff] %v660
        %v665 = vld [vmem:[%s397] sm:$0x7f]
        %v666 = vld [vmem:[%s397 + $0x8] sm:$0x7f]
        %v667 = vld [vmem:[%s397 + $0x10] sm:$0x7f]
        %v668 = vld [vmem:[%s397 + $0x18] sm:$0x7f]
        %v669 = vld [vmem:[%s397 + $0x20] sm:$0x7f]
        %v670 = vld [vmem:[%s397 + $0x28] sm:$0x7f]
        %v671 = vld [vmem:[%s397 + $0x30] sm:$0x7f]
        %v672 = vld [vmem:[%s397 + $0x38] sm:$0x7f]
        %v673 = vld [vmem:[%s397 + $0x40] sm:$0x7f]
        %v674 = vld [vmem:[%s397 + $0x48] sm:$0x7f]
        %v675 = vld [vmem:[%s397 + $0x50] sm:$0x7f]
        %v676 = vld [vmem:[%s397 + $0x58] sm:$0x7f]
        %v677 = vld [vmem:[%s397 + $0x60] sm:$0x7f]
        %v678 = vld [vmem:[%s397 + $0x68] sm:$0x7f]
        %v679 = vld [vmem:[%s397 + $0x70] sm:$0x7f]
        %v680 = vld [vmem:[%s397 + $0x78] sm:$0x7f]
        %v681 = vld [vmem:[%s397 + $0x80] sm:$0x7f]
        %v682 = vld [vmem:[%s397 + $0x88] sm:$0x7f]
        %v683 = vld [vmem:[%s397 + $0x90] sm:$0x7f]
        %v684 = vld [vmem:[%s397 + $0x98] sm:$0x7f]
        %v685 = vld [vmem:[%s397 + $0xa0] sm:$0x7f]
        %v686 = vld [vmem:[%s397 + $0xa8] sm:$0x7f]
        %v687 = vld [vmem:[%s397 + $0xb0] sm:$0x7f]
        %v688 = vld [vmem:[%s397 + $0xb8] sm:$0x7f]
        %v689 = vld [vmem:[%s397 + $0xc0] sm:$0x7f]
        %v690 = vld [vmem:[%s397 + $0xc8] sm:$0x7f]
        %v691 = vld [vmem:[%s397 + $0xd0] sm:$0x7f]
        %v692 = vld [vmem:[%s397 + $0xd8] sm:$0x7f]
        %v693 = vld [vmem:[%s397 + $0xe0] sm:$0x7f]
        %v694 = vld [vmem:[%s397 + $0xe8] sm:$0x7f]
        %v695 = vld [vmem:[%s397 + $0xf0] sm:$0x7f]
        %v696 = vld [vmem:[%s397 + $0xf8] sm:$0x7f]
        %v697 = vld [vmem:[%s404] sm:$0x7f]
        %v698 = vld [vmem:[%s404 + $0x8] sm:$0x7f]
        %v699 = vld [vmem:[%s404 + $0x10] sm:$0x7f]
        %v700 = vld [vmem:[%s404 + $0x18] sm:$0x7f]
        %v701 = vld [vmem:[%s404 + $0x20] sm:$0x7f]
        %v702 = vld [vmem:[%s404 + $0x28] sm:$0x7f]
        %v703 = vld [vmem:[%s404 + $0x30] sm:$0x7f]
        %v704 = vld [vmem:[%s404 + $0x38] sm:$0x7f]
        %v705 = vld [vmem:[%s404 + $0x40] sm:$0x7f]
        %v706 = vld [vmem:[%s404 + $0x48] sm:$0x7f]
        %v707 = vld [vmem:[%s404 + $0x50] sm:$0x7f]
        %v708 = vld [vmem:[%s404 + $0x58] sm:$0x7f]
        %v709 = vld [vmem:[%s404 + $0x60] sm:$0x7f]
        %v710 = vld [vmem:[%s404 + $0x68] sm:$0x7f]
        %v711 = vld [vmem:[%s404 + $0x70] sm:$0x7f]
        %v712 = vld [vmem:[%s404 + $0x78] sm:$0x7f]
        %v713 = vld [vmem:[%s404 + $0x80] sm:$0x7f]
        %v714 = vld [vmem:[%s404 + $0x88] sm:$0x7f]
        %v715 = vld [vmem:[%s404 + $0x90] sm:$0x7f]
        %v716 = vld [vmem:[%s404 + $0x98] sm:$0x7f]
        %v717 = vld [vmem:[%s404 + $0xa0] sm:$0x7f]
        %v718 = vld [vmem:[%s404 + $0xa8] sm:$0x7f]
        %v719 = vld [vmem:[%s404 + $0xb0] sm:$0x7f]
        %v720 = vld [vmem:[%s404 + $0xb8] sm:$0x7f]
        %v721 = vld [vmem:[%s404 + $0xc0] sm:$0x7f]
        %v722 = vld [vmem:[%s404 + $0xc8] sm:$0x7f]
        %v723 = vld [vmem:[%s404 + $0xd0] sm:$0x7f]
        %v724 = vld [vmem:[%s404 + $0xd8] sm:$0x7f]
        %v725 = vld [vmem:[%s404 + $0xe0] sm:$0x7f]
        %v726 = vld [vmem:[%s404 + $0xe8] sm:$0x7f]
        %v727 = vld [vmem:[%s404 + $0xf0] sm:$0x7f]
        %v728 = vld [vmem:[%s404 + $0xf8] sm:$0x7f]
        %vm729 = vcmp.ne.f32.partialorder %v697, %v697
        %vm730 = vcmp.ne.f32.partialorder %v698, %v698
        %vm731 = vcmp.ne.f32.partialorder %v699, %v699
        %vm732 = vcmp.ne.f32.partialorder %v700, %v700
        %vm733 = vcmp.ne.f32.partialorder %v701, %v701
        %vm734 = vcmp.ne.f32.partialorder %v702, %v702
        %vm735 = vcmp.ne.f32.partialorder %v703, %v703
        %vm736 = vcmp.ne.f32.partialorder %v704, %v704
        %vm737 = vcmp.ne.f32.partialorder %v705, %v705
        %vm738 = vcmp.ne.f32.partialorder %v706, %v706
        %vm739 = vcmp.ne.f32.partialorder %v707, %v707
        %vm740 = vcmp.ne.f32.partialorder %v708, %v708
        %vm741 = vcmp.ne.f32.partialorder %v709, %v709
        %vm742 = vcmp.ne.f32.partialorder %v710, %v710
        %vm743 = vcmp.ne.f32.partialorder %v711, %v711
        %vm744 = vcmp.ne.f32.partialorder %v712, %v712
        %vm745 = vcmp.ne.f32.partialorder %v713, %v713
        %vm746 = vcmp.ne.f32.partialorder %v714, %v714
        %vm747 = vcmp.ne.f32.partialorder %v715, %v715
        %vm748 = vcmp.ne.f32.partialorder %v716, %v716
        %vm749 = vcmp.ne.f32.partialorder %v717, %v717
        %vm750 = vcmp.ne.f32.partialorder %v718, %v718
        %vm751 = vcmp.ne.f32.partialorder %v719, %v719
        %vm752 = vcmp.ne.f32.partialorder %v720, %v720
        %vm753 = vcmp.ne.f32.partialorder %v721, %v721
        %vm754 = vcmp.ne.f32.partialorder %v722, %v722
        %vm755 = vcmp.ne.f32.partialorder %v723, %v723
        %vm756 = vcmp.ne.f32.partialorder %v724, %v724
        %vm757 = vcmp.ne.f32.partialorder %v725, %v725
        %vm758 = vcmp.ne.f32.partialorder %v726, %v726
        %vm759 = vcmp.ne.f32.partialorder %v727, %v727
        %vm760 = vcmp.ne.f32.partialorder %v728, %v728
        %v761 = vsel %vm729, %v665, %v697
        %v762 = vsel %vm730, %v666, %v698
        %v763 = vsel %vm731, %v667, %v699
        %v764 = vsel %vm732, %v668, %v700
        %v765 = vsel %vm733, %v669, %v701
        %v766 = vsel %vm734, %v670, %v702
        %v767 = vsel %vm735, %v671, %v703
        %v768 = vsel %vm736, %v672, %v704
        %v769 = vsel %vm737, %v673, %v705
        %v770 = vsel %vm738, %v674, %v706
        %v771 = vsel %vm739, %v675, %v707
        %v772 = vsel %vm740, %v676, %v708
        %v773 = vsel %vm741, %v677, %v709
        %v774 = vsel %vm742, %v678, %v710
        %v775 = vsel %vm743, %v679, %v711
        %v776 = vsel %vm744, %v680, %v712
        %v777 = vsel %vm745, %v681, %v713
        %v778 = vsel %vm746, %v682, %v714
        %v779 = vsel %vm747, %v683, %v715
        %v780 = vsel %vm748, %v684, %v716
        %v781 = vsel %vm749, %v685, %v717
        %v782 = vsel %vm750, %v686, %v718
        %v783 = vsel %vm751, %v687, %v719
        %v784 = vsel %vm752, %v688, %v720
        %v785 = vsel %vm753, %v689, %v721
        %v786 = vsel %vm754, %v690, %v722
        %v787 = vsel %vm755, %v691, %v723
        %v788 = vsel %vm756, %v692, %v724
        %v789 = vsel %vm757, %v693, %v725
        %v790 = vsel %vm758, %v694, %v726
        %v791 = vsel %vm759, %v695, %v727
        %v792 = vsel %vm760, %v696, %v728
        %v793 = vlaneseq
        %v794 = vshrl.u32 %v793, 7
        %vm795 = vcmp.eq.s32.totalorder %v794, 6
        %v796 = vsub.f32 %v665, %v761
        %v797 = vsub.f32 %v666, %v762
        %v798 = vsub.f32 %v667, %v763
        %v799 = vsub.f32 %v668, %v764
        %v800 = vsub.f32 %v669, %v765
        %v801 = vsub.f32 %v670, %v766
        %v802 = vsub.f32 %v671, %v767
        %v803 = vsub.f32 %v672, %v768
        %v804 = vsub.f32 %v673, %v769
        %v805 = vsub.f32 %v674, %v770
        %v806 = vsub.f32 %v675, %v771
        %v807 = vsub.f32 %v676, %v772
        %v808 = vsub.f32 %v677, %v773
        %v809 = vsub.f32 %v678, %v774
        %v810 = vsub.f32 %v679, %v775
        %v811 = vsub.f32 %v680, %v776
        %v812 = vsub.f32 %v681, %v777
        %v813 = vsub.f32 %v682, %v778
        %v814 = vsub.f32 %v683, %v779
        %v815 = vsub.f32 %v684, %v780
        %v816 = vsub.f32 %v685, %v781
        %v817 = vsub.f32 %v686, %v782
        %v818 = vsub.f32 %v687, %v783
        %v819 = vsub.f32 %v688, %v784
        %v820 = vsub.f32 %v689, %v785
        %v821 = vsub.f32 %v690, %v786
        %v822 = vsub.f32 %v691, %v787
        %v823 = vsub.f32 %v692, %v788
        %v824 = vsub.f32 %v693, %v789
        %v825 = vsub.f32 %v694, %v790
        %v826 = vsub.f32 %v695, %v791
        %v827 = vsub.f32 %v696, %v792
        %v828 = vsel %vm795, 0.0, %v796
        %v829 = vsel %vm795, 0.0, %v797
        %v830 = vsel %vm795, 0.0, %v798
        %v831 = vsel %vm795, 0.0, %v799
        %v832 = vsel %vm795, 0.0, %v800
        %v833 = vsel %vm795, 0.0, %v801
        %v834 = vsel %vm795, 0.0, %v802
        %v835 = vsel %vm795, 0.0, %v803
        %v836 = vsel %vm795, 0.0, %v804
        %v837 = vsel %vm795, 0.0, %v805
        %v838 = vsel %vm795, 0.0, %v806
        %v839 = vsel %vm795, 0.0, %v807
        %v840 = vsel %vm795, 0.0, %v808
        %v841 = vsel %vm795, 0.0, %v809
        %v842 = vsel %vm795, 0.0, %v810
        %v843 = vsel %vm795, 0.0, %v811
        %v844 = vsel %vm795, 0.0, %v812
        %v845 = vsel %vm795, 0.0, %v813
        %v846 = vsel %vm795, 0.0, %v814
        %v847 = vsel %vm795, 0.0, %v815
        %v848 = vsel %vm795, 0.0, %v816
        %v849 = vsel %vm795, 0.0, %v817
        %v850 = vsel %vm795, 0.0, %v818
        %v851 = vsel %vm795, 0.0, %v819
        %v852 = vsel %vm795, 0.0, %v820
        %v853 = vsel %vm795, 0.0, %v821
        %v854 = vsel %vm795, 0.0, %v822
        %v855 = vsel %vm795, 0.0, %v823
        %v856 = vsel %vm795, 0.0, %v824
        %v857 = vsel %vm795, 0.0, %v825
        %v858 = vsel %vm795, 0.0, %v826
        %v859 = vsel %vm795, 0.0, %v827
        %v860 = vand.u32 2147483647, %v828
        %v861 = vand.u32 2147483647, %v829
        %v862 = vand.u32 2147483647, %v830
        %v863 = vand.u32 2147483647, %v831
        %v864 = vand.u32 2147483647, %v832
        %v865 = vand.u32 2147483647, %v833
        %v866 = vand.u32 2147483647, %v834
        %v867 = vand.u32 2147483647, %v835
        %v868 = vand.u32 2147483647, %v836
        %v869 = vand.u32 2147483647, %v837
        %v870 = vand.u32 2147483647, %v838
        %v871 = vand.u32 2147483647, %v839
        %v872 = vand.u32 2147483647, %v840
        %v873 = vand.u32 2147483647, %v841
        %v874 = vand.u32 2147483647, %v842
        %v875 = vand.u32 2147483647, %v843
        %v876 = vand.u32 2147483647, %v844
        %v877 = vand.u32 2147483647, %v845
        %v878 = vand.u32 2147483647, %v846
        %v879 = vand.u32 2147483647, %v847
        %v880 = vand.u32 2147483647, %v848
        %v881 = vand.u32 2147483647, %v849
        %v882 = vand.u32 2147483647, %v850
        %v883 = vand.u32 2147483647, %v851
        %v884 = vand.u32 2147483647, %v852
        %v885 = vand.u32 2147483647, %v853
        %v886 = vand.u32 2147483647, %v854
        %v887 = vand.u32 2147483647, %v855
        %v888 = vand.u32 2147483647, %v856
        %v889 = vand.u32 2147483647, %v857
        %v890 = vand.u32 2147483647, %v858
        %v891 = vand.u32 2147483647, %v859
        %vm892 = vcmp.lt.f32.partialorder %v860, 0.11111111
        %vm893 = vcmp.lt.f32.partialorder %v861, 0.11111111
        %vm894 = vcmp.lt.f32.partialorder %v862, 0.11111111
        %vm895 = vcmp.lt.f32.partialorder %v863, 0.11111111
        %vm896 = vcmp.lt.f32.partialorder %v864, 0.11111111
        %vm897 = vcmp.lt.f32.partialorder %v865, 0.11111111
        %vm898 = vcmp.lt.f32.partialorder %v866, 0.11111111
        %vm899 = vcmp.lt.f32.partialorder %v867, 0.11111111
        %vm900 = vcmp.lt.f32.partialorder %v868, 0.11111111
        %vm901 = vcmp.lt.f32.partialorder %v869, 0.11111111
        %vm902 = vcmp.lt.f32.partialorder %v870, 0.11111111
        %vm903 = vcmp.lt.f32.partialorder %v871, 0.11111111
        %vm904 = vcmp.lt.f32.partialorder %v872, 0.11111111
        %vm905 = vcmp.lt.f32.partialorder %v873, 0.11111111
        %vm906 = vcmp.lt.f32.partialorder %v874, 0.11111111
        %vm907 = vcmp.lt.f32.partialorder %v875, 0.11111111
        %vm908 = vcmp.lt.f32.partialorder %v876, 0.11111111
        %vm909 = vcmp.lt.f32.partialorder %v877, 0.11111111
        %vm910 = vcmp.lt.f32.partialorder %v878, 0.11111111
        %vm911 = vcmp.lt.f32.partialorder %v879, 0.11111111
        %vm912 = vcmp.lt.f32.partialorder %v880, 0.11111111
        %vm913 = vcmp.lt.f32.partialorder %v881, 0.11111111
        %vm914 = vcmp.lt.f32.partialorder %v882, 0.11111111
        %vm915 = vcmp.lt.f32.partialorder %v883, 0.11111111
        %vm916 = vcmp.lt.f32.partialorder %v884, 0.11111111
        %vm917 = vcmp.lt.f32.partialorder %v885, 0.11111111
        %vm918 = vcmp.lt.f32.partialorder %v886, 0.11111111
        %vm919 = vcmp.lt.f32.partialorder %v887, 0.11111111
        %vm920 = vcmp.lt.f32.partialorder %v888, 0.11111111
        %vm921 = vcmp.lt.f32.partialorder %v889, 0.11111111
        %vm922 = vcmp.lt.f32.partialorder %v890, 0.11111111
        %vm923 = vcmp.lt.f32.partialorder %v891, 0.11111111
        %v924 = vmul.f32 %v860, 4.5
        %v925 = vmul.f32 %v861, 4.5
        %v926 = vmul.f32 %v862, 4.5
        %v927 = vmul.f32 %v863, 4.5
        %v928 = vmul.f32 %v864, 4.5
        %v929 = vmul.f32 %v865, 4.5
        %v930 = vmul.f32 %v866, 4.5
        %v931 = vmul.f32 %v867, 4.5
        %v932 = vmul.f32 %v868, 4.5
        %v933 = vmul.f32 %v869, 4.5
        %v934 = vmul.f32 %v870, 4.5
        %v935 = vmul.f32 %v871, 4.5
        %v936 = vmul.f32 %v872, 4.5
        %v937 = vmul.f32 %v873, 4.5
        %v938 = vmul.f32 %v874, 4.5
        %v939 = vmul.f32 %v875, 4.5
        %v940 = vmul.f32 %v876, 4.5
        %v941 = vmul.f32 %v877, 4.5
        %v942 = vmul.f32 %v878, 4.5
        %v943 = vmul.f32 %v879, 4.5
        %v944 = vmul.f32 %v880, 4.5
        %v945 = vmul.f32 %v881, 4.5
        %v946 = vmul.f32 %v882, 4.5
        %v947 = vmul.f32 %v883, 4.5
        %v948 = vmul.f32 %v884, 4.5
        %v949 = vmul.f32 %v885, 4.5
        %v950 = vmul.f32 %v886, 4.5
        %v951 = vmul.f32 %v887, 4.5
        %v952 = vmul.f32 %v888, 4.5
        %v953 = vmul.f32 %v889, 4.5
        %v954 = vmul.f32 %v890, 4.5
        %v955 = vmul.f32 %v891, 4.5
        %v956 = vmul.f32 %v924, %v860
        %v957 = vmul.f32 %v925, %v861
        %v958 = vmul.f32 %v926, %v862
        %v959 = vmul.f32 %v927, %v863
        %v960 = vmul.f32 %v928, %v864
        %v961 = vmul.f32 %v929, %v865
        %v962 = vmul.f32 %v930, %v866
        %v963 = vmul.f32 %v931, %v867
        %v964 = vmul.f32 %v932, %v868
        %v965 = vmul.f32 %v933, %v869
        %v966 = vmul.f32 %v934, %v870
        %v967 = vmul.f32 %v935, %v871
        %v968 = vmul.f32 %v936, %v872
        %v969 = vmul.f32 %v937, %v873
        %v970 = vmul.f32 %v938, %v874
        %v971 = vmul.f32 %v939, %v875
        %v972 = vmul.f32 %v940, %v876
        %v973 = vmul.f32 %v941, %v877
        %v974 = vmul.f32 %v942, %v878
        %v975 = vmul.f32 %v943, %v879
        %v976 = vmul.f32 %v944, %v880
        %v977 = vmul.f32 %v945, %v881
        %v978 = vmul.f32 %v946, %v882
        %v979 = vmul.f32 %v947, %v883
        %v980 = vmul.f32 %v948, %v884
        %v981 = vmul.f32 %v949, %v885
        %v982 = vmul.f32 %v950, %v886
        %v983 = vmul.f32 %v951, %v887
        %v984 = vmul.f32 %v952, %v888
        %v985 = vmul.f32 %v953, %v889
        %v986 = vmul.f32 %v954, %v890
        %v987 = vmul.f32 %v955, %v891
        %v988 = vsub.f32 %v860, 0.055555556
        %v989 = vsub.f32 %v861, 0.055555556
        %v990 = vsub.f32 %v862, 0.055555556
        %v991 = vsub.f32 %v863, 0.055555556
        %v992 = vsub.f32 %v864, 0.055555556
        %v993 = vsub.f32 %v865, 0.055555556
        %v994 = vsub.f32 %v866, 0.055555556
        %v995 = vsub.f32 %v867, 0.055555556
        %v996 = vsub.f32 %v868, 0.055555556
        %v997 = vsub.f32 %v869, 0.055555556
        %v998 = vsub.f32 %v870, 0.055555556
        %v999 = vsub.f32 %v871, 0.055555556
        %v1000 = vsub.f32 %v872, 0.055555556
        %v1001 = vsub.f32 %v873, 0.055555556
        %v1002 = vsub.f32 %v874, 0.055555556
        %v1003 = vsub.f32 %v875, 0.055555556
        %v1004 = vsub.f32 %v876, 0.055555556
        %v1005 = vsub.f32 %v877, 0.055555556
        %v1006 = vsub.f32 %v878, 0.055555556
        %v1007 = vsub.f32 %v879, 0.055555556
        %v1008 = vsub.f32 %v880, 0.055555556
        %v1009 = vsub.f32 %v881, 0.055555556
        %v1010 = vsub.f32 %v882, 0.055555556
        %v1011 = vsub.f32 %v883, 0.055555556
        %v1012 = vsub.f32 %v884, 0.055555556
        %v1013 = vsub.f32 %v885, 0.055555556
        %v1014 = vsub.f32 %v886, 0.055555556
        %v1015 = vsub.f32 %v887, 0.055555556
        %v1016 = vsub.f32 %v888, 0.055555556
        %v1017 = vsub.f32 %v889, 0.055555556
        %v1018 = vsub.f32 %v890, 0.055555556
        %v1019 = vsub.f32 %v891, 0.055555556
        %v1020 = vsel %vm892, %v956, %v988
        %v1021 = vsel %vm893, %v957, %v989
        %v1022 = vsel %vm894, %v958, %v990
        %v1023 = vsel %vm895, %v959, %v991
        %v1024 = vsel %vm896, %v960, %v992
        %v1025 = vsel %vm897, %v961, %v993
        %v1026 = vsel %vm898, %v962, %v994
        %v1027 = vsel %vm899, %v963, %v995
        %v1028 = vsel %vm900, %v964, %v996
        %v1029 = vsel %vm901, %v965, %v997
        %v1030 = vsel %vm902, %v966, %v998
        %v1031 = vsel %vm903, %v967, %v999
        %v1032 = vsel %vm904, %v968, %v1000
        %v1033 = vsel %vm905, %v969, %v1001
        %v1034 = vsel %vm906, %v970, %v1002
        %v1035 = vsel %vm907, %v971, %v1003
        %v1036 = vsel %vm908, %v972, %v1004
        %v1037 = vsel %vm909, %v973, %v1005
        %v1038 = vsel %vm910, %v974, %v1006
        %v1039 = vsel %vm911, %v975, %v1007
        %v1040 = vsel %vm912, %v976, %v1008
        %v1041 = vsel %vm913, %v977, %v1009
        %v1042 = vsel %vm914, %v978, %v1010
        %v1043 = vsel %vm915, %v979, %v1011
        %v1044 = vsel %vm916, %v980, %v1012
        %v1045 = vsel %vm917, %v981, %v1013
        %v1046 = vsel %vm918, %v982, %v1014
        %v1047 = vsel %vm919, %v983, %v1015
        %v1048 = vsel %vm920, %v984, %v1016
        %v1049 = vsel %vm921, %v985, %v1017
        %v1050 = vsel %vm922, %v986, %v1018
        %v1051 = vsel %vm923, %v987, %v1019
        %vm1052 = vcmask 1046528
        %v1053 = vsel %vm1052, %v1020, 0.0
        %v1054 = vrot.slane %v1053, 4
        %v1055 = vadd.f32 %v1053, %v1054
        %v1056 = vrot.slane %v1055, 2
        %v1057 = vadd.f32 %v1055, %v1056
        %v1058 = vrot.slane %v1057, 1
        %v1059 = vadd.f32 %v1057, %v1058
        %v1060 = vsel %vm1052, %v1021, 0.0
        %v1061 = vrot.slane %v1060, 4
        %v1062 = vadd.f32 %v1060, %v1061
        %v1063 = vrot.slane %v1062, 2
        %v1064 = vadd.f32 %v1062, %v1063
        %v1065 = vrot.slane %v1064, 1
        %v1066 = vadd.f32 %v1064, %v1065
        %v1067 = vsel %vm1052, %v1022, 0.0
        %v1068 = vrot.slane %v1067, 4
        %v1069 = vadd.f32 %v1067, %v1068
        %v1070 = vrot.slane %v1069, 2
        %v1071 = vadd.f32 %v1069, %v1070
        %v1072 = vrot.slane %v1071, 1
        %v1073 = vadd.f32 %v1071, %v1072
        %v1074 = vsel %vm1052, %v1023, 0.0
        %v1075 = vrot.slane %v1074, 4
        %v1076 = vadd.f32 %v1074, %v1075
        %v1077 = vrot.slane %v1076, 2
        %v1078 = vadd.f32 %v1076, %v1077
        %v1079 = vrot.slane %v1078, 1
        %v1080 = vadd.f32 %v1078, %v1079
        %v1081 = vsel %vm1052, %v1024, 0.0
        %v1082 = vrot.slane %v1081, 4
        %v1083 = vadd.f32 %v1081, %v1082
        %v1084 = vrot.slane %v1083, 2
        %v1085 = vadd.f32 %v1083, %v1084
        %v1086 = vrot.slane %v1085, 1
        %v1087 = vadd.f32 %v1085, %v1086
        %v1088 = vsel %vm1052, %v1025, 0.0
        %v1089 = vrot.slane %v1088, 4
        %v1090 = vadd.f32 %v1088, %v1089
        %v1091 = vrot.slane %v1090, 2
        %v1092 = vadd.f32 %v1090, %v1091
        %v1093 = vrot.slane %v1092, 1
        %v1094 = vadd.f32 %v1092, %v1093
        %v1095 = vsel %vm1052, %v1026, 0.0
        %v1096 = vrot.slane %v1095, 4
        %v1097 = vadd.f32 %v1095, %v1096
        %v1098 = vrot.slane %v1097, 2
        %v1099 = vadd.f32 %v1097, %v1098
        %v1100 = vrot.slane %v1099, 1
        %v1101 = vadd.f32 %v1099, %v1100
        %v1102 = vsel %vm1052, %v1027, 0.0
        %v1103 = vrot.slane %v1102, 4
        %v1104 = vadd.f32 %v1102, %v1103
        %v1105 = vrot.slane %v1104, 2
        %v1106 = vadd.f32 %v1104, %v1105
        %v1107 = vrot.slane %v1106, 1
        %v1108 = vadd.f32 %v1106, %v1107
        %v1109 = vsel %vm1052, %v1028, 0.0
        %v1110 = vrot.slane %v1109, 4
        %v1111 = vadd.f32 %v1109, %v1110
        %v1112 = vrot.slane %v1111, 2
        %v1113 = vadd.f32 %v1111, %v1112
        %v1114 = vrot.slane %v1113, 1
        %v1115 = vadd.f32 %v1113, %v1114
        %v1116 = vsel %vm1052, %v1029, 0.0
        %v1117 = vrot.slane %v1116, 4
        %v1118 = vadd.f32 %v1116, %v1117
        %v1119 = vrot.slane %v1118, 2
        %v1120 = vadd.f32 %v1118, %v1119
        %v1121 = vrot.slane %v1120, 1
        %v1122 = vadd.f32 %v1120, %v1121
        %v1123 = vsel %vm1052, %v1030, 0.0
        %v1124 = vrot.slane %v1123, 4
        %v1125 = vadd.f32 %v1123, %v1124
        %v1126 = vrot.slane %v1125, 2
        %v1127 = vadd.f32 %v1125, %v1126
        %v1128 = vrot.slane %v1127, 1
        %v1129 = vadd.f32 %v1127, %v1128
        %v1130 = vsel %vm1052, %v1031, 0.0
        %v1131 = vrot.slane %v1130, 4
        %v1132 = vadd.f32 %v1130, %v1131
        %v1133 = vrot.slane %v1132, 2
        %v1134 = vadd.f32 %v1132, %v1133
        %v1135 = vrot.slane %v1134, 1
        %v1136 = vadd.f32 %v1134, %v1135
        %v1137 = vsel %vm1052, %v1032, 0.0
        %v1138 = vrot.slane %v1137, 4
        %v1139 = vadd.f32 %v1137, %v1138
        %v1140 = vrot.slane %v1139, 2
        %v1141 = vadd.f32 %v1139, %v1140
        %v1142 = vrot.slane %v1141, 1
        %v1143 = vadd.f32 %v1141, %v1142
        %v1144 = vsel %vm1052, %v1033, 0.0
        %v1145 = vrot.slane %v1144, 4
        %v1146 = vadd.f32 %v1144, %v1145
        %v1147 = vrot.slane %v1146, 2
        %v1148 = vadd.f32 %v1146, %v1147
        %v1149 = vrot.slane %v1148, 1
        %v1150 = vadd.f32 %v1148, %v1149
        %v1151 = vsel %vm1052, %v1034, 0.0
        %v1152 = vrot.slane %v1151, 4
        %v1153 = vadd.f32 %v1151, %v1152
        %v1154 = vrot.slane %v1153, 2
        %v1155 = vadd.f32 %v1153, %v1154
        %v1156 = vrot.slane %v1155, 1
        %v1157 = vadd.f32 %v1155, %v1156
        %v1158 = vsel %vm1052, %v1035, 0.0
        %v1159 = vrot.slane %v1158, 4
        %v1160 = vadd.f32 %v1158, %v1159
        %v1161 = vrot.slane %v1160, 2
        %v1162 = vadd.f32 %v1160, %v1161
        %v1163 = vrot.slane %v1162, 1
        %v1164 = vadd.f32 %v1162, %v1163
        %v1165 = vsel %vm1052, %v1036, 0.0
        %v1166 = vrot.slane %v1165, 4
        %v1167 = vadd.f32 %v1165, %v1166
        %v1168 = vrot.slane %v1167, 2
        %v1169 = vadd.f32 %v1167, %v1168
        %v1170 = vrot.slane %v1169, 1
        %v1171 = vadd.f32 %v1169, %v1170
        %v1172 = vsel %vm1052, %v1037, 0.0
        %v1173 = vrot.slane %v1172, 4
        %v1174 = vadd.f32 %v1172, %v1173
        %v1175 = vrot.slane %v1174, 2
        %v1176 = vadd.f32 %v1174, %v1175
        %v1177 = vrot.slane %v1176, 1
        %v1178 = vadd.f32 %v1176, %v1177
        %v1179 = vsel %vm1052, %v1038, 0.0
        %v1180 = vrot.slane %v1179, 4
        %v1181 = vadd.f32 %v1179, %v1180
        %v1182 = vrot.slane %v1181, 2
        %v1183 = vadd.f32 %v1181, %v1182
        %v1184 = vrot.slane %v1183, 1
        %v1185 = vadd.f32 %v1183, %v1184
        %v1186 = vsel %vm1052, %v1039, 0.0
        %v1187 = vrot.slane %v1186, 4
        %v1188 = vadd.f32 %v1186, %v1187
        %v1189 = vrot.slane %v1188, 2
        %v1190 = vadd.f32 %v1188, %v1189
        %v1191 = vrot.slane %v1190, 1
        %v1192 = vadd.f32 %v1190, %v1191
        %v1193 = vsel %vm1052, %v1040, 0.0
        %v1194 = vrot.slane %v1193, 4
        %v1195 = vadd.f32 %v1193, %v1194
        %v1196 = vrot.slane %v1195, 2
        %v1197 = vadd.f32 %v1195, %v1196
        %v1198 = vrot.slane %v1197, 1
        %v1199 = vadd.f32 %v1197, %v1198
        %v1200 = vsel %vm1052, %v1041, 0.0
        %v1201 = vrot.slane %v1200, 4
        %v1202 = vadd.f32 %v1200, %v1201
        %v1203 = vrot.slane %v1202, 2
        %v1204 = vadd.f32 %v1202, %v1203
        %v1205 = vrot.slane %v1204, 1
        %v1206 = vadd.f32 %v1204, %v1205
        %v1207 = vsel %vm1052, %v1042, 0.0
        %v1208 = vrot.slane %v1207, 4
        %v1209 = vadd.f32 %v1207, %v1208
        %v1210 = vrot.slane %v1209, 2
        %v1211 = vadd.f32 %v1209, %v1210
        %v1212 = vrot.slane %v1211, 1
        %v1213 = vadd.f32 %v1211, %v1212
        %v1214 = vsel %vm1052, %v1043, 0.0
        %v1215 = vrot.slane %v1214, 4
        %v1216 = vadd.f32 %v1214, %v1215
        %v1217 = vrot.slane %v1216, 2
        %v1218 = vadd.f32 %v1216, %v1217
        %v1219 = vrot.slane %v1218, 1
        %v1220 = vadd.f32 %v1218, %v1219
        %v1221 = vsel %vm1052, %v1044, 0.0
        %v1222 = vrot.slane %v1221, 4
        %v1223 = vadd.f32 %v1221, %v1222
        %v1224 = vrot.slane %v1223, 2
        %v1225 = vadd.f32 %v1223, %v1224
        %v1226 = vrot.slane %v1225, 1
        %v1227 = vadd.f32 %v1225, %v1226
        %v1228 = vsel %vm1052, %v1045, 0.0
        %v1229 = vrot.slane %v1228, 4
        %v1230 = vadd.f32 %v1228, %v1229
        %v1231 = vrot.slane %v1230, 2
        %v1232 = vadd.f32 %v1230, %v1231
        %v1233 = vrot.slane %v1232, 1
        %v1234 = vadd.f32 %v1232, %v1233
        %v1235 = vsel %vm1052, %v1046, 0.0
        %v1236 = vrot.slane %v1235, 4
        %v1237 = vadd.f32 %v1235, %v1236
        %v1238 = vrot.slane %v1237, 2
        %v1239 = vadd.f32 %v1237, %v1238
        %v1240 = vrot.slane %v1239, 1
        %v1241 = vadd.f32 %v1239, %v1240
        %v1242 = vsel %vm1052, %v1047, 0.0
        %v1243 = vrot.slane %v1242, 4
        %v1244 = vadd.f32 %v1242, %v1243
        %v1245 = vrot.slane %v1244, 2
        %v1246 = vadd.f32 %v1244, %v1245
        %v1247 = vrot.slane %v1246, 1
        %v1248 = vadd.f32 %v1246, %v1247
        %v1249 = vsel %vm1052, %v1048, 0.0
        %v1250 = vrot.slane %v1249, 4
        %v1251 = vadd.f32 %v1249, %v1250
        %v1252 = vrot.slane %v1251, 2
        %v1253 = vadd.f32 %v1251, %v1252
        %v1254 = vrot.slane %v1253, 1
        %v1255 = vadd.f32 %v1253, %v1254
        %v1256 = vsel %vm1052, %v1049, 0.0
        %v1257 = vrot.slane %v1256, 4
        %v1258 = vadd.f32 %v1256, %v1257
        %v1259 = vrot.slane %v1258, 2
        %v1260 = vadd.f32 %v1258, %v1259
        %v1261 = vrot.slane %v1260, 1
        %v1262 = vadd.f32 %v1260, %v1261
        %v1263 = vsel %vm1052, %v1050, 0.0
        %v1264 = vrot.slane %v1263, 4
        %v1265 = vadd.f32 %v1263, %v1264
        %v1266 = vrot.slane %v1265, 2
        %v1267 = vadd.f32 %v1265, %v1266
        %v1268 = vrot.slane %v1267, 1
        %v1269 = vadd.f32 %v1267, %v1268
        %v1270 = vsel %vm1052, %v1051, 0.0
        %v1271 = vrot.slane %v1270, 4
        %v1272 = vadd.f32 %v1270, %v1271
        %v1273 = vrot.slane %v1272, 2
        %v1274 = vadd.f32 %v1272, %v1273
        %v1275 = vrot.slane %v1274, 1
        %v1276 = vadd.f32 %v1274, %v1275
        %v1277 = vand.u32 2147483647, %v796
        %vm1278 = vcmp.le.f32.partialorder %v1277, 0.7853982
        %vm1279 = vcmp.lt.s32.totalorder %v796, 0
        %v1280 = vand.u32 %v796, 2139095040
        %v1281 = vshrl.u32 %v1280, 23
        %v1282 = vsub.s32 %v1281, 127
        %v1283 = vand.u32 2147483647, %v796
        %v1284 = vand.u32 %v1283, 8388607
        %v1285 = vor.u32 %v1284, 8388608
        %v1286 = vsub.s32 0, %v1285
        %v1287 = vadd.s32 %v1282, 1
        %vm1288 = vcmp.gt.s32.totalorder %v1287, 0
        %v1289 = vsel %vm1288, %v1287, 0
        %v1290 = vshrl.u32 %v1289, 5
        %v1291 = vand.u32 %v1289, 31
        %v1292 = vsub.s32 32, %v1291
        %v1293 = vshrl.u32 683565275, %v1292
        %v1294 = vshll.u32 683565275, %v1291
        %v1295 = vshrl.u32 2475754826, %v1292
        %v1296 = vor.u32 %v1294, %v1295
        %v1297 = vshll.u32 2475754826, %v1291
        %v1298 = vshrl.u32 2131351028, %v1292
        %v1299 = vor.u32 %v1297, %v1298
        %v1300 = vshll.u32 2131351028, %v1291
        %v1301 = vshrl.u32 2102212464, %v1292
        %v1302 = vor.u32 %v1300, %v1301
        %v1303 = vshll.u32 2102212464, %v1291
        %v1304 = vshrl.u32 920167782, %v1292
        %v1305 = vor.u32 %v1303, %v1304
        %v1306 = vshll.u32 920167782, %v1291
        %v1307 = vshrl.u32 1326507024, %v1292
        %v1308 = vor.u32 %v1306, %v1307
        %vm1309 = vcmp.lt.s32.totalorder %v1290, 1
        %vm1310 = vcmp.lt.s32.totalorder %v1290, 2
        %vm1311 = vcmp.lt.s32.totalorder %v1290, 3
        %vm1312 = vcmp.lt.s32.totalorder %v1290, 4
        %v1313 = vsel %vm1309, %v1293, %v1296
        %v1314 = vsel %vm1312, %v1302, 2102212464
        %v1315 = vsel %vm1311, %v1299, %v1314
        %v1316 = vsel %vm1310, %v1313, %v1315
        %v1317 = vsel %vm1309, %v1296, %v1299
        %v1318 = vsel %vm1312, %v1305, 920167782
        %v1319 = vsel %vm1311, %v1302, %v1318
        %v1320 = vsel %vm1310, %v1317, %v1319
        %v1321 = vsel %vm1309, %v1299, %v1302
        %v1322 = vsel %vm1312, %v1308, 1326507024
        %v1323 = vsel %vm1311, %v1305, %v1322
        %v1324 = vsel %vm1310, %v1321, %v1323
        %v1325 = vshll.u32 %v1285, 8
        %v1326 = vmul.u32.u64.compose %v1325, %v1324
        %v1327 = vextract.low.u32 %v1326
        %v1328 = vextract.high.u32 %v1326
        %v1329 = vmul.u32.u64.compose %v1325, %v1320
        %v1330 = vextract.low.u32 %v1329
        %v1331 = vextract.high.u32 %v1329
        %v1332 = vmul.u32 %v1325, %v1316
        %v1333 = vadd.s32 %v1328, %v1330
        %vm1334 = vc.u32 %v1328, %v1330
        %v1335 = vadd.s32 %v1331, 1
        %v1336 = vsel %vm1334, %v1335, %v1331
        %v1337 = vadd.s32 %v1332, %v1336
        %v1338 = vadd.s32 %v1337, 536870912
        %v1339 = vshrl.u32 %v1338, 30
        %v1340 = vshll.u32 %v1339, 30
        %v1341 = vsub.s32 %v1337, %v1340
        %vm1342 = vcmp.lt.s32.totalorder %v1341, 0
        %v1343 = vsub.s32 0, %v1341
        %v1344 = vsel %vm1342, %v1343, %v1341
        %v1345 = vclz %v1344
        %v1346 = vsub.s32 %v1345, 2
        %vm1347 = vcmp.gt.s32.totalorder 0, %v1346
        %v1348 = vsel %vm1347, 0, %v1346
        %v1349 = vsub.s32 32, %v1348
        %v1350 = vshll.u32 %v1341, %v1348
        %v1351 = vshrl.u32 %v1333, %v1349
        %v1352 = vor.u32 %v1350, %v1351
        %v1353 = vsub.s32 4294967266, %v1348
        %v1354 = vadd.s32 %v1353, 127
        %v1355 = vshll.u32 %v1354, 23
        %v1356 = vor.u32 4788187, %v1355
        %v1357 = vand.u32 2147483647, %v1356
        %v1359 = vcvt.s32.f32 %v1352
        %v1360 = vmul.f32 %v1359, %v1357
        %v1361 = vxor.u32 %v1360, 2147483648
        %v1362 = vsel %vm1279, %v1361, %v1360
        %v1363 = vsub.s32 4, %v1339
        %v1364 = vsel %vm1279, %v1363, %v1339
        %v1365 = vsel %vm1278, %v796, %v1362
        %v1366 = vsel %vm1278, 0, %v1364
        %v1367 = vcosq.f32.pop %v1365
        %v1368 = vsinq.f32.pop %v1365
        %vm1369 = vweird.f32 %v796
        %v1370 = vadd.s32 %v1366, 3
        %v1371 = vand.u32 %v1370, 3
        %vm1372 = vcmp.lt.s32.totalorder %v1371, 2
        %vm1373 = vcmp.eq.s32.totalorder %v1371, 0
        %v1374 = vxor.u32 %v1368, 2147483648
        %v1375 = vsel %vm1373, %v1367, %v1374
        %vm1376 = vcmp.eq.s32.totalorder %v1371, 2
        %v1377 = vxor.u32 %v1367, 2147483648
        %v1378 = vsel %vm1376, %v1377, %v1368
        %v1379 = vsel %vm1372, %v1375, %v1378
        %v1380 = vsel %vm1369, nan, %v1379
        %v1381 = vand.u32 2147483647, %v797
        %vm1382 = vcmp.le.f32.partialorder %v1381, 0.7853982
        %vm1383 = vcmp.lt.s32.totalorder %v797, 0
        %v1384 = vand.u32 %v797, 2139095040
        %v1385 = vshrl.u32 %v1384, 23
        %v1386 = vsub.s32 %v1385, 127
        %v1387 = vand.u32 2147483647, %v797
        %v1388 = vand.u32 %v1387, 8388607
        %v1389 = vor.u32 %v1388, 8388608
        %v1390 = vsub.s32 0, %v1389
        %v1391 = vadd.s32 %v1386, 1
        %vm1392 = vcmp.gt.s32.totalorder %v1391, 0
        %v1393 = vsel %vm1392, %v1391, 0
        %v1394 = vshrl.u32 %v1393, 5
        %v1395 = vand.u32 %v1393, 31
        %v1396 = vsub.s32 32, %v1395
        %v1397 = vshrl.u32 683565275, %v1396
        %v1398 = vshll.u32 683565275, %v1395
        %v1399 = vshrl.u32 2475754826, %v1396
        %v1400 = vor.u32 %v1398, %v1399
        %v1401 = vshll.u32 2475754826, %v1395
        %v1402 = vshrl.u32 2131351028, %v1396
        %v1403 = vor.u32 %v1401, %v1402
        %v1404 = vshll.u32 2131351028, %v1395
        %v1405 = vshrl.u32 2102212464, %v1396
        %v1406 = vor.u32 %v1404, %v1405
        %v1407 = vshll.u32 2102212464, %v1395
        %v1408 = vshrl.u32 920167782, %v1396
        %v1409 = vor.u32 %v1407, %v1408
        %v1410 = vshll.u32 920167782, %v1395
        %v1411 = vshrl.u32 1326507024, %v1396
        %v1412 = vor.u32 %v1410, %v1411
        %vm1413 = vcmp.lt.s32.totalorder %v1394, 1
        %vm1414 = vcmp.lt.s32.totalorder %v1394, 2
        %vm1415 = vcmp.lt.s32.totalorder %v1394, 3
        %vm1416 = vcmp.lt.s32.totalorder %v1394, 4
        %v1417 = vsel %vm1413, %v1397, %v1400
        %v1418 = vsel %vm1416, %v1406, 2102212464
        %v1419 = vsel %vm1415, %v1403, %v1418
        %v1420 = vsel %vm1414, %v1417, %v1419
        %v1421 = vsel %vm1413, %v1400, %v1403
        %v1422 = vsel %vm1416, %v1409, 920167782
        %v1423 = vsel %vm1415, %v1406, %v1422
        %v1424 = vsel %vm1414, %v1421, %v1423
        %v1425 = vsel %vm1413, %v1403, %v1406
        %v1426 = vsel %vm1416, %v1412, 1326507024
        %v1427 = vsel %vm1415, %v1409, %v1426
        %v1428 = vsel %vm1414, %v1425, %v1427
        %v1429 = vshll.u32 %v1389, 8
        %v1430 = vmul.u32.u64.compose %v1429, %v1428
        %v1431 = vextract.low.u32 %v1430
        %v1432 = vextract.high.u32 %v1430
        %v1433 = vmul.u32.u64.compose %v1429, %v1424
        %v1434 = vextract.low.u32 %v1433
        %v1435 = vextract.high.u32 %v1433
        %v1436 = vmul.u32 %v1429, %v1420
        %v1437 = vadd.s32 %v1432, %v1434
        %vm1438 = vc.u32 %v1432, %v1434
        %v1439 = vadd.s32 %v1435, 1
        %v1440 = vsel %vm1438, %v1439, %v1435
        %v1441 = vadd.s32 %v1436, %v1440
        %v1442 = vadd.s32 %v1441, 536870912
        %v1443 = vshrl.u32 %v1442, 30
        %v1444 = vshll.u32 %v1443, 30
        %v1445 = vsub.s32 %v1441, %v1444
        %vm1446 = vcmp.lt.s32.totalorder %v1445, 0
        %v1447 = vsub.s32 0, %v1445
        %v1448 = vsel %vm1446, %v1447, %v1445
        %v1449 = vclz %v1448
        %v1450 = vsub.s32 %v1449, 2
        %vm1451 = vcmp.gt.s32.totalorder 0, %v1450
        %v1452 = vsel %vm1451, 0, %v1450
        %v1453 = vsub.s32 32, %v1452
        %v1454 = vshll.u32 %v1445, %v1452
        %v1455 = vshrl.u32 %v1437, %v1453
        %v1456 = vor.u32 %v1454, %v1455
        %v1457 = vsub.s32 4294967266, %v1452
        %v1458 = vadd.s32 %v1457, 127
        %v1459 = vshll.u32 %v1458, 23
        %v1460 = vor.u32 4788187, %v1459
        %v1461 = vand.u32 2147483647, %v1460
        %v1463 = vcvt.s32.f32 %v1456
        %v1464 = vmul.f32 %v1463, %v1461
        %v1465 = vxor.u32 %v1464, 2147483648
        %v1466 = vsel %vm1383, %v1465, %v1464
        %v1467 = vsub.s32 4, %v1443
        %v1468 = vsel %vm1383, %v1467, %v1443
        %v1469 = vsel %vm1382, %v797, %v1466
        %v1470 = vsel %vm1382, 0, %v1468
        %v1471 = vcosq.f32.pop %v1469
        %v1472 = vsinq.f32.pop %v1469
        %vm1473 = vweird.f32 %v797
        %v1474 = vadd.s32 %v1470, 3
        %v1475 = vand.u32 %v1474, 3
        %vm1476 = vcmp.lt.s32.totalorder %v1475, 2
        %vm1477 = vcmp.eq.s32.totalorder %v1475, 0
        %v1478 = vxor.u32 %v1472, 2147483648
        %v1479 = vsel %vm1477, %v1471, %v1478
        %vm1480 = vcmp.eq.s32.totalorder %v1475, 2
        %v1481 = vxor.u32 %v1471, 2147483648
        %v1482 = vsel %vm1480, %v1481, %v1472
        %v1483 = vsel %vm1476, %v1479, %v1482
        %v1484 = vsel %vm1473, nan, %v1483
        %v1485 = vand.u32 2147483647, %v798
        %vm1486 = vcmp.le.f32.partialorder %v1485, 0.7853982
        %vm1487 = vcmp.lt.s32.totalorder %v798, 0
        %v1488 = vand.u32 %v798, 2139095040
        %v1489 = vshrl.u32 %v1488, 23
        %v1490 = vsub.s32 %v1489, 127
        %v1491 = vand.u32 2147483647, %v798
        %v1492 = vand.u32 %v1491, 8388607
        %v1493 = vor.u32 %v1492, 8388608
        %v1494 = vsub.s32 0, %v1493
        %v1495 = vadd.s32 %v1490, 1
        %vm1496 = vcmp.gt.s32.totalorder %v1495, 0
        %v1497 = vsel %vm1496, %v1495, 0
        %v1498 = vshrl.u32 %v1497, 5
        %v1499 = vand.u32 %v1497, 31
        %v1500 = vsub.s32 32, %v1499
        %v1501 = vshrl.u32 683565275, %v1500
        %v1502 = vshll.u32 683565275, %v1499
        %v1503 = vshrl.u32 2475754826, %v1500
        %v1504 = vor.u32 %v1502, %v1503
        %v1505 = vshll.u32 2475754826, %v1499
        %v1506 = vshrl.u32 2131351028, %v1500
        %v1507 = vor.u32 %v1505, %v1506
        %v1508 = vshll.u32 2131351028, %v1499
        %v1509 = vshrl.u32 2102212464, %v1500
        %v1510 = vor.u32 %v1508, %v1509
        %v1511 = vshll.u32 2102212464, %v1499
        %v1512 = vshrl.u32 920167782, %v1500
        %v1513 = vor.u32 %v1511, %v1512
        %v1514 = vshll.u32 920167782, %v1499
        %v1515 = vshrl.u32 1326507024, %v1500
        %v1516 = vor.u32 %v1514, %v1515
        %vm1517 = vcmp.lt.s32.totalorder %v1498, 1
        %vm1518 = vcmp.lt.s32.totalorder %v1498, 2
        %vm1519 = vcmp.lt.s32.totalorder %v1498, 3
        %vm1520 = vcmp.lt.s32.totalorder %v1498, 4
        %v1521 = vsel %vm1517, %v1501, %v1504
        %v1522 = vsel %vm1520, %v1510, 2102212464
        %v1523 = vsel %vm1519, %v1507, %v1522
        %v1524 = vsel %vm1518, %v1521, %v1523
        %v1525 = vsel %vm1517, %v1504, %v1507
        %v1526 = vsel %vm1520, %v1513, 920167782
        %v1527 = vsel %vm1519, %v1510, %v1526
        %v1528 = vsel %vm1518, %v1525, %v1527
        %v1529 = vsel %vm1517, %v1507, %v1510
        %v1530 = vsel %vm1520, %v1516, 1326507024
        %v1531 = vsel %vm1519, %v1513, %v1530
        %v1532 = vsel %vm1518, %v1529, %v1531
        %v1533 = vshll.u32 %v1493, 8
        %v1534 = vmul.u32.u64.compose %v1533, %v1532
        %v1535 = vextract.low.u32 %v1534
        %v1536 = vextract.high.u32 %v1534
        %v1537 = vmul.u32.u64.compose %v1533, %v1528
        %v1538 = vextract.low.u32 %v1537
        %v1539 = vextract.high.u32 %v1537
        %v1540 = vmul.u32 %v1533, %v1524
        %v1541 = vadd.s32 %v1536, %v1538
        %vm1542 = vc.u32 %v1536, %v1538
        %v1543 = vadd.s32 %v1539, 1
        %v1544 = vsel %vm1542, %v1543, %v1539
        %v1545 = vadd.s32 %v1540, %v1544
        %v1546 = vadd.s32 %v1545, 536870912
        %v1547 = vshrl.u32 %v1546, 30
        %v1548 = vshll.u32 %v1547, 30
        %v1549 = vsub.s32 %v1545, %v1548
        %vm1550 = vcmp.lt.s32.totalorder %v1549, 0
        %v1551 = vsub.s32 0, %v1549
        %v1552 = vsel %vm1550, %v1551, %v1549
        %v1553 = vclz %v1552
        %v1554 = vsub.s32 %v1553, 2
        %vm1555 = vcmp.gt.s32.totalorder 0, %v1554
        %v1556 = vsel %vm1555, 0, %v1554
        %v1557 = vsub.s32 32, %v1556
        %v1558 = vshll.u32 %v1549, %v1556
        %v1559 = vshrl.u32 %v1541, %v1557
        %v1560 = vor.u32 %v1558, %v1559
        %v1561 = vsub.s32 4294967266, %v1556
        %v1562 = vadd.s32 %v1561, 127
        %v1563 = vshll.u32 %v1562, 23
        %v1564 = vor.u32 4788187, %v1563
        %v1565 = vand.u32 2147483647, %v1564
        %v1567 = vcvt.s32.f32 %v1560
        %v1568 = vmul.f32 %v1567, %v1565
        %v1569 = vxor.u32 %v1568, 2147483648
        %v1570 = vsel %vm1487, %v1569, %v1568
        %v1571 = vsub.s32 4, %v1547
        %v1572 = vsel %vm1487, %v1571, %v1547
        %v1573 = vsel %vm1486, %v798, %v1570
        %v1574 = vsel %vm1486, 0, %v1572
        %v1575 = vcosq.f32.pop %v1573
        %v1576 = vsinq.f32.pop %v1573
        %vm1577 = vweird.f32 %v798
        %v1578 = vadd.s32 %v1574, 3
        %v1579 = vand.u32 %v1578, 3
        %vm1580 = vcmp.lt.s32.totalorder %v1579, 2
        %vm1581 = vcmp.eq.s32.totalorder %v1579, 0
        %v1582 = vxor.u32 %v1576, 2147483648
        %v1583 = vsel %vm1581, %v1575, %v1582
        %vm1584 = vcmp.eq.s32.totalorder %v1579, 2
        %v1585 = vxor.u32 %v1575, 2147483648
        %v1586 = vsel %vm1584, %v1585, %v1576
        %v1587 = vsel %vm1580, %v1583, %v1586
        %v1588 = vsel %vm1577, nan, %v1587
        %v1589 = vand.u32 2147483647, %v799
        %vm1590 = vcmp.le.f32.partialorder %v1589, 0.7853982
        %vm1591 = vcmp.lt.s32.totalorder %v799, 0
        %v1592 = vand.u32 %v799, 2139095040
        %v1593 = vshrl.u32 %v1592, 23
        %v1594 = vsub.s32 %v1593, 127
        %v1595 = vand.u32 2147483647, %v799
        %v1596 = vand.u32 %v1595, 8388607
        %v1597 = vor.u32 %v1596, 8388608
        %v1598 = vsub.s32 0, %v1597
        %v1599 = vadd.s32 %v1594, 1
        %vm1600 = vcmp.gt.s32.totalorder %v1599, 0
        %v1601 = vsel %vm1600, %v1599, 0
        %v1602 = vshrl.u32 %v1601, 5
        %v1603 = vand.u32 %v1601, 31
        %v1604 = vsub.s32 32, %v1603
        %v1605 = vshrl.u32 683565275, %v1604
        %v1606 = vshll.u32 683565275, %v1603
        %v1607 = vshrl.u32 2475754826, %v1604
        %v1608 = vor.u32 %v1606, %v1607
        %v1609 = vshll.u32 2475754826, %v1603
        %v1610 = vshrl.u32 2131351028, %v1604
        %v1611 = vor.u32 %v1609, %v1610
        %v1612 = vshll.u32 2131351028, %v1603
        %v1613 = vshrl.u32 2102212464, %v1604
        %v1614 = vor.u32 %v1612, %v1613
        %v1615 = vshll.u32 2102212464, %v1603
        %v1616 = vshrl.u32 920167782, %v1604
        %v1617 = vor.u32 %v1615, %v1616
        %v1618 = vshll.u32 920167782, %v1603
        %v1619 = vshrl.u32 1326507024, %v1604
        %v1620 = vor.u32 %v1618, %v1619
        %vm1621 = vcmp.lt.s32.totalorder %v1602, 1
        %vm1622 = vcmp.lt.s32.totalorder %v1602, 2
        %vm1623 = vcmp.lt.s32.totalorder %v1602, 3
        %vm1624 = vcmp.lt.s32.totalorder %v1602, 4
        %v1625 = vsel %vm1621, %v1605, %v1608
        %v1626 = vsel %vm1624, %v1614, 2102212464
        %v1627 = vsel %vm1623, %v1611, %v1626
        %v1628 = vsel %vm1622, %v1625, %v1627
        %v1629 = vsel %vm1621, %v1608, %v1611
        %v1630 = vsel %vm1624, %v1617, 920167782
        %v1631 = vsel %vm1623, %v1614, %v1630
        %v1632 = vsel %vm1622, %v1629, %v1631
        %v1633 = vsel %vm1621, %v1611, %v1614
        %v1634 = vsel %vm1624, %v1620, 1326507024
        %v1635 = vsel %vm1623, %v1617, %v1634
        %v1636 = vsel %vm1622, %v1633, %v1635
        %v1637 = vshll.u32 %v1597, 8
        %v1638 = vmul.u32.u64.compose %v1637, %v1636
        %v1639 = vextract.low.u32 %v1638
        %v1640 = vextract.high.u32 %v1638
        %v1641 = vmul.u32.u64.compose %v1637, %v1632
        %v1642 = vextract.low.u32 %v1641
        %v1643 = vextract.high.u32 %v1641
        %v1644 = vmul.u32 %v1637, %v1628
        %v1645 = vadd.s32 %v1640, %v1642
        %vm1646 = vc.u32 %v1640, %v1642
        %v1647 = vadd.s32 %v1643, 1
        %v1648 = vsel %vm1646, %v1647, %v1643
        %v1649 = vadd.s32 %v1644, %v1648
        %v1650 = vadd.s32 %v1649, 536870912
        %v1651 = vshrl.u32 %v1650, 30
        %v1652 = vshll.u32 %v1651, 30
        %v1653 = vsub.s32 %v1649, %v1652
        %vm1654 = vcmp.lt.s32.totalorder %v1653, 0
        %v1655 = vsub.s32 0, %v1653
        %v1656 = vsel %vm1654, %v1655, %v1653
        %v1657 = vclz %v1656
        %v1658 = vsub.s32 %v1657, 2
        %vm1659 = vcmp.gt.s32.totalorder 0, %v1658
        %v1660 = vsel %vm1659, 0, %v1658
        %v1661 = vsub.s32 32, %v1660
        %v1662 = vshll.u32 %v1653, %v1660
        %v1663 = vshrl.u32 %v1645, %v1661
        %v1664 = vor.u32 %v1662, %v1663
        %v1665 = vsub.s32 4294967266, %v1660
        %v1666 = vadd.s32 %v1665, 127
        %v1667 = vshll.u32 %v1666, 23
        %v1668 = vor.u32 4788187, %v1667
        %v1669 = vand.u32 2147483647, %v1668
        %v1671 = vcvt.s32.f32 %v1664
        %v1672 = vmul.f32 %v1671, %v1669
        %v1673 = vxor.u32 %v1672, 2147483648
        %v1674 = vsel %vm1591, %v1673, %v1672
        %v1675 = vsub.s32 4, %v1651
        %v1676 = vsel %vm1591, %v1675, %v1651
        %v1677 = vsel %vm1590, %v799, %v1674
        %v1678 = vsel %vm1590, 0, %v1676
        %v1679 = vcosq.f32.pop %v1677
        %v1680 = vsinq.f32.pop %v1677
        %vm1681 = vweird.f32 %v799
        %v1682 = vadd.s32 %v1678, 3
        %v1683 = vand.u32 %v1682, 3
        %vm1684 = vcmp.lt.s32.totalorder %v1683, 2
        %vm1685 = vcmp.eq.s32.totalorder %v1683, 0
        %v1686 = vxor.u32 %v1680, 2147483648
        %v1687 = vsel %vm1685, %v1679, %v1686
        %vm1688 = vcmp.eq.s32.totalorder %v1683, 2
        %v1689 = vxor.u32 %v1679, 2147483648
        %v1690 = vsel %vm1688, %v1689, %v1680
        %v1691 = vsel %vm1684, %v1687, %v1690
        %v1692 = vsel %vm1681, nan, %v1691
        %v1693 = vand.u32 2147483647, %v800
        %vm1694 = vcmp.le.f32.partialorder %v1693, 0.7853982
        %vm1695 = vcmp.lt.s32.totalorder %v800, 0
        %v1696 = vand.u32 %v800, 2139095040
        %v1697 = vshrl.u32 %v1696, 23
        %v1698 = vsub.s32 %v1697, 127
        %v1699 = vand.u32 2147483647, %v800
        %v1700 = vand.u32 %v1699, 8388607
        %v1701 = vor.u32 %v1700, 8388608
        %v1702 = vsub.s32 0, %v1701
        %v1703 = vadd.s32 %v1698, 1
        %vm1704 = vcmp.gt.s32.totalorder %v1703, 0
        %v1705 = vsel %vm1704, %v1703, 0
        %v1706 = vshrl.u32 %v1705, 5
        %v1707 = vand.u32 %v1705, 31
        %v1708 = vsub.s32 32, %v1707
        %v1709 = vshrl.u32 683565275, %v1708
        %v1710 = vshll.u32 683565275, %v1707
        %v1711 = vshrl.u32 2475754826, %v1708
        %v1712 = vor.u32 %v1710, %v1711
        %v1713 = vshll.u32 2475754826, %v1707
        %v1714 = vshrl.u32 2131351028, %v1708
        %v1715 = vor.u32 %v1713, %v1714
        %v1716 = vshll.u32 2131351028, %v1707
        %v1717 = vshrl.u32 2102212464, %v1708
        %v1718 = vor.u32 %v1716, %v1717
        %v1719 = vshll.u32 2102212464, %v1707
        %v1720 = vshrl.u32 920167782, %v1708
        %v1721 = vor.u32 %v1719, %v1720
        %v1722 = vshll.u32 920167782, %v1707
        %v1723 = vshrl.u32 1326507024, %v1708
        %v1724 = vor.u32 %v1722, %v1723
        %vm1725 = vcmp.lt.s32.totalorder %v1706, 1
        %vm1726 = vcmp.lt.s32.totalorder %v1706, 2
        %vm1727 = vcmp.lt.s32.totalorder %v1706, 3
        %vm1728 = vcmp.lt.s32.totalorder %v1706, 4
        %v1729 = vsel %vm1725, %v1709, %v1712
        %v1730 = vsel %vm1728, %v1718, 2102212464
        %v1731 = vsel %vm1727, %v1715, %v1730
        %v1732 = vsel %vm1726, %v1729, %v1731
        %v1733 = vsel %vm1725, %v1712, %v1715
        %v1734 = vsel %vm1728, %v1721, 920167782
        %v1735 = vsel %vm1727, %v1718, %v1734
        %v1736 = vsel %vm1726, %v1733, %v1735
        %v1737 = vsel %vm1725, %v1715, %v1718
        %v1738 = vsel %vm1728, %v1724, 1326507024
        %v1739 = vsel %vm1727, %v1721, %v1738
        %v1740 = vsel %vm1726, %v1737, %v1739
        %v1741 = vshll.u32 %v1701, 8
        %v1742 = vmul.u32.u64.compose %v1741, %v1740
        %v1743 = vextract.low.u32 %v1742
        %v1744 = vextract.high.u32 %v1742
        %v1745 = vmul.u32.u64.compose %v1741, %v1736
        %v1746 = vextract.low.u32 %v1745
        %v1747 = vextract.high.u32 %v1745
        %v1748 = vmul.u32 %v1741, %v1732
        %v1749 = vadd.s32 %v1744, %v1746
        %vm1750 = vc.u32 %v1744, %v1746
        %v1751 = vadd.s32 %v1747, 1
        %v1752 = vsel %vm1750, %v1751, %v1747
        %v1753 = vadd.s32 %v1748, %v1752
        %v1754 = vadd.s32 %v1753, 536870912
        %v1755 = vshrl.u32 %v1754, 30
        %v1756 = vshll.u32 %v1755, 30
        %v1757 = vsub.s32 %v1753, %v1756
        %vm1758 = vcmp.lt.s32.totalorder %v1757, 0
        %v1759 = vsub.s32 0, %v1757
        %v1760 = vsel %vm1758, %v1759, %v1757
        %v1761 = vclz %v1760
        %v1762 = vsub.s32 %v1761, 2
        %vm1763 = vcmp.gt.s32.totalorder 0, %v1762
        %v1764 = vsel %vm1763, 0, %v1762
        %v1765 = vsub.s32 32, %v1764
        %v1766 = vshll.u32 %v1757, %v1764
        %v1767 = vshrl.u32 %v1749, %v1765
        %v1768 = vor.u32 %v1766, %v1767
        %v1769 = vsub.s32 4294967266, %v1764
        %v1770 = vadd.s32 %v1769, 127
        %v1771 = vshll.u32 %v1770, 23
        %v1772 = vor.u32 4788187, %v1771
        %v1773 = vand.u32 2147483647, %v1772
        %v1775 = vcvt.s32.f32 %v1768
        %v1776 = vmul.f32 %v1775, %v1773
        %v1777 = vxor.u32 %v1776, 2147483648
        %v1778 = vsel %vm1695, %v1777, %v1776
        %v1779 = vsub.s32 4, %v1755
        %v1780 = vsel %vm1695, %v1779, %v1755
        %v1781 = vsel %vm1694, %v800, %v1778
        %v1782 = vsel %vm1694, 0, %v1780
        %v1783 = vcosq.f32.pop %v1781
        %v1784 = vsinq.f32.pop %v1781
        %vm1785 = vweird.f32 %v800
        %v1786 = vadd.s32 %v1782, 3
        %v1787 = vand.u32 %v1786, 3
        %vm1788 = vcmp.lt.s32.totalorder %v1787, 2
        %vm1789 = vcmp.eq.s32.totalorder %v1787, 0
        %v1790 = vxor.u32 %v1784, 2147483648
        %v1791 = vsel %vm1789, %v1783, %v1790
        %vm1792 = vcmp.eq.s32.totalorder %v1787, 2
        %v1793 = vxor.u32 %v1783, 2147483648
        %v1794 = vsel %vm1792, %v1793, %v1784
        %v1795 = vsel %vm1788, %v1791, %v1794
        %v1796 = vsel %vm1785, nan, %v1795
        %v1797 = vand.u32 2147483647, %v801
        %vm1798 = vcmp.le.f32.partialorder %v1797, 0.7853982
        %vm1799 = vcmp.lt.s32.totalorder %v801, 0
        %v1800 = vand.u32 %v801, 2139095040
        %v1801 = vshrl.u32 %v1800, 23
        %v1802 = vsub.s32 %v1801, 127
        %v1803 = vand.u32 2147483647, %v801
        %v1804 = vand.u32 %v1803, 8388607
        %v1805 = vor.u32 %v1804, 8388608
        %v1806 = vsub.s32 0, %v1805
        %v1807 = vadd.s32 %v1802, 1
        %vm1808 = vcmp.gt.s32.totalorder %v1807, 0
        %v1809 = vsel %vm1808, %v1807, 0
        %v1810 = vshrl.u32 %v1809, 5
        %v1811 = vand.u32 %v1809, 31
        %v1812 = vsub.s32 32, %v1811
        %v1813 = vshrl.u32 683565275, %v1812
        %v1814 = vshll.u32 683565275, %v1811
        %v1815 = vshrl.u32 2475754826, %v1812
        %v1816 = vor.u32 %v1814, %v1815
        %v1817 = vshll.u32 2475754826, %v1811
        %v1818 = vshrl.u32 2131351028, %v1812
        %v1819 = vor.u32 %v1817, %v1818
        %v1820 = vshll.u32 2131351028, %v1811
        %v1821 = vshrl.u32 2102212464, %v1812
        %v1822 = vor.u32 %v1820, %v1821
        %v1823 = vshll.u32 2102212464, %v1811
        %v1824 = vshrl.u32 920167782, %v1812
        %v1825 = vor.u32 %v1823, %v1824
        %v1826 = vshll.u32 920167782, %v1811
        %v1827 = vshrl.u32 1326507024, %v1812
        %v1828 = vor.u32 %v1826, %v1827
        %vm1829 = vcmp.lt.s32.totalorder %v1810, 1
        %vm1830 = vcmp.lt.s32.totalorder %v1810, 2
        %vm1831 = vcmp.lt.s32.totalorder %v1810, 3
        %vm1832 = vcmp.lt.s32.totalorder %v1810, 4
        %v1833 = vsel %vm1829, %v1813, %v1816
        %v1834 = vsel %vm1832, %v1822, 2102212464
        %v1835 = vsel %vm1831, %v1819, %v1834
        %v1836 = vsel %vm1830, %v1833, %v1835
        %v1837 = vsel %vm1829, %v1816, %v1819
        %v1838 = vsel %vm1832, %v1825, 920167782
        %v1839 = vsel %vm1831, %v1822, %v1838
        %v1840 = vsel %vm1830, %v1837, %v1839
        %v1841 = vsel %vm1829, %v1819, %v1822
        %v1842 = vsel %vm1832, %v1828, 1326507024
        %v1843 = vsel %vm1831, %v1825, %v1842
        %v1844 = vsel %vm1830, %v1841, %v1843
        %v1845 = vshll.u32 %v1805, 8
        %v1846 = vmul.u32.u64.compose %v1845, %v1844
        %v1847 = vextract.low.u32 %v1846
        %v1848 = vextract.high.u32 %v1846
        %v1849 = vmul.u32.u64.compose %v1845, %v1840
        %v1850 = vextract.low.u32 %v1849
        %v1851 = vextract.high.u32 %v1849
        %v1852 = vmul.u32 %v1845, %v1836
        %v1853 = vadd.s32 %v1848, %v1850
        %vm1854 = vc.u32 %v1848, %v1850
        %v1855 = vadd.s32 %v1851, 1
        %v1856 = vsel %vm1854, %v1855, %v1851
        %v1857 = vadd.s32 %v1852, %v1856
        %v1858 = vadd.s32 %v1857, 536870912
        %v1859 = vshrl.u32 %v1858, 30
        %v1860 = vshll.u32 %v1859, 30
        %v1861 = vsub.s32 %v1857, %v1860
        %vm1862 = vcmp.lt.s32.totalorder %v1861, 0
        %v1863 = vsub.s32 0, %v1861
        %v1864 = vsel %vm1862, %v1863, %v1861
        %v1865 = vclz %v1864
        %v1866 = vsub.s32 %v1865, 2
        %vm1867 = vcmp.gt.s32.totalorder 0, %v1866
        %v1868 = vsel %vm1867, 0, %v1866
        %v1869 = vsub.s32 32, %v1868
        %v1870 = vshll.u32 %v1861, %v1868
        %v1871 = vshrl.u32 %v1853, %v1869
        %v1872 = vor.u32 %v1870, %v1871
        %v1873 = vsub.s32 4294967266, %v1868
        %v1874 = vadd.s32 %v1873, 127
        %v1875 = vshll.u32 %v1874, 23
        %v1876 = vor.u32 4788187, %v1875
        %v1877 = vand.u32 2147483647, %v1876
        %v1879 = vcvt.s32.f32 %v1872
        %v1880 = vmul.f32 %v1879, %v1877
        %v1881 = vxor.u32 %v1880, 2147483648
        %v1882 = vsel %vm1799, %v1881, %v1880
        %v1883 = vsub.s32 4, %v1859
        %v1884 = vsel %vm1799, %v1883, %v1859
        %v1885 = vsel %vm1798, %v801, %v1882
        %v1886 = vsel %vm1798, 0, %v1884
        %v1887 = vcosq.f32.pop %v1885
        %v1888 = vsinq.f32.pop %v1885
        %vm1889 = vweird.f32 %v801
        %v1890 = vadd.s32 %v1886, 3
        %v1891 = vand.u32 %v1890, 3
        %vm1892 = vcmp.lt.s32.totalorder %v1891, 2
        %vm1893 = vcmp.eq.s32.totalorder %v1891, 0
        %v1894 = vxor.u32 %v1888, 2147483648
        %v1895 = vsel %vm1893, %v1887, %v1894
        %vm1896 = vcmp.eq.s32.totalorder %v1891, 2
        %v1897 = vxor.u32 %v1887, 2147483648
        %v1898 = vsel %vm1896, %v1897, %v1888
        %v1899 = vsel %vm1892, %v1895, %v1898
        %v1900 = vsel %vm1889, nan, %v1899
        %v1901 = vand.u32 2147483647, %v802
        %vm1902 = vcmp.le.f32.partialorder %v1901, 0.7853982
        %vm1903 = vcmp.lt.s32.totalorder %v802, 0
        %v1904 = vand.u32 %v802, 2139095040
        %v1905 = vshrl.u32 %v1904, 23
        %v1906 = vsub.s32 %v1905, 127
        %v1907 = vand.u32 2147483647, %v802
        %v1908 = vand.u32 %v1907, 8388607
        %v1909 = vor.u32 %v1908, 8388608
        %v1910 = vsub.s32 0, %v1909
        %v1911 = vadd.s32 %v1906, 1
        %vm1912 = vcmp.gt.s32.totalorder %v1911, 0
        %v1913 = vsel %vm1912, %v1911, 0
        %v1914 = vshrl.u32 %v1913, 5
        %v1915 = vand.u32 %v1913, 31
        %v1916 = vsub.s32 32, %v1915
        %v1917 = vshrl.u32 683565275, %v1916
        %v1918 = vshll.u32 683565275, %v1915
        %v1919 = vshrl.u32 2475754826, %v1916
        %v1920 = vor.u32 %v1918, %v1919
        %v1921 = vshll.u32 2475754826, %v1915
        %v1922 = vshrl.u32 2131351028, %v1916
        %v1923 = vor.u32 %v1921, %v1922
        %v1924 = vshll.u32 2131351028, %v1915
        %v1925 = vshrl.u32 2102212464, %v1916
        %v1926 = vor.u32 %v1924, %v1925
        %v1927 = vshll.u32 2102212464, %v1915
        %v1928 = vshrl.u32 920167782, %v1916
        %v1929 = vor.u32 %v1927, %v1928
        %v1930 = vshll.u32 920167782, %v1915
        %v1931 = vshrl.u32 1326507024, %v1916
        %v1932 = vor.u32 %v1930, %v1931
        %vm1933 = vcmp.lt.s32.totalorder %v1914, 1
        %vm1934 = vcmp.lt.s32.totalorder %v1914, 2
        %vm1935 = vcmp.lt.s32.totalorder %v1914, 3
        %vm1936 = vcmp.lt.s32.totalorder %v1914, 4
        %v1937 = vsel %vm1933, %v1917, %v1920
        %v1938 = vsel %vm1936, %v1926, 2102212464
        %v1939 = vsel %vm1935, %v1923, %v1938
        %v1940 = vsel %vm1934, %v1937, %v1939
        %v1941 = vsel %vm1933, %v1920, %v1923
        %v1942 = vsel %vm1936, %v1929, 920167782
        %v1943 = vsel %vm1935, %v1926, %v1942
        %v1944 = vsel %vm1934, %v1941, %v1943
        %v1945 = vsel %vm1933, %v1923, %v1926
        %v1946 = vsel %vm1936, %v1932, 1326507024
        %v1947 = vsel %vm1935, %v1929, %v1946
        %v1948 = vsel %vm1934, %v1945, %v1947
        %v1949 = vshll.u32 %v1909, 8
        %v1950 = vmul.u32.u64.compose %v1949, %v1948
        %v1951 = vextract.low.u32 %v1950
        %v1952 = vextract.high.u32 %v1950
        %v1953 = vmul.u32.u64.compose %v1949, %v1944
        %v1954 = vextract.low.u32 %v1953
        %v1955 = vextract.high.u32 %v1953
        %v1956 = vmul.u32 %v1949, %v1940
        %v1957 = vadd.s32 %v1952, %v1954
        %vm1958 = vc.u32 %v1952, %v1954
        %v1959 = vadd.s32 %v1955, 1
        %v1960 = vsel %vm1958, %v1959, %v1955
        %v1961 = vadd.s32 %v1956, %v1960
        %v1962 = vadd.s32 %v1961, 536870912
        %v1963 = vshrl.u32 %v1962, 30
        %v1964 = vshll.u32 %v1963, 30
        %v1965 = vsub.s32 %v1961, %v1964
        %vm1966 = vcmp.lt.s32.totalorder %v1965, 0
        %v1967 = vsub.s32 0, %v1965
        %v1968 = vsel %vm1966, %v1967, %v1965
        %v1969 = vclz %v1968
        %v1970 = vsub.s32 %v1969, 2
        %vm1971 = vcmp.gt.s32.totalorder 0, %v1970
        %v1972 = vsel %vm1971, 0, %v1970
        %v1973 = vsub.s32 32, %v1972
        %v1974 = vshll.u32 %v1965, %v1972
        %v1975 = vshrl.u32 %v1957, %v1973
        %v1976 = vor.u32 %v1974, %v1975
        %v1977 = vsub.s32 4294967266, %v1972
        %v1978 = vadd.s32 %v1977, 127
        %v1979 = vshll.u32 %v1978, 23
        %v1980 = vor.u32 4788187, %v1979
        %v1981 = vand.u32 2147483647, %v1980
        %v1983 = vcvt.s32.f32 %v1976
        %v1984 = vmul.f32 %v1983, %v1981
        %v1985 = vxor.u32 %v1984, 2147483648
        %v1986 = vsel %vm1903, %v1985, %v1984
        %v1987 = vsub.s32 4, %v1963
        %v1988 = vsel %vm1903, %v1987, %v1963
        %v1989 = vsel %vm1902, %v802, %v1986
        %v1990 = vsel %vm1902, 0, %v1988
        %v1991 = vcosq.f32.pop %v1989
        %v1992 = vsinq.f32.pop %v1989
        %vm1993 = vweird.f32 %v802
        %v1994 = vadd.s32 %v1990, 3
        %v1995 = vand.u32 %v1994, 3
        %vm1996 = vcmp.lt.s32.totalorder %v1995, 2
        %vm1997 = vcmp.eq.s32.totalorder %v1995, 0
        %v1998 = vxor.u32 %v1992, 2147483648
        %v1999 = vsel %vm1997, %v1991, %v1998
        %vm2000 = vcmp.eq.s32.totalorder %v1995, 2
        %v2001 = vxor.u32 %v1991, 2147483648
        %v2002 = vsel %vm2000, %v2001, %v1992
        %v2003 = vsel %vm1996, %v1999, %v2002
        %v2004 = vsel %vm1993, nan, %v2003
        %v2005 = vand.u32 2147483647, %v803
        %vm2006 = vcmp.le.f32.partialorder %v2005, 0.7853982
        %vm2007 = vcmp.lt.s32.totalorder %v803, 0
        %v2008 = vand.u32 %v803, 2139095040
        %v2009 = vshrl.u32 %v2008, 23
        %v2010 = vsub.s32 %v2009, 127
        %v2011 = vand.u32 2147483647, %v803
        %v2012 = vand.u32 %v2011, 8388607
        %v2013 = vor.u32 %v2012, 8388608
        %v2014 = vsub.s32 0, %v2013
        %v2015 = vadd.s32 %v2010, 1
        %vm2016 = vcmp.gt.s32.totalorder %v2015, 0
        %v2017 = vsel %vm2016, %v2015, 0
        %v2018 = vshrl.u32 %v2017, 5
        %v2019 = vand.u32 %v2017, 31
        %v2020 = vsub.s32 32, %v2019
        %v2021 = vshrl.u32 683565275, %v2020
        %v2022 = vshll.u32 683565275, %v2019
        %v2023 = vshrl.u32 2475754826, %v2020
        %v2024 = vor.u32 %v2022, %v2023
        %v2025 = vshll.u32 2475754826, %v2019
        %v2026 = vshrl.u32 2131351028, %v2020
        %v2027 = vor.u32 %v2025, %v2026
        %v2028 = vshll.u32 2131351028, %v2019
        %v2029 = vshrl.u32 2102212464, %v2020
        %v2030 = vor.u32 %v2028, %v2029
        %v2031 = vshll.u32 2102212464, %v2019
        %v2032 = vshrl.u32 920167782, %v2020
        %v2033 = vor.u32 %v2031, %v2032
        %v2034 = vshll.u32 920167782, %v2019
        %v2035 = vshrl.u32 1326507024, %v2020
        %v2036 = vor.u32 %v2034, %v2035
        %vm2037 = vcmp.lt.s32.totalorder %v2018, 1
        %vm2038 = vcmp.lt.s32.totalorder %v2018, 2
        %vm2039 = vcmp.lt.s32.totalorder %v2018, 3
        %vm2040 = vcmp.lt.s32.totalorder %v2018, 4
        %v2041 = vsel %vm2037, %v2021, %v2024
        %v2042 = vsel %vm2040, %v2030, 2102212464
        %v2043 = vsel %vm2039, %v2027, %v2042
        %v2044 = vsel %vm2038, %v2041, %v2043
        %v2045 = vsel %vm2037, %v2024, %v2027
        %v2046 = vsel %vm2040, %v2033, 920167782
        %v2047 = vsel %vm2039, %v2030, %v2046
        %v2048 = vsel %vm2038, %v2045, %v2047
        %v2049 = vsel %vm2037, %v2027, %v2030
        %v2050 = vsel %vm2040, %v2036, 1326507024
        %v2051 = vsel %vm2039, %v2033, %v2050
        %v2052 = vsel %vm2038, %v2049, %v2051
        %v2053 = vshll.u32 %v2013, 8
        %v2054 = vmul.u32.u64.compose %v2053, %v2052
        %v2055 = vextract.low.u32 %v2054
        %v2056 = vextract.high.u32 %v2054
        %v2057 = vmul.u32.u64.compose %v2053, %v2048
        %v2058 = vextract.low.u32 %v2057
        %v2059 = vextract.high.u32 %v2057
        %v2060 = vmul.u32 %v2053, %v2044
        %v2061 = vadd.s32 %v2056, %v2058
        %vm2062 = vc.u32 %v2056, %v2058
        %v2063 = vadd.s32 %v2059, 1
        %v2064 = vsel %vm2062, %v2063, %v2059
        %v2065 = vadd.s32 %v2060, %v2064
        %v2066 = vadd.s32 %v2065, 536870912
        %v2067 = vshrl.u32 %v2066, 30
        %v2068 = vshll.u32 %v2067, 30
        %v2069 = vsub.s32 %v2065, %v2068
        %vm2070 = vcmp.lt.s32.totalorder %v2069, 0
        %v2071 = vsub.s32 0, %v2069
        %v2072 = vsel %vm2070, %v2071, %v2069
        %v2073 = vclz %v2072
        %v2074 = vsub.s32 %v2073, 2
        %vm2075 = vcmp.gt.s32.totalorder 0, %v2074
        %v2076 = vsel %vm2075, 0, %v2074
        %v2077 = vsub.s32 32, %v2076
        %v2078 = vshll.u32 %v2069, %v2076
        %v2079 = vshrl.u32 %v2061, %v2077
        %v2080 = vor.u32 %v2078, %v2079
        %v2081 = vsub.s32 4294967266, %v2076
        %v2082 = vadd.s32 %v2081, 127
        %v2083 = vshll.u32 %v2082, 23
        %v2084 = vor.u32 4788187, %v2083
        %v2085 = vand.u32 2147483647, %v2084
        %v2087 = vcvt.s32.f32 %v2080
        %v2088 = vmul.f32 %v2087, %v2085
        %v2089 = vxor.u32 %v2088, 2147483648
        %v2090 = vsel %vm2007, %v2089, %v2088
        %v2091 = vsub.s32 4, %v2067
        %v2092 = vsel %vm2007, %v2091, %v2067
        %v2093 = vsel %vm2006, %v803, %v2090
        %v2094 = vsel %vm2006, 0, %v2092
        %v2095 = vcosq.f32.pop %v2093
        %v2096 = vsinq.f32.pop %v2093
        %vm2097 = vweird.f32 %v803
        %v2098 = vadd.s32 %v2094, 3
        %v2099 = vand.u32 %v2098, 3
        %vm2100 = vcmp.lt.s32.totalorder %v2099, 2
        %vm2101 = vcmp.eq.s32.totalorder %v2099, 0
        %v2102 = vxor.u32 %v2096, 2147483648
        %v2103 = vsel %vm2101, %v2095, %v2102
        %vm2104 = vcmp.eq.s32.totalorder %v2099, 2
        %v2105 = vxor.u32 %v2095, 2147483648
        %v2106 = vsel %vm2104, %v2105, %v2096
        %v2107 = vsel %vm2100, %v2103, %v2106
        %v2108 = vsel %vm2097, nan, %v2107
        %v2109 = vand.u32 2147483647, %v804
        %vm2110 = vcmp.le.f32.partialorder %v2109, 0.7853982
        %vm2111 = vcmp.lt.s32.totalorder %v804, 0
        %v2112 = vand.u32 %v804, 2139095040
        %v2113 = vshrl.u32 %v2112, 23
        %v2114 = vsub.s32 %v2113, 127
        %v2115 = vand.u32 2147483647, %v804
        %v2116 = vand.u32 %v2115, 8388607
        %v2117 = vor.u32 %v2116, 8388608
        %v2118 = vsub.s32 0, %v2117
        %v2119 = vadd.s32 %v2114, 1
        %vm2120 = vcmp.gt.s32.totalorder %v2119, 0
        %v2121 = vsel %vm2120, %v2119, 0
        %v2122 = vshrl.u32 %v2121, 5
        %v2123 = vand.u32 %v2121, 31
        %v2124 = vsub.s32 32, %v2123
        %v2125 = vshrl.u32 683565275, %v2124
        %v2126 = vshll.u32 683565275, %v2123
        %v2127 = vshrl.u32 2475754826, %v2124
        %v2128 = vor.u32 %v2126, %v2127
        %v2129 = vshll.u32 2475754826, %v2123
        %v2130 = vshrl.u32 2131351028, %v2124
        %v2131 = vor.u32 %v2129, %v2130
        %v2132 = vshll.u32 2131351028, %v2123
        %v2133 = vshrl.u32 2102212464, %v2124
        %v2134 = vor.u32 %v2132, %v2133
        %v2135 = vshll.u32 2102212464, %v2123
        %v2136 = vshrl.u32 920167782, %v2124
        %v2137 = vor.u32 %v2135, %v2136
        %v2138 = vshll.u32 920167782, %v2123
        %v2139 = vshrl.u32 1326507024, %v2124
        %v2140 = vor.u32 %v2138, %v2139
        %vm2141 = vcmp.lt.s32.totalorder %v2122, 1
        %vm2142 = vcmp.lt.s32.totalorder %v2122, 2
        %vm2143 = vcmp.lt.s32.totalorder %v2122, 3
        %vm2144 = vcmp.lt.s32.totalorder %v2122, 4
        %v2145 = vsel %vm2141, %v2125, %v2128
        %v2146 = vsel %vm2144, %v2134, 2102212464
        %v2147 = vsel %vm2143, %v2131, %v2146
        %v2148 = vsel %vm2142, %v2145, %v2147
        %v2149 = vsel %vm2141, %v2128, %v2131
        %v2150 = vsel %vm2144, %v2137, 920167782
        %v2151 = vsel %vm2143, %v2134, %v2150
        %v2152 = vsel %vm2142, %v2149, %v2151
        %v2153 = vsel %vm2141, %v2131, %v2134
        %v2154 = vsel %vm2144, %v2140, 1326507024
        %v2155 = vsel %vm2143, %v2137, %v2154
        %v2156 = vsel %vm2142, %v2153, %v2155
        %v2157 = vshll.u32 %v2117, 8
        %v2158 = vmul.u32.u64.compose %v2157, %v2156
        %v2159 = vextract.low.u32 %v2158
        %v2160 = vextract.high.u32 %v2158
        %v2161 = vmul.u32.u64.compose %v2157, %v2152
        %v2162 = vextract.low.u32 %v2161
        %v2163 = vextract.high.u32 %v2161
        %v2164 = vmul.u32 %v2157, %v2148
        %v2165 = vadd.s32 %v2160, %v2162
        %vm2166 = vc.u32 %v2160, %v2162
        %v2167 = vadd.s32 %v2163, 1
        %v2168 = vsel %vm2166, %v2167, %v2163
        %v2169 = vadd.s32 %v2164, %v2168
        %v2170 = vadd.s32 %v2169, 536870912
        %v2171 = vshrl.u32 %v2170, 30
        %v2172 = vshll.u32 %v2171, 30
        %v2173 = vsub.s32 %v2169, %v2172
        %vm2174 = vcmp.lt.s32.totalorder %v2173, 0
        %v2175 = vsub.s32 0, %v2173
        %v2176 = vsel %vm2174, %v2175, %v2173
        %v2177 = vclz %v2176
        %v2178 = vsub.s32 %v2177, 2
        %vm2179 = vcmp.gt.s32.totalorder 0, %v2178
        %v2180 = vsel %vm2179, 0, %v2178
        %v2181 = vsub.s32 32, %v2180
        %v2182 = vshll.u32 %v2173, %v2180
        %v2183 = vshrl.u32 %v2165, %v2181
        %v2184 = vor.u32 %v2182, %v2183
        %v2185 = vsub.s32 4294967266, %v2180
        %v2186 = vadd.s32 %v2185, 127
        %v2187 = vshll.u32 %v2186, 23
        %v2188 = vor.u32 4788187, %v2187
        %v2189 = vand.u32 2147483647, %v2188
        %v2191 = vcvt.s32.f32 %v2184
        %v2192 = vmul.f32 %v2191, %v2189
        %v2193 = vxor.u32 %v2192, 2147483648
        %v2194 = vsel %vm2111, %v2193, %v2192
        %v2195 = vsub.s32 4, %v2171
        %v2196 = vsel %vm2111, %v2195, %v2171
        %v2197 = vsel %vm2110, %v804, %v2194
        %v2198 = vsel %vm2110, 0, %v2196
        %v2199 = vcosq.f32.pop %v2197
        %v2200 = vsinq.f32.pop %v2197
        %vm2201 = vweird.f32 %v804
        %v2202 = vadd.s32 %v2198, 3
        %v2203 = vand.u32 %v2202, 3
        %vm2204 = vcmp.lt.s32.totalorder %v2203, 2
        %vm2205 = vcmp.eq.s32.totalorder %v2203, 0
        %v2206 = vxor.u32 %v2200, 2147483648
        %v2207 = vsel %vm2205, %v2199, %v2206
        %vm2208 = vcmp.eq.s32.totalorder %v2203, 2
        %v2209 = vxor.u32 %v2199, 2147483648
        %v2210 = vsel %vm2208, %v2209, %v2200
        %v2211 = vsel %vm2204, %v2207, %v2210
        %v2212 = vsel %vm2201, nan, %v2211
        %v2213 = vand.u32 2147483647, %v805
        %vm2214 = vcmp.le.f32.partialorder %v2213, 0.7853982
        %vm2215 = vcmp.lt.s32.totalorder %v805, 0
        %v2216 = vand.u32 %v805, 2139095040
        %v2217 = vshrl.u32 %v2216, 23
        %v2218 = vsub.s32 %v2217, 127
        %v2219 = vand.u32 2147483647, %v805
        %v2220 = vand.u32 %v2219, 8388607
        %v2221 = vor.u32 %v2220, 8388608
        %v2222 = vsub.s32 0, %v2221
        %v2223 = vadd.s32 %v2218, 1
        %vm2224 = vcmp.gt.s32.totalorder %v2223, 0
        %v2225 = vsel %vm2224, %v2223, 0
        %v2226 = vshrl.u32 %v2225, 5
        %v2227 = vand.u32 %v2225, 31
        %v2228 = vsub.s32 32, %v2227
        %v2229 = vshrl.u32 683565275, %v2228
        %v2230 = vshll.u32 683565275, %v2227
        %v2231 = vshrl.u32 2475754826, %v2228
        %v2232 = vor.u32 %v2230, %v2231
        %v2233 = vshll.u32 2475754826, %v2227
        %v2234 = vshrl.u32 2131351028, %v2228
        %v2235 = vor.u32 %v2233, %v2234
        %v2236 = vshll.u32 2131351028, %v2227
        %v2237 = vshrl.u32 2102212464, %v2228
        %v2238 = vor.u32 %v2236, %v2237
        %v2239 = vshll.u32 2102212464, %v2227
        %v2240 = vshrl.u32 920167782, %v2228
        %v2241 = vor.u32 %v2239, %v2240
        %v2242 = vshll.u32 920167782, %v2227
        %v2243 = vshrl.u32 1326507024, %v2228
        %v2244 = vor.u32 %v2242, %v2243
        %vm2245 = vcmp.lt.s32.totalorder %v2226, 1
        %vm2246 = vcmp.lt.s32.totalorder %v2226, 2
        %vm2247 = vcmp.lt.s32.totalorder %v2226, 3
        %vm2248 = vcmp.lt.s32.totalorder %v2226, 4
        %v2249 = vsel %vm2245, %v2229, %v2232
        %v2250 = vsel %vm2248, %v2238, 2102212464
        %v2251 = vsel %vm2247, %v2235, %v2250
        %v2252 = vsel %vm2246, %v2249, %v2251
        %v2253 = vsel %vm2245, %v2232, %v2235
        %v2254 = vsel %vm2248, %v2241, 920167782
        %v2255 = vsel %vm2247, %v2238, %v2254
        %v2256 = vsel %vm2246, %v2253, %v2255
        %v2257 = vsel %vm2245, %v2235, %v2238
        %v2258 = vsel %vm2248, %v2244, 1326507024
        %v2259 = vsel %vm2247, %v2241, %v2258
        %v2260 = vsel %vm2246, %v2257, %v2259
        %v2261 = vshll.u32 %v2221, 8
        %v2262 = vmul.u32.u64.compose %v2261, %v2260
        %v2263 = vextract.low.u32 %v2262
        %v2264 = vextract.high.u32 %v2262
        %v2265 = vmul.u32.u64.compose %v2261, %v2256
        %v2266 = vextract.low.u32 %v2265
        %v2267 = vextract.high.u32 %v2265
        %v2268 = vmul.u32 %v2261, %v2252
        %v2269 = vadd.s32 %v2264, %v2266
        %vm2270 = vc.u32 %v2264, %v2266
        %v2271 = vadd.s32 %v2267, 1
        %v2272 = vsel %vm2270, %v2271, %v2267
        %v2273 = vadd.s32 %v2268, %v2272
        %v2274 = vadd.s32 %v2273, 536870912
        %v2275 = vshrl.u32 %v2274, 30
        %v2276 = vshll.u32 %v2275, 30
        %v2277 = vsub.s32 %v2273, %v2276
        %vm2278 = vcmp.lt.s32.totalorder %v2277, 0
        %v2279 = vsub.s32 0, %v2277
        %v2280 = vsel %vm2278, %v2279, %v2277
        %v2281 = vclz %v2280
        %v2282 = vsub.s32 %v2281, 2
        %vm2283 = vcmp.gt.s32.totalorder 0, %v2282
        %v2284 = vsel %vm2283, 0, %v2282
        %v2285 = vsub.s32 32, %v2284
        %v2286 = vshll.u32 %v2277, %v2284
        %v2287 = vshrl.u32 %v2269, %v2285
        %v2288 = vor.u32 %v2286, %v2287
        %v2289 = vsub.s32 4294967266, %v2284
        %v2290 = vadd.s32 %v2289, 127
        %v2291 = vshll.u32 %v2290, 23
        %v2292 = vor.u32 4788187, %v2291
        %v2293 = vand.u32 2147483647, %v2292
        %v2295 = vcvt.s32.f32 %v2288
        %v2296 = vmul.f32 %v2295, %v2293
        %v2297 = vxor.u32 %v2296, 2147483648
        %v2298 = vsel %vm2215, %v2297, %v2296
        %v2299 = vsub.s32 4, %v2275
        %v2300 = vsel %vm2215, %v2299, %v2275
        %v2301 = vsel %vm2214, %v805, %v2298
        %v2302 = vsel %vm2214, 0, %v2300
        %v2303 = vcosq.f32.pop %v2301
        %v2304 = vsinq.f32.pop %v2301
        %vm2305 = vweird.f32 %v805
        %v2306 = vadd.s32 %v2302, 3
        %v2307 = vand.u32 %v2306, 3
        %vm2308 = vcmp.lt.s32.totalorder %v2307, 2
        %vm2309 = vcmp.eq.s32.totalorder %v2307, 0
        %v2310 = vxor.u32 %v2304, 2147483648
        %v2311 = vsel %vm2309, %v2303, %v2310
        %vm2312 = vcmp.eq.s32.totalorder %v2307, 2
        %v2313 = vxor.u32 %v2303, 2147483648
        %v2314 = vsel %vm2312, %v2313, %v2304
        %v2315 = vsel %vm2308, %v2311, %v2314
        %v2316 = vsel %vm2305, nan, %v2315
        %v2317 = vand.u32 2147483647, %v806
        %vm2318 = vcmp.le.f32.partialorder %v2317, 0.7853982
        %vm2319 = vcmp.lt.s32.totalorder %v806, 0
        %v2320 = vand.u32 %v806, 2139095040
        %v2321 = vshrl.u32 %v2320, 23
        %v2322 = vsub.s32 %v2321, 127
        %v2323 = vand.u32 2147483647, %v806
        %v2324 = vand.u32 %v2323, 8388607
        %v2325 = vor.u32 %v2324, 8388608
        %v2326 = vsub.s32 0, %v2325
        %v2327 = vadd.s32 %v2322, 1
        %vm2328 = vcmp.gt.s32.totalorder %v2327, 0
        %v2329 = vsel %vm2328, %v2327, 0
        %v2330 = vshrl.u32 %v2329, 5
        %v2331 = vand.u32 %v2329, 31
        %v2332 = vsub.s32 32, %v2331
        %v2333 = vshrl.u32 683565275, %v2332
        %v2334 = vshll.u32 683565275, %v2331
        %v2335 = vshrl.u32 2475754826, %v2332
        %v2336 = vor.u32 %v2334, %v2335
        %v2337 = vshll.u32 2475754826, %v2331
        %v2338 = vshrl.u32 2131351028, %v2332
        %v2339 = vor.u32 %v2337, %v2338
        %v2340 = vshll.u32 2131351028, %v2331
        %v2341 = vshrl.u32 2102212464, %v2332
        %v2342 = vor.u32 %v2340, %v2341
        %v2343 = vshll.u32 2102212464, %v2331
        %v2344 = vshrl.u32 920167782, %v2332
        %v2345 = vor.u32 %v2343, %v2344
        %v2346 = vshll.u32 920167782, %v2331
        %v2347 = vshrl.u32 1326507024, %v2332
        %v2348 = vor.u32 %v2346, %v2347
        %vm2349 = vcmp.lt.s32.totalorder %v2330, 1
        %vm2350 = vcmp.lt.s32.totalorder %v2330, 2
        %vm2351 = vcmp.lt.s32.totalorder %v2330, 3
        %vm2352 = vcmp.lt.s32.totalorder %v2330, 4
        %v2353 = vsel %vm2349, %v2333, %v2336
        %v2354 = vsel %vm2352, %v2342, 2102212464
        %v2355 = vsel %vm2351, %v2339, %v2354
        %v2356 = vsel %vm2350, %v2353, %v2355
        %v2357 = vsel %vm2349, %v2336, %v2339
        %v2358 = vsel %vm2352, %v2345, 920167782
        %v2359 = vsel %vm2351, %v2342, %v2358
        %v2360 = vsel %vm2350, %v2357, %v2359
        %v2361 = vsel %vm2349, %v2339, %v2342
        %v2362 = vsel %vm2352, %v2348, 1326507024
        %v2363 = vsel %vm2351, %v2345, %v2362
        %v2364 = vsel %vm2350, %v2361, %v2363
        %v2365 = vshll.u32 %v2325, 8
        %v2366 = vmul.u32.u64.compose %v2365, %v2364
        %v2367 = vextract.low.u32 %v2366
        %v2368 = vextract.high.u32 %v2366
        %v2369 = vmul.u32.u64.compose %v2365, %v2360
        %v2370 = vextract.low.u32 %v2369
        %v2371 = vextract.high.u32 %v2369
        %v2372 = vmul.u32 %v2365, %v2356
        %v2373 = vadd.s32 %v2368, %v2370
        %vm2374 = vc.u32 %v2368, %v2370
        %v2375 = vadd.s32 %v2371, 1
        %v2376 = vsel %vm2374, %v2375, %v2371
        %v2377 = vadd.s32 %v2372, %v2376
        %v2378 = vadd.s32 %v2377, 536870912
        %v2379 = vshrl.u32 %v2378, 30
        %v2380 = vshll.u32 %v2379, 30
        %v2381 = vsub.s32 %v2377, %v2380
        %vm2382 = vcmp.lt.s32.totalorder %v2381, 0
        %v2383 = vsub.s32 0, %v2381
        %v2384 = vsel %vm2382, %v2383, %v2381
        %v2385 = vclz %v2384
        %v2386 = vsub.s32 %v2385, 2
        %vm2387 = vcmp.gt.s32.totalorder 0, %v2386
        %v2388 = vsel %vm2387, 0, %v2386
        %v2389 = vsub.s32 32, %v2388
        %v2390 = vshll.u32 %v2381, %v2388
        %v2391 = vshrl.u32 %v2373, %v2389
        %v2392 = vor.u32 %v2390, %v2391
        %v2393 = vsub.s32 4294967266, %v2388
        %v2394 = vadd.s32 %v2393, 127
        %v2395 = vshll.u32 %v2394, 23
        %v2396 = vor.u32 4788187, %v2395
        %v2397 = vand.u32 2147483647, %v2396
        %v2399 = vcvt.s32.f32 %v2392
        %v2400 = vmul.f32 %v2399, %v2397
        %v2401 = vxor.u32 %v2400, 2147483648
        %v2402 = vsel %vm2319, %v2401, %v2400
        %v2403 = vsub.s32 4, %v2379
        %v2404 = vsel %vm2319, %v2403, %v2379
        %v2405 = vsel %vm2318, %v806, %v2402
        %v2406 = vsel %vm2318, 0, %v2404
        %v2407 = vcosq.f32.pop %v2405
        %v2408 = vsinq.f32.pop %v2405
        %vm2409 = vweird.f32 %v806
        %v2410 = vadd.s32 %v2406, 3
        %v2411 = vand.u32 %v2410, 3
        %vm2412 = vcmp.lt.s32.totalorder %v2411, 2
        %vm2413 = vcmp.eq.s32.totalorder %v2411, 0
        %v2414 = vxor.u32 %v2408, 2147483648
        %v2415 = vsel %vm2413, %v2407, %v2414
        %vm2416 = vcmp.eq.s32.totalorder %v2411, 2
        %v2417 = vxor.u32 %v2407, 2147483648
        %v2418 = vsel %vm2416, %v2417, %v2408
        %v2419 = vsel %vm2412, %v2415, %v2418
        %v2420 = vsel %vm2409, nan, %v2419
        %v2421 = vand.u32 2147483647, %v807
        %vm2422 = vcmp.le.f32.partialorder %v2421, 0.7853982
        %vm2423 = vcmp.lt.s32.totalorder %v807, 0
        %v2424 = vand.u32 %v807, 2139095040
        %v2425 = vshrl.u32 %v2424, 23
        %v2426 = vsub.s32 %v2425, 127
        %v2427 = vand.u32 2147483647, %v807
        %v2428 = vand.u32 %v2427, 8388607
        %v2429 = vor.u32 %v2428, 8388608
        %v2430 = vsub.s32 0, %v2429
        %v2431 = vadd.s32 %v2426, 1
        %vm2432 = vcmp.gt.s32.totalorder %v2431, 0
        %v2433 = vsel %vm2432, %v2431, 0
        %v2434 = vshrl.u32 %v2433, 5
        %v2435 = vand.u32 %v2433, 31
        %v2436 = vsub.s32 32, %v2435
        %v2437 = vshrl.u32 683565275, %v2436
        %v2438 = vshll.u32 683565275, %v2435
        %v2439 = vshrl.u32 2475754826, %v2436
        %v2440 = vor.u32 %v2438, %v2439
        %v2441 = vshll.u32 2475754826, %v2435
        %v2442 = vshrl.u32 2131351028, %v2436
        %v2443 = vor.u32 %v2441, %v2442
        %v2444 = vshll.u32 2131351028, %v2435
        %v2445 = vshrl.u32 2102212464, %v2436
        %v2446 = vor.u32 %v2444, %v2445
        %v2447 = vshll.u32 2102212464, %v2435
        %v2448 = vshrl.u32 920167782, %v2436
        %v2449 = vor.u32 %v2447, %v2448
        %v2450 = vshll.u32 920167782, %v2435
        %v2451 = vshrl.u32 1326507024, %v2436
        %v2452 = vor.u32 %v2450, %v2451
        %vm2453 = vcmp.lt.s32.totalorder %v2434, 1
        %vm2454 = vcmp.lt.s32.totalorder %v2434, 2
        %vm2455 = vcmp.lt.s32.totalorder %v2434, 3
        %vm2456 = vcmp.lt.s32.totalorder %v2434, 4
        %v2457 = vsel %vm2453, %v2437, %v2440
        %v2458 = vsel %vm2456, %v2446, 2102212464
        %v2459 = vsel %vm2455, %v2443, %v2458
        %v2460 = vsel %vm2454, %v2457, %v2459
        %v2461 = vsel %vm2453, %v2440, %v2443
        %v2462 = vsel %vm2456, %v2449, 920167782
        %v2463 = vsel %vm2455, %v2446, %v2462
        %v2464 = vsel %vm2454, %v2461, %v2463
        %v2465 = vsel %vm2453, %v2443, %v2446
        %v2466 = vsel %vm2456, %v2452, 1326507024
        %v2467 = vsel %vm2455, %v2449, %v2466
        %v2468 = vsel %vm2454, %v2465, %v2467
        %v2469 = vshll.u32 %v2429, 8
        %v2470 = vmul.u32.u64.compose %v2469, %v2468
        %v2471 = vextract.low.u32 %v2470
        %v2472 = vextract.high.u32 %v2470
        %v2473 = vmul.u32.u64.compose %v2469, %v2464
        %v2474 = vextract.low.u32 %v2473
        %v2475 = vextract.high.u32 %v2473
        %v2476 = vmul.u32 %v2469, %v2460
        %v2477 = vadd.s32 %v2472, %v2474
        %vm2478 = vc.u32 %v2472, %v2474
        %v2479 = vadd.s32 %v2475, 1
        %v2480 = vsel %vm2478, %v2479, %v2475
        %v2481 = vadd.s32 %v2476, %v2480
        %v2482 = vadd.s32 %v2481, 536870912
        %v2483 = vshrl.u32 %v2482, 30
        %v2484 = vshll.u32 %v2483, 30
        %v2485 = vsub.s32 %v2481, %v2484
        %vm2486 = vcmp.lt.s32.totalorder %v2485, 0
        %v2487 = vsub.s32 0, %v2485
        %v2488 = vsel %vm2486, %v2487, %v2485
        %v2489 = vclz %v2488
        %v2490 = vsub.s32 %v2489, 2
        %vm2491 = vcmp.gt.s32.totalorder 0, %v2490
        %v2492 = vsel %vm2491, 0, %v2490
        %v2493 = vsub.s32 32, %v2492
        %v2494 = vshll.u32 %v2485, %v2492
        %v2495 = vshrl.u32 %v2477, %v2493
        %v2496 = vor.u32 %v2494, %v2495
        %v2497 = vsub.s32 4294967266, %v2492
        %v2498 = vadd.s32 %v2497, 127
        %v2499 = vshll.u32 %v2498, 23
        %v2500 = vor.u32 4788187, %v2499
        %v2501 = vand.u32 2147483647, %v2500
        %v2503 = vcvt.s32.f32 %v2496
        %v2504 = vmul.f32 %v2503, %v2501
        %v2505 = vxor.u32 %v2504, 2147483648
        %v2506 = vsel %vm2423, %v2505, %v2504
        %v2507 = vsub.s32 4, %v2483
        %v2508 = vsel %vm2423, %v2507, %v2483
        %v2509 = vsel %vm2422, %v807, %v2506
        %v2510 = vsel %vm2422, 0, %v2508
        %v2511 = vcosq.f32.pop %v2509
        %v2512 = vsinq.f32.pop %v2509
        %vm2513 = vweird.f32 %v807
        %v2514 = vadd.s32 %v2510, 3
        %v2515 = vand.u32 %v2514, 3
        %vm2516 = vcmp.lt.s32.totalorder %v2515, 2
        %vm2517 = vcmp.eq.s32.totalorder %v2515, 0
        %v2518 = vxor.u32 %v2512, 2147483648
        %v2519 = vsel %vm2517, %v2511, %v2518
        %vm2520 = vcmp.eq.s32.totalorder %v2515, 2
        %v2521 = vxor.u32 %v2511, 2147483648
        %v2522 = vsel %vm2520, %v2521, %v2512
        %v2523 = vsel %vm2516, %v2519, %v2522
        %v2524 = vsel %vm2513, nan, %v2523
        %v2525 = vand.u32 2147483647, %v808
        %vm2526 = vcmp.le.f32.partialorder %v2525, 0.7853982
        %vm2527 = vcmp.lt.s32.totalorder %v808, 0
        %v2528 = vand.u32 %v808, 2139095040
        %v2529 = vshrl.u32 %v2528, 23
        %v2530 = vsub.s32 %v2529, 127
        %v2531 = vand.u32 2147483647, %v808
        %v2532 = vand.u32 %v2531, 8388607
        %v2533 = vor.u32 %v2532, 8388608
        %v2534 = vsub.s32 0, %v2533
        %v2535 = vadd.s32 %v2530, 1
        %vm2536 = vcmp.gt.s32.totalorder %v2535, 0
        %v2537 = vsel %vm2536, %v2535, 0
        %v2538 = vshrl.u32 %v2537, 5
        %v2539 = vand.u32 %v2537, 31
        %v2540 = vsub.s32 32, %v2539
        %v2541 = vshrl.u32 683565275, %v2540
        %v2542 = vshll.u32 683565275, %v2539
        %v2543 = vshrl.u32 2475754826, %v2540
        %v2544 = vor.u32 %v2542, %v2543
        %v2545 = vshll.u32 2475754826, %v2539
        %v2546 = vshrl.u32 2131351028, %v2540
        %v2547 = vor.u32 %v2545, %v2546
        %v2548 = vshll.u32 2131351028, %v2539
        %v2549 = vshrl.u32 2102212464, %v2540
        %v2550 = vor.u32 %v2548, %v2549
        %v2551 = vshll.u32 2102212464, %v2539
        %v2552 = vshrl.u32 920167782, %v2540
        %v2553 = vor.u32 %v2551, %v2552
        %v2554 = vshll.u32 920167782, %v2539
        %v2555 = vshrl.u32 1326507024, %v2540
        %v2556 = vor.u32 %v2554, %v2555
        %vm2557 = vcmp.lt.s32.totalorder %v2538, 1
        %vm2558 = vcmp.lt.s32.totalorder %v2538, 2
        %vm2559 = vcmp.lt.s32.totalorder %v2538, 3
        %vm2560 = vcmp.lt.s32.totalorder %v2538, 4
        %v2561 = vsel %vm2557, %v2541, %v2544
        %v2562 = vsel %vm2560, %v2550, 2102212464
        %v2563 = vsel %vm2559, %v2547, %v2562
        %v2564 = vsel %vm2558, %v2561, %v2563
        %v2565 = vsel %vm2557, %v2544, %v2547
        %v2566 = vsel %vm2560, %v2553, 920167782
        %v2567 = vsel %vm2559, %v2550, %v2566
        %v2568 = vsel %vm2558, %v2565, %v2567
        %v2569 = vsel %vm2557, %v2547, %v2550
        %v2570 = vsel %vm2560, %v2556, 1326507024
        %v2571 = vsel %vm2559, %v2553, %v2570
        %v2572 = vsel %vm2558, %v2569, %v2571
        %v2573 = vshll.u32 %v2533, 8
        %v2574 = vmul.u32.u64.compose %v2573, %v2572
        %v2575 = vextract.low.u32 %v2574
        %v2576 = vextract.high.u32 %v2574
        %v2577 = vmul.u32.u64.compose %v2573, %v2568
        %v2578 = vextract.low.u32 %v2577
        %v2579 = vextract.high.u32 %v2577
        %v2580 = vmul.u32 %v2573, %v2564
        %v2581 = vadd.s32 %v2576, %v2578
        %vm2582 = vc.u32 %v2576, %v2578
        %v2583 = vadd.s32 %v2579, 1
        %v2584 = vsel %vm2582, %v2583, %v2579
        %v2585 = vadd.s32 %v2580, %v2584
        %v2586 = vadd.s32 %v2585, 536870912
        %v2587 = vshrl.u32 %v2586, 30
        %v2588 = vshll.u32 %v2587, 30
        %v2589 = vsub.s32 %v2585, %v2588
        %vm2590 = vcmp.lt.s32.totalorder %v2589, 0
        %v2591 = vsub.s32 0, %v2589
        %v2592 = vsel %vm2590, %v2591, %v2589
        %v2593 = vclz %v2592
        %v2594 = vsub.s32 %v2593, 2
        %vm2595 = vcmp.gt.s32.totalorder 0, %v2594
        %v2596 = vsel %vm2595, 0, %v2594
        %v2597 = vsub.s32 32, %v2596
        %v2598 = vshll.u32 %v2589, %v2596
        %v2599 = vshrl.u32 %v2581, %v2597
        %v2600 = vor.u32 %v2598, %v2599
        %v2601 = vsub.s32 4294967266, %v2596
        %v2602 = vadd.s32 %v2601, 127
        %v2603 = vshll.u32 %v2602, 23
        %v2604 = vor.u32 4788187, %v2603
        %v2605 = vand.u32 2147483647, %v2604
        %v2607 = vcvt.s32.f32 %v2600
        %v2608 = vmul.f32 %v2607, %v2605
        %v2609 = vxor.u32 %v2608, 2147483648
        %v2610 = vsel %vm2527, %v2609, %v2608
        %v2611 = vsub.s32 4, %v2587
        %v2612 = vsel %vm2527, %v2611, %v2587
        %v2613 = vsel %vm2526, %v808, %v2610
        %v2614 = vsel %vm2526, 0, %v2612
        %v2615 = vcosq.f32.pop %v2613
        %v2616 = vsinq.f32.pop %v2613
        %vm2617 = vweird.f32 %v808
        %v2618 = vadd.s32 %v2614, 3
        %v2619 = vand.u32 %v2618, 3
        %vm2620 = vcmp.lt.s32.totalorder %v2619, 2
        %vm2621 = vcmp.eq.s32.totalorder %v2619, 0
        %v2622 = vxor.u32 %v2616, 2147483648
        %v2623 = vsel %vm2621, %v2615, %v2622
        %vm2624 = vcmp.eq.s32.totalorder %v2619, 2
        %v2625 = vxor.u32 %v2615, 2147483648
        %v2626 = vsel %vm2624, %v2625, %v2616
        %v2627 = vsel %vm2620, %v2623, %v2626
        %v2628 = vsel %vm2617, nan, %v2627
        %v2629 = vand.u32 2147483647, %v809
        %vm2630 = vcmp.le.f32.partialorder %v2629, 0.7853982
        %vm2631 = vcmp.lt.s32.totalorder %v809, 0
        %v2632 = vand.u32 %v809, 2139095040
        %v2633 = vshrl.u32 %v2632, 23
        %v2634 = vsub.s32 %v2633, 127
        %v2635 = vand.u32 2147483647, %v809
        %v2636 = vand.u32 %v2635, 8388607
        %v2637 = vor.u32 %v2636, 8388608
        %v2638 = vsub.s32 0, %v2637
        %v2639 = vadd.s32 %v2634, 1
        %vm2640 = vcmp.gt.s32.totalorder %v2639, 0
        %v2641 = vsel %vm2640, %v2639, 0
        %v2642 = vshrl.u32 %v2641, 5
        %v2643 = vand.u32 %v2641, 31
        %v2644 = vsub.s32 32, %v2643
        %v2645 = vshrl.u32 683565275, %v2644
        %v2646 = vshll.u32 683565275, %v2643
        %v2647 = vshrl.u32 2475754826, %v2644
        %v2648 = vor.u32 %v2646, %v2647
        %v2649 = vshll.u32 2475754826, %v2643
        %v2650 = vshrl.u32 2131351028, %v2644
        %v2651 = vor.u32 %v2649, %v2650
        %v2652 = vshll.u32 2131351028, %v2643
        %v2653 = vshrl.u32 2102212464, %v2644
        %v2654 = vor.u32 %v2652, %v2653
        %v2655 = vshll.u32 2102212464, %v2643
        %v2656 = vshrl.u32 920167782, %v2644
        %v2657 = vor.u32 %v2655, %v2656
        %v2658 = vshll.u32 920167782, %v2643
        %v2659 = vshrl.u32 1326507024, %v2644
        %v2660 = vor.u32 %v2658, %v2659
        %vm2661 = vcmp.lt.s32.totalorder %v2642, 1
        %vm2662 = vcmp.lt.s32.totalorder %v2642, 2
        %vm2663 = vcmp.lt.s32.totalorder %v2642, 3
        %vm2664 = vcmp.lt.s32.totalorder %v2642, 4
        %v2665 = vsel %vm2661, %v2645, %v2648
        %v2666 = vsel %vm2664, %v2654, 2102212464
        %v2667 = vsel %vm2663, %v2651, %v2666
        %v2668 = vsel %vm2662, %v2665, %v2667
        %v2669 = vsel %vm2661, %v2648, %v2651
        %v2670 = vsel %vm2664, %v2657, 920167782
        %v2671 = vsel %vm2663, %v2654, %v2670
        %v2672 = vsel %vm2662, %v2669, %v2671
        %v2673 = vsel %vm2661, %v2651, %v2654
        %v2674 = vsel %vm2664, %v2660, 1326507024
        %v2675 = vsel %vm2663, %v2657, %v2674
        %v2676 = vsel %vm2662, %v2673, %v2675
        %v2677 = vshll.u32 %v2637, 8
        %v2678 = vmul.u32.u64.compose %v2677, %v2676
        %v2679 = vextract.low.u32 %v2678
        %v2680 = vextract.high.u32 %v2678
        %v2681 = vmul.u32.u64.compose %v2677, %v2672
        %v2682 = vextract.low.u32 %v2681
        %v2683 = vextract.high.u32 %v2681
        %v2684 = vmul.u32 %v2677, %v2668
        %v2685 = vadd.s32 %v2680, %v2682
        %vm2686 = vc.u32 %v2680, %v2682
        %v2687 = vadd.s32 %v2683, 1
        %v2688 = vsel %vm2686, %v2687, %v2683
        %v2689 = vadd.s32 %v2684, %v2688
        %v2690 = vadd.s32 %v2689, 536870912
        %v2691 = vshrl.u32 %v2690, 30
        %v2692 = vshll.u32 %v2691, 30
        %v2693 = vsub.s32 %v2689, %v2692
        %vm2694 = vcmp.lt.s32.totalorder %v2693, 0
        %v2695 = vsub.s32 0, %v2693
        %v2696 = vsel %vm2694, %v2695, %v2693
        %v2697 = vclz %v2696
        %v2698 = vsub.s32 %v2697, 2
        %vm2699 = vcmp.gt.s32.totalorder 0, %v2698
        %v2700 = vsel %vm2699, 0, %v2698
        %v2701 = vsub.s32 32, %v2700
        %v2702 = vshll.u32 %v2693, %v2700
        %v2703 = vshrl.u32 %v2685, %v2701
        %v2704 = vor.u32 %v2702, %v2703
        %v2705 = vsub.s32 4294967266, %v2700
        %v2706 = vadd.s32 %v2705, 127
        %v2707 = vshll.u32 %v2706, 23
        %v2708 = vor.u32 4788187, %v2707
        %v2709 = vand.u32 2147483647, %v2708
        %v2711 = vcvt.s32.f32 %v2704
        %v2712 = vmul.f32 %v2711, %v2709
        %v2713 = vxor.u32 %v2712, 2147483648
        %v2714 = vsel %vm2631, %v2713, %v2712
        %v2715 = vsub.s32 4, %v2691
        %v2716 = vsel %vm2631, %v2715, %v2691
        %v2717 = vsel %vm2630, %v809, %v2714
        %v2718 = vsel %vm2630, 0, %v2716
        %v2719 = vcosq.f32.pop %v2717
        %v2720 = vsinq.f32.pop %v2717
        %vm2721 = vweird.f32 %v809
        %v2722 = vadd.s32 %v2718, 3
        %v2723 = vand.u32 %v2722, 3
        %vm2724 = vcmp.lt.s32.totalorder %v2723, 2
        %vm2725 = vcmp.eq.s32.totalorder %v2723, 0
        %v2726 = vxor.u32 %v2720, 2147483648
        %v2727 = vsel %vm2725, %v2719, %v2726
        %vm2728 = vcmp.eq.s32.totalorder %v2723, 2
        %v2729 = vxor.u32 %v2719, 2147483648
        %v2730 = vsel %vm2728, %v2729, %v2720
        %v2731 = vsel %vm2724, %v2727, %v2730
        %v2732 = vsel %vm2721, nan, %v2731
        %v2733 = vand.u32 2147483647, %v810
        %vm2734 = vcmp.le.f32.partialorder %v2733, 0.7853982
        %vm2735 = vcmp.lt.s32.totalorder %v810, 0
        %v2736 = vand.u32 %v810, 2139095040
        %v2737 = vshrl.u32 %v2736, 23
        %v2738 = vsub.s32 %v2737, 127
        %v2739 = vand.u32 2147483647, %v810
        %v2740 = vand.u32 %v2739, 8388607
        %v2741 = vor.u32 %v2740, 8388608
        %v2742 = vsub.s32 0, %v2741
        %v2743 = vadd.s32 %v2738, 1
        %vm2744 = vcmp.gt.s32.totalorder %v2743, 0
        %v2745 = vsel %vm2744, %v2743, 0
        %v2746 = vshrl.u32 %v2745, 5
        %v2747 = vand.u32 %v2745, 31
        %v2748 = vsub.s32 32, %v2747
        %v2749 = vshrl.u32 683565275, %v2748
        %v2750 = vshll.u32 683565275, %v2747
        %v2751 = vshrl.u32 2475754826, %v2748
        %v2752 = vor.u32 %v2750, %v2751
        %v2753 = vshll.u32 2475754826, %v2747
        %v2754 = vshrl.u32 2131351028, %v2748
        %v2755 = vor.u32 %v2753, %v2754
        %v2756 = vshll.u32 2131351028, %v2747
        %v2757 = vshrl.u32 2102212464, %v2748
        %v2758 = vor.u32 %v2756, %v2757
        %v2759 = vshll.u32 2102212464, %v2747
        %v2760 = vshrl.u32 920167782, %v2748
        %v2761 = vor.u32 %v2759, %v2760
        %v2762 = vshll.u32 920167782, %v2747
        %v2763 = vshrl.u32 1326507024, %v2748
        %v2764 = vor.u32 %v2762, %v2763
        %vm2765 = vcmp.lt.s32.totalorder %v2746, 1
        %vm2766 = vcmp.lt.s32.totalorder %v2746, 2
        %vm2767 = vcmp.lt.s32.totalorder %v2746, 3
        %vm2768 = vcmp.lt.s32.totalorder %v2746, 4
        %v2769 = vsel %vm2765, %v2749, %v2752
        %v2770 = vsel %vm2768, %v2758, 2102212464
        %v2771 = vsel %vm2767, %v2755, %v2770
        %v2772 = vsel %vm2766, %v2769, %v2771
        %v2773 = vsel %vm2765, %v2752, %v2755
        %v2774 = vsel %vm2768, %v2761, 920167782
        %v2775 = vsel %vm2767, %v2758, %v2774
        %v2776 = vsel %vm2766, %v2773, %v2775
        %v2777 = vsel %vm2765, %v2755, %v2758
        %v2778 = vsel %vm2768, %v2764, 1326507024
        %v2779 = vsel %vm2767, %v2761, %v2778
        %v2780 = vsel %vm2766, %v2777, %v2779
        %v2781 = vshll.u32 %v2741, 8
        %v2782 = vmul.u32.u64.compose %v2781, %v2780
        %v2783 = vextract.low.u32 %v2782
        %v2784 = vextract.high.u32 %v2782
        %v2785 = vmul.u32.u64.compose %v2781, %v2776
        %v2786 = vextract.low.u32 %v2785
        %v2787 = vextract.high.u32 %v2785
        %v2788 = vmul.u32 %v2781, %v2772
        %v2789 = vadd.s32 %v2784, %v2786
        %vm2790 = vc.u32 %v2784, %v2786
        %v2791 = vadd.s32 %v2787, 1
        %v2792 = vsel %vm2790, %v2791, %v2787
        %v2793 = vadd.s32 %v2788, %v2792
        %v2794 = vadd.s32 %v2793, 536870912
        %v2795 = vshrl.u32 %v2794, 30
        %v2796 = vshll.u32 %v2795, 30
        %v2797 = vsub.s32 %v2793, %v2796
        %vm2798 = vcmp.lt.s32.totalorder %v2797, 0
        %v2799 = vsub.s32 0, %v2797
        %v2800 = vsel %vm2798, %v2799, %v2797
        %v2801 = vclz %v2800
        %v2802 = vsub.s32 %v2801, 2
        %vm2803 = vcmp.gt.s32.totalorder 0, %v2802
        %v2804 = vsel %vm2803, 0, %v2802
        %v2805 = vsub.s32 32, %v2804
        %v2806 = vshll.u32 %v2797, %v2804
        %v2807 = vshrl.u32 %v2789, %v2805
        %v2808 = vor.u32 %v2806, %v2807
        %v2809 = vsub.s32 4294967266, %v2804
        %v2810 = vadd.s32 %v2809, 127
        %v2811 = vshll.u32 %v2810, 23
        %v2812 = vor.u32 4788187, %v2811
        %v2813 = vand.u32 2147483647, %v2812
        %v2815 = vcvt.s32.f32 %v2808
        %v2816 = vmul.f32 %v2815, %v2813
        %v2817 = vxor.u32 %v2816, 2147483648
        %v2818 = vsel %vm2735, %v2817, %v2816
        %v2819 = vsub.s32 4, %v2795
        %v2820 = vsel %vm2735, %v2819, %v2795
        %v2821 = vsel %vm2734, %v810, %v2818
        %v2822 = vsel %vm2734, 0, %v2820
        %v2823 = vcosq.f32.pop %v2821
        %v2824 = vsinq.f32.pop %v2821
        %vm2825 = vweird.f32 %v810
        %v2826 = vadd.s32 %v2822, 3
        %v2827 = vand.u32 %v2826, 3
        %vm2828 = vcmp.lt.s32.totalorder %v2827, 2
        %vm2829 = vcmp.eq.s32.totalorder %v2827, 0
        %v2830 = vxor.u32 %v2824, 2147483648
        %v2831 = vsel %vm2829, %v2823, %v2830
        %vm2832 = vcmp.eq.s32.totalorder %v2827, 2
        %v2833 = vxor.u32 %v2823, 2147483648
        %v2834 = vsel %vm2832, %v2833, %v2824
        %v2835 = vsel %vm2828, %v2831, %v2834
        %v2836 = vsel %vm2825, nan, %v2835
        %v2837 = vand.u32 2147483647, %v811
        %vm2838 = vcmp.le.f32.partialorder %v2837, 0.7853982
        %vm2839 = vcmp.lt.s32.totalorder %v811, 0
        %v2840 = vand.u32 %v811, 2139095040
        %v2841 = vshrl.u32 %v2840, 23
        %v2842 = vsub.s32 %v2841, 127
        %v2843 = vand.u32 2147483647, %v811
        %v2844 = vand.u32 %v2843, 8388607
        %v2845 = vor.u32 %v2844, 8388608
        %v2846 = vsub.s32 0, %v2845
        %v2847 = vadd.s32 %v2842, 1
        %vm2848 = vcmp.gt.s32.totalorder %v2847, 0
        %v2849 = vsel %vm2848, %v2847, 0
        %v2850 = vshrl.u32 %v2849, 5
        %v2851 = vand.u32 %v2849, 31
        %v2852 = vsub.s32 32, %v2851
        %v2853 = vshrl.u32 683565275, %v2852
        %v2854 = vshll.u32 683565275, %v2851
        %v2855 = vshrl.u32 2475754826, %v2852
        %v2856 = vor.u32 %v2854, %v2855
        %v2857 = vshll.u32 2475754826, %v2851
        %v2858 = vshrl.u32 2131351028, %v2852
        %v2859 = vor.u32 %v2857, %v2858
        %v2860 = vshll.u32 2131351028, %v2851
        %v2861 = vshrl.u32 2102212464, %v2852
        %v2862 = vor.u32 %v2860, %v2861
        %v2863 = vshll.u32 2102212464, %v2851
        %v2864 = vshrl.u32 920167782, %v2852
        %v2865 = vor.u32 %v2863, %v2864
        %v2866 = vshll.u32 920167782, %v2851
        %v2867 = vshrl.u32 1326507024, %v2852
        %v2868 = vor.u32 %v2866, %v2867
        %vm2869 = vcmp.lt.s32.totalorder %v2850, 1
        %vm2870 = vcmp.lt.s32.totalorder %v2850, 2
        %vm2871 = vcmp.lt.s32.totalorder %v2850, 3
        %vm2872 = vcmp.lt.s32.totalorder %v2850, 4
        %v2873 = vsel %vm2869, %v2853, %v2856
        %v2874 = vsel %vm2872, %v2862, 2102212464
        %v2875 = vsel %vm2871, %v2859, %v2874
        %v2876 = vsel %vm2870, %v2873, %v2875
        %v2877 = vsel %vm2869, %v2856, %v2859
        %v2878 = vsel %vm2872, %v2865, 920167782
        %v2879 = vsel %vm2871, %v2862, %v2878
        %v2880 = vsel %vm2870, %v2877, %v2879
        %v2881 = vsel %vm2869, %v2859, %v2862
        %v2882 = vsel %vm2872, %v2868, 1326507024
        %v2883 = vsel %vm2871, %v2865, %v2882
        %v2884 = vsel %vm2870, %v2881, %v2883
        %v2885 = vshll.u32 %v2845, 8
        %v2886 = vmul.u32.u64.compose %v2885, %v2884
        %v2887 = vextract.low.u32 %v2886
        %v2888 = vextract.high.u32 %v2886
        %v2889 = vmul.u32.u64.compose %v2885, %v2880
        %v2890 = vextract.low.u32 %v2889
        %v2891 = vextract.high.u32 %v2889
        %v2892 = vmul.u32 %v2885, %v2876
        %v2893 = vadd.s32 %v2888, %v2890
        %vm2894 = vc.u32 %v2888, %v2890
        %v2895 = vadd.s32 %v2891, 1
        %v2896 = vsel %vm2894, %v2895, %v2891
        %v2897 = vadd.s32 %v2892, %v2896
        %v2898 = vadd.s32 %v2897, 536870912
        %v2899 = vshrl.u32 %v2898, 30
        %v2900 = vshll.u32 %v2899, 30
        %v2901 = vsub.s32 %v2897, %v2900
        %vm2902 = vcmp.lt.s32.totalorder %v2901, 0
        %v2903 = vsub.s32 0, %v2901
        %v2904 = vsel %vm2902, %v2903, %v2901
        %v2905 = vclz %v2904
        %v2906 = vsub.s32 %v2905, 2
        %vm2907 = vcmp.gt.s32.totalorder 0, %v2906
        %v2908 = vsel %vm2907, 0, %v2906
        %v2909 = vsub.s32 32, %v2908
        %v2910 = vshll.u32 %v2901, %v2908
        %v2911 = vshrl.u32 %v2893, %v2909
        %v2912 = vor.u32 %v2910, %v2911
        %v2913 = vsub.s32 4294967266, %v2908
        %v2914 = vadd.s32 %v2913, 127
        %v2915 = vshll.u32 %v2914, 23
        %v2916 = vor.u32 4788187, %v2915
        %v2917 = vand.u32 2147483647, %v2916
        %v2919 = vcvt.s32.f32 %v2912
        %v2920 = vmul.f32 %v2919, %v2917
        %v2921 = vxor.u32 %v2920, 2147483648
        %v2922 = vsel %vm2839, %v2921, %v2920
        %v2923 = vsub.s32 4, %v2899
        %v2924 = vsel %vm2839, %v2923, %v2899
        %v2925 = vsel %vm2838, %v811, %v2922
        %v2926 = vsel %vm2838, 0, %v2924
        %v2927 = vcosq.f32.pop %v2925
        %v2928 = vsinq.f32.pop %v2925
        %vm2929 = vweird.f32 %v811
        %v2930 = vadd.s32 %v2926, 3
        %v2931 = vand.u32 %v2930, 3
        %vm2932 = vcmp.lt.s32.totalorder %v2931, 2
        %vm2933 = vcmp.eq.s32.totalorder %v2931, 0
        %v2934 = vxor.u32 %v2928, 2147483648
        %v2935 = vsel %vm2933, %v2927, %v2934
        %vm2936 = vcmp.eq.s32.totalorder %v2931, 2
        %v2937 = vxor.u32 %v2927, 2147483648
        %v2938 = vsel %vm2936, %v2937, %v2928
        %v2939 = vsel %vm2932, %v2935, %v2938
        %v2940 = vsel %vm2929, nan, %v2939
        %v2941 = vand.u32 2147483647, %v812
        %vm2942 = vcmp.le.f32.partialorder %v2941, 0.7853982
        %vm2943 = vcmp.lt.s32.totalorder %v812, 0
        %v2944 = vand.u32 %v812, 2139095040
        %v2945 = vshrl.u32 %v2944, 23
        %v2946 = vsub.s32 %v2945, 127
        %v2947 = vand.u32 2147483647, %v812
        %v2948 = vand.u32 %v2947, 8388607
        %v2949 = vor.u32 %v2948, 8388608
        %v2950 = vsub.s32 0, %v2949
        %v2951 = vadd.s32 %v2946, 1
        %vm2952 = vcmp.gt.s32.totalorder %v2951, 0
        %v2953 = vsel %vm2952, %v2951, 0
        %v2954 = vshrl.u32 %v2953, 5
        %v2955 = vand.u32 %v2953, 31
        %v2956 = vsub.s32 32, %v2955
        %v2957 = vshrl.u32 683565275, %v2956
        %v2958 = vshll.u32 683565275, %v2955
        %v2959 = vshrl.u32 2475754826, %v2956
        %v2960 = vor.u32 %v2958, %v2959
        %v2961 = vshll.u32 2475754826, %v2955
        %v2962 = vshrl.u32 2131351028, %v2956
        %v2963 = vor.u32 %v2961, %v2962
        %v2964 = vshll.u32 2131351028, %v2955
        %v2965 = vshrl.u32 2102212464, %v2956
        %v2966 = vor.u32 %v2964, %v2965
        %v2967 = vshll.u32 2102212464, %v2955
        %v2968 = vshrl.u32 920167782, %v2956
        %v2969 = vor.u32 %v2967, %v2968
        %v2970 = vshll.u32 920167782, %v2955
        %v2971 = vshrl.u32 1326507024, %v2956
        %v2972 = vor.u32 %v2970, %v2971
        %vm2973 = vcmp.lt.s32.totalorder %v2954, 1
        %vm2974 = vcmp.lt.s32.totalorder %v2954, 2
        %vm2975 = vcmp.lt.s32.totalorder %v2954, 3
        %vm2976 = vcmp.lt.s32.totalorder %v2954, 4
        %v2977 = vsel %vm2973, %v2957, %v2960
        %v2978 = vsel %vm2976, %v2966, 2102212464
        %v2979 = vsel %vm2975, %v2963, %v2978
        %v2980 = vsel %vm2974, %v2977, %v2979
        %v2981 = vsel %vm2973, %v2960, %v2963
        %v2982 = vsel %vm2976, %v2969, 920167782
        %v2983 = vsel %vm2975, %v2966, %v2982
        %v2984 = vsel %vm2974, %v2981, %v2983
        %v2985 = vsel %vm2973, %v2963, %v2966
        %v2986 = vsel %vm2976, %v2972, 1326507024
        %v2987 = vsel %vm2975, %v2969, %v2986
        %v2988 = vsel %vm2974, %v2985, %v2987
        %v2989 = vshll.u32 %v2949, 8
        %v2990 = vmul.u32.u64.compose %v2989, %v2988
        %v2991 = vextract.low.u32 %v2990
        %v2992 = vextract.high.u32 %v2990
        %v2993 = vmul.u32.u64.compose %v2989, %v2984
        %v2994 = vextract.low.u32 %v2993
        %v2995 = vextract.high.u32 %v2993
        %v2996 = vmul.u32 %v2989, %v2980
        %v2997 = vadd.s32 %v2992, %v2994
        %vm2998 = vc.u32 %v2992, %v2994
        %v2999 = vadd.s32 %v2995, 1
        %v3000 = vsel %vm2998, %v2999, %v2995
        %v3001 = vadd.s32 %v2996, %v3000
        %v3002 = vadd.s32 %v3001, 536870912
        %v3003 = vshrl.u32 %v3002, 30
        %v3004 = vshll.u32 %v3003, 30
        %v3005 = vsub.s32 %v3001, %v3004
        %vm3006 = vcmp.lt.s32.totalorder %v3005, 0
        %v3007 = vsub.s32 0, %v3005
        %v3008 = vsel %vm3006, %v3007, %v3005
        %v3009 = vclz %v3008
        %v3010 = vsub.s32 %v3009, 2
        %vm3011 = vcmp.gt.s32.totalorder 0, %v3010
        %v3012 = vsel %vm3011, 0, %v3010
        %v3013 = vsub.s32 32, %v3012
        %v3014 = vshll.u32 %v3005, %v3012
        %v3015 = vshrl.u32 %v2997, %v3013
        %v3016 = vor.u32 %v3014, %v3015
        %v3017 = vsub.s32 4294967266, %v3012
        %v3018 = vadd.s32 %v3017, 127
        %v3019 = vshll.u32 %v3018, 23
        %v3020 = vor.u32 4788187, %v3019
        %v3021 = vand.u32 2147483647, %v3020
        %v3023 = vcvt.s32.f32 %v3016
        %v3024 = vmul.f32 %v3023, %v3021
        %v3025 = vxor.u32 %v3024, 2147483648
        %v3026 = vsel %vm2943, %v3025, %v3024
        %v3027 = vsub.s32 4, %v3003
        %v3028 = vsel %vm2943, %v3027, %v3003
        %v3029 = vsel %vm2942, %v812, %v3026
        %v3030 = vsel %vm2942, 0, %v3028
        %v3031 = vcosq.f32.pop %v3029
        %v3032 = vsinq.f32.pop %v3029
        %vm3033 = vweird.f32 %v812
        %v3034 = vadd.s32 %v3030, 3
        %v3035 = vand.u32 %v3034, 3
        %vm3036 = vcmp.lt.s32.totalorder %v3035, 2
        %vm3037 = vcmp.eq.s32.totalorder %v3035, 0
        %v3038 = vxor.u32 %v3032, 2147483648
        %v3039 = vsel %vm3037, %v3031, %v3038
        %vm3040 = vcmp.eq.s32.totalorder %v3035, 2
        %v3041 = vxor.u32 %v3031, 2147483648
        %v3042 = vsel %vm3040, %v3041, %v3032
        %v3043 = vsel %vm3036, %v3039, %v3042
        %v3044 = vsel %vm3033, nan, %v3043
        %v3045 = vand.u32 2147483647, %v813
        %vm3046 = vcmp.le.f32.partialorder %v3045, 0.7853982
        %vm3047 = vcmp.lt.s32.totalorder %v813, 0
        %v3048 = vand.u32 %v813, 2139095040
        %v3049 = vshrl.u32 %v3048, 23
        %v3050 = vsub.s32 %v3049, 127
        %v3051 = vand.u32 2147483647, %v813
        %v3052 = vand.u32 %v3051, 8388607
        %v3053 = vor.u32 %v3052, 8388608
        %v3054 = vsub.s32 0, %v3053
        %v3055 = vadd.s32 %v3050, 1
        %vm3056 = vcmp.gt.s32.totalorder %v3055, 0
        %v3057 = vsel %vm3056, %v3055, 0
        %v3058 = vshrl.u32 %v3057, 5
        %v3059 = vand.u32 %v3057, 31
        %v3060 = vsub.s32 32, %v3059
        %v3061 = vshrl.u32 683565275, %v3060
        %v3062 = vshll.u32 683565275, %v3059
        %v3063 = vshrl.u32 2475754826, %v3060
        %v3064 = vor.u32 %v3062, %v3063
        %v3065 = vshll.u32 2475754826, %v3059
        %v3066 = vshrl.u32 2131351028, %v3060
        %v3067 = vor.u32 %v3065, %v3066
        %v3068 = vshll.u32 2131351028, %v3059
        %v3069 = vshrl.u32 2102212464, %v3060
        %v3070 = vor.u32 %v3068, %v3069
        %v3071 = vshll.u32 2102212464, %v3059
        %v3072 = vshrl.u32 920167782, %v3060
        %v3073 = vor.u32 %v3071, %v3072
        %v3074 = vshll.u32 920167782, %v3059
        %v3075 = vshrl.u32 1326507024, %v3060
        %v3076 = vor.u32 %v3074, %v3075
        %vm3077 = vcmp.lt.s32.totalorder %v3058, 1
        %vm3078 = vcmp.lt.s32.totalorder %v3058, 2
        %vm3079 = vcmp.lt.s32.totalorder %v3058, 3
        %vm3080 = vcmp.lt.s32.totalorder %v3058, 4
        %v3081 = vsel %vm3077, %v3061, %v3064
        %v3082 = vsel %vm3080, %v3070, 2102212464
        %v3083 = vsel %vm3079, %v3067, %v3082
        %v3084 = vsel %vm3078, %v3081, %v3083
        %v3085 = vsel %vm3077, %v3064, %v3067
        %v3086 = vsel %vm3080, %v3073, 920167782
        %v3087 = vsel %vm3079, %v3070, %v3086
        %v3088 = vsel %vm3078, %v3085, %v3087
        %v3089 = vsel %vm3077, %v3067, %v3070
        %v3090 = vsel %vm3080, %v3076, 1326507024
        %v3091 = vsel %vm3079, %v3073, %v3090
        %v3092 = vsel %vm3078, %v3089, %v3091
        %v3093 = vshll.u32 %v3053, 8
        %v3094 = vmul.u32.u64.compose %v3093, %v3092
        %v3095 = vextract.low.u32 %v3094
        %v3096 = vextract.high.u32 %v3094
        %v3097 = vmul.u32.u64.compose %v3093, %v3088
        %v3098 = vextract.low.u32 %v3097
        %v3099 = vextract.high.u32 %v3097
        %v3100 = vmul.u32 %v3093, %v3084
        %v3101 = vadd.s32 %v3096, %v3098
        %vm3102 = vc.u32 %v3096, %v3098
        %v3103 = vadd.s32 %v3099, 1
        %v3104 = vsel %vm3102, %v3103, %v3099
        %v3105 = vadd.s32 %v3100, %v3104
        %v3106 = vadd.s32 %v3105, 536870912
        %v3107 = vshrl.u32 %v3106, 30
        %v3108 = vshll.u32 %v3107, 30
        %v3109 = vsub.s32 %v3105, %v3108
        %vm3110 = vcmp.lt.s32.totalorder %v3109, 0
        %v3111 = vsub.s32 0, %v3109
        %v3112 = vsel %vm3110, %v3111, %v3109
        %v3113 = vclz %v3112
        %v3114 = vsub.s32 %v3113, 2
        %vm3115 = vcmp.gt.s32.totalorder 0, %v3114
        %v3116 = vsel %vm3115, 0, %v3114
        %v3117 = vsub.s32 32, %v3116
        %v3118 = vshll.u32 %v3109, %v3116
        %v3119 = vshrl.u32 %v3101, %v3117
        %v3120 = vor.u32 %v3118, %v3119
        %v3121 = vsub.s32 4294967266, %v3116
        %v3122 = vadd.s32 %v3121, 127
        %v3123 = vshll.u32 %v3122, 23
        %v3124 = vor.u32 4788187, %v3123
        %v3125 = vand.u32 2147483647, %v3124
        %v3127 = vcvt.s32.f32 %v3120
        %v3128 = vmul.f32 %v3127, %v3125
        %v3129 = vxor.u32 %v3128, 2147483648
        %v3130 = vsel %vm3047, %v3129, %v3128
        %v3131 = vsub.s32 4, %v3107
        %v3132 = vsel %vm3047, %v3131, %v3107
        %v3133 = vsel %vm3046, %v813, %v3130
        %v3134 = vsel %vm3046, 0, %v3132
        %v3135 = vcosq.f32.pop %v3133
        %v3136 = vsinq.f32.pop %v3133
        %vm3137 = vweird.f32 %v813
        %v3138 = vadd.s32 %v3134, 3
        %v3139 = vand.u32 %v3138, 3
        %vm3140 = vcmp.lt.s32.totalorder %v3139, 2
        %vm3141 = vcmp.eq.s32.totalorder %v3139, 0
        %v3142 = vxor.u32 %v3136, 2147483648
        %v3143 = vsel %vm3141, %v3135, %v3142
        %vm3144 = vcmp.eq.s32.totalorder %v3139, 2
        %v3145 = vxor.u32 %v3135, 2147483648
        %v3146 = vsel %vm3144, %v3145, %v3136
        %v3147 = vsel %vm3140, %v3143, %v3146
        %v3148 = vsel %vm3137, nan, %v3147
        %v3149 = vand.u32 2147483647, %v814
        %vm3150 = vcmp.le.f32.partialorder %v3149, 0.7853982
        %vm3151 = vcmp.lt.s32.totalorder %v814, 0
        %v3152 = vand.u32 %v814, 2139095040
        %v3153 = vshrl.u32 %v3152, 23
        %v3154 = vsub.s32 %v3153, 127
        %v3155 = vand.u32 2147483647, %v814
        %v3156 = vand.u32 %v3155, 8388607
        %v3157 = vor.u32 %v3156, 8388608
        %v3158 = vsub.s32 0, %v3157
        %v3159 = vadd.s32 %v3154, 1
        %vm3160 = vcmp.gt.s32.totalorder %v3159, 0
        %v3161 = vsel %vm3160, %v3159, 0
        %v3162 = vshrl.u32 %v3161, 5
        %v3163 = vand.u32 %v3161, 31
        %v3164 = vsub.s32 32, %v3163
        %v3165 = vshrl.u32 683565275, %v3164
        %v3166 = vshll.u32 683565275, %v3163
        %v3167 = vshrl.u32 2475754826, %v3164
        %v3168 = vor.u32 %v3166, %v3167
        %v3169 = vshll.u32 2475754826, %v3163
        %v3170 = vshrl.u32 2131351028, %v3164
        %v3171 = vor.u32 %v3169, %v3170
        %v3172 = vshll.u32 2131351028, %v3163
        %v3173 = vshrl.u32 2102212464, %v3164
        %v3174 = vor.u32 %v3172, %v3173
        %v3175 = vshll.u32 2102212464, %v3163
        %v3176 = vshrl.u32 920167782, %v3164
        %v3177 = vor.u32 %v3175, %v3176
        %v3178 = vshll.u32 920167782, %v3163
        %v3179 = vshrl.u32 1326507024, %v3164
        %v3180 = vor.u32 %v3178, %v3179
        %vm3181 = vcmp.lt.s32.totalorder %v3162, 1
        %vm3182 = vcmp.lt.s32.totalorder %v3162, 2
        %vm3183 = vcmp.lt.s32.totalorder %v3162, 3
        %vm3184 = vcmp.lt.s32.totalorder %v3162, 4
        %v3185 = vsel %vm3181, %v3165, %v3168
        %v3186 = vsel %vm3184, %v3174, 2102212464
        %v3187 = vsel %vm3183, %v3171, %v3186
        %v3188 = vsel %vm3182, %v3185, %v3187
        %v3189 = vsel %vm3181, %v3168, %v3171
        %v3190 = vsel %vm3184, %v3177, 920167782
        %v3191 = vsel %vm3183, %v3174, %v3190
        %v3192 = vsel %vm3182, %v3189, %v3191
        %v3193 = vsel %vm3181, %v3171, %v3174
        %v3194 = vsel %vm3184, %v3180, 1326507024
        %v3195 = vsel %vm3183, %v3177, %v3194
        %v3196 = vsel %vm3182, %v3193, %v3195
        %v3197 = vshll.u32 %v3157, 8
        %v3198 = vmul.u32.u64.compose %v3197, %v3196
        %v3199 = vextract.low.u32 %v3198
        %v3200 = vextract.high.u32 %v3198
        %v3201 = vmul.u32.u64.compose %v3197, %v3192
        %v3202 = vextract.low.u32 %v3201
        %v3203 = vextract.high.u32 %v3201
        %v3204 = vmul.u32 %v3197, %v3188
        %v3205 = vadd.s32 %v3200, %v3202
        %vm3206 = vc.u32 %v3200, %v3202
        %v3207 = vadd.s32 %v3203, 1
        %v3208 = vsel %vm3206, %v3207, %v3203
        %v3209 = vadd.s32 %v3204, %v3208
        %v3210 = vadd.s32 %v3209, 536870912
        %v3211 = vshrl.u32 %v3210, 30
        %v3212 = vshll.u32 %v3211, 30
        %v3213 = vsub.s32 %v3209, %v3212
        %vm3214 = vcmp.lt.s32.totalorder %v3213, 0
        %v3215 = vsub.s32 0, %v3213
        %v3216 = vsel %vm3214, %v3215, %v3213
        %v3217 = vclz %v3216
        %v3218 = vsub.s32 %v3217, 2
        %vm3219 = vcmp.gt.s32.totalorder 0, %v3218
        %v3220 = vsel %vm3219, 0, %v3218
        %v3221 = vsub.s32 32, %v3220
        %v3222 = vshll.u32 %v3213, %v3220
        %v3223 = vshrl.u32 %v3205, %v3221
        %v3224 = vor.u32 %v3222, %v3223
        %v3225 = vsub.s32 4294967266, %v3220
        %v3226 = vadd.s32 %v3225, 127
        %v3227 = vshll.u32 %v3226, 23
        %v3228 = vor.u32 4788187, %v3227
        %v3229 = vand.u32 2147483647, %v3228
        %v3231 = vcvt.s32.f32 %v3224
        %v3232 = vmul.f32 %v3231, %v3229
        %v3233 = vxor.u32 %v3232, 2147483648
        %v3234 = vsel %vm3151, %v3233, %v3232
        %v3235 = vsub.s32 4, %v3211
        %v3236 = vsel %vm3151, %v3235, %v3211
        %v3237 = vsel %vm3150, %v814, %v3234
        %v3238 = vsel %vm3150, 0, %v3236
        %v3239 = vcosq.f32.pop %v3237
        %v3240 = vsinq.f32.pop %v3237
        %vm3241 = vweird.f32 %v814
        %v3242 = vadd.s32 %v3238, 3
        %v3243 = vand.u32 %v3242, 3
        %vm3244 = vcmp.lt.s32.totalorder %v3243, 2
        %vm3245 = vcmp.eq.s32.totalorder %v3243, 0
        %v3246 = vxor.u32 %v3240, 2147483648
        %v3247 = vsel %vm3245, %v3239, %v3246
        %vm3248 = vcmp.eq.s32.totalorder %v3243, 2
        %v3249 = vxor.u32 %v3239, 2147483648
        %v3250 = vsel %vm3248, %v3249, %v3240
        %v3251 = vsel %vm3244, %v3247, %v3250
        %v3252 = vsel %vm3241, nan, %v3251
        %v3253 = vand.u32 2147483647, %v815
        %vm3254 = vcmp.le.f32.partialorder %v3253, 0.7853982
        %vm3255 = vcmp.lt.s32.totalorder %v815, 0
        %v3256 = vand.u32 %v815, 2139095040
        %v3257 = vshrl.u32 %v3256, 23
        %v3258 = vsub.s32 %v3257, 127
        %v3259 = vand.u32 2147483647, %v815
        %v3260 = vand.u32 %v3259, 8388607
        %v3261 = vor.u32 %v3260, 8388608
        %v3262 = vsub.s32 0, %v3261
        %v3263 = vadd.s32 %v3258, 1
        %vm3264 = vcmp.gt.s32.totalorder %v3263, 0
        %v3265 = vsel %vm3264, %v3263, 0
        %v3266 = vshrl.u32 %v3265, 5
        %v3267 = vand.u32 %v3265, 31
        %v3268 = vsub.s32 32, %v3267
        %v3269 = vshrl.u32 683565275, %v3268
        %v3270 = vshll.u32 683565275, %v3267
        %v3271 = vshrl.u32 2475754826, %v3268
        %v3272 = vor.u32 %v3270, %v3271
        %v3273 = vshll.u32 2475754826, %v3267
        %v3274 = vshrl.u32 2131351028, %v3268
        %v3275 = vor.u32 %v3273, %v3274
        %v3276 = vshll.u32 2131351028, %v3267
        %v3277 = vshrl.u32 2102212464, %v3268
        %v3278 = vor.u32 %v3276, %v3277
        %v3279 = vshll.u32 2102212464, %v3267
        %v3280 = vshrl.u32 920167782, %v3268
        %v3281 = vor.u32 %v3279, %v3280
        %v3282 = vshll.u32 920167782, %v3267
        %v3283 = vshrl.u32 1326507024, %v3268
        %v3284 = vor.u32 %v3282, %v3283
        %vm3285 = vcmp.lt.s32.totalorder %v3266, 1
        %vm3286 = vcmp.lt.s32.totalorder %v3266, 2
        %vm3287 = vcmp.lt.s32.totalorder %v3266, 3
        %vm3288 = vcmp.lt.s32.totalorder %v3266, 4
        %v3289 = vsel %vm3285, %v3269, %v3272
        %v3290 = vsel %vm3288, %v3278, 2102212464
        %v3291 = vsel %vm3287, %v3275, %v3290
        %v3292 = vsel %vm3286, %v3289, %v3291
        %v3293 = vsel %vm3285, %v3272, %v3275
        %v3294 = vsel %vm3288, %v3281, 920167782
        %v3295 = vsel %vm3287, %v3278, %v3294
        %v3296 = vsel %vm3286, %v3293, %v3295
        %v3297 = vsel %vm3285, %v3275, %v3278
        %v3298 = vsel %vm3288, %v3284, 1326507024
        %v3299 = vsel %vm3287, %v3281, %v3298
        %v3300 = vsel %vm3286, %v3297, %v3299
        %v3301 = vshll.u32 %v3261, 8
        %v3302 = vmul.u32.u64.compose %v3301, %v3300
        %v3303 = vextract.low.u32 %v3302
        %v3304 = vextract.high.u32 %v3302
        %v3305 = vmul.u32.u64.compose %v3301, %v3296
        %v3306 = vextract.low.u32 %v3305
        %v3307 = vextract.high.u32 %v3305
        %v3308 = vmul.u32 %v3301, %v3292
        %v3309 = vadd.s32 %v3304, %v3306
        %vm3310 = vc.u32 %v3304, %v3306
        %v3311 = vadd.s32 %v3307, 1
        %v3312 = vsel %vm3310, %v3311, %v3307
        %v3313 = vadd.s32 %v3308, %v3312
        %v3314 = vadd.s32 %v3313, 536870912
        %v3315 = vshrl.u32 %v3314, 30
        %v3316 = vshll.u32 %v3315, 30
        %v3317 = vsub.s32 %v3313, %v3316
        %vm3318 = vcmp.lt.s32.totalorder %v3317, 0
        %v3319 = vsub.s32 0, %v3317
        %v3320 = vsel %vm3318, %v3319, %v3317
        %v3321 = vclz %v3320
        %v3322 = vsub.s32 %v3321, 2
        %vm3323 = vcmp.gt.s32.totalorder 0, %v3322
        %v3324 = vsel %vm3323, 0, %v3322
        %v3325 = vsub.s32 32, %v3324
        %v3326 = vshll.u32 %v3317, %v3324
        %v3327 = vshrl.u32 %v3309, %v3325
        %v3328 = vor.u32 %v3326, %v3327
        %v3329 = vsub.s32 4294967266, %v3324
        %v3330 = vadd.s32 %v3329, 127
        %v3331 = vshll.u32 %v3330, 23
        %v3332 = vor.u32 4788187, %v3331
        %v3333 = vand.u32 2147483647, %v3332
        %v3335 = vcvt.s32.f32 %v3328
        %v3336 = vmul.f32 %v3335, %v3333
        %v3337 = vxor.u32 %v3336, 2147483648
        %v3338 = vsel %vm3255, %v3337, %v3336
        %v3339 = vsub.s32 4, %v3315
        %v3340 = vsel %vm3255, %v3339, %v3315
        %v3341 = vsel %vm3254, %v815, %v3338
        %v3342 = vsel %vm3254, 0, %v3340
        %v3343 = vcosq.f32.pop %v3341
        %v3344 = vsinq.f32.pop %v3341
        %vm3345 = vweird.f32 %v815
        %v3346 = vadd.s32 %v3342, 3
        %v3347 = vand.u32 %v3346, 3
        %vm3348 = vcmp.lt.s32.totalorder %v3347, 2
        %vm3349 = vcmp.eq.s32.totalorder %v3347, 0
        %v3350 = vxor.u32 %v3344, 2147483648
        %v3351 = vsel %vm3349, %v3343, %v3350
        %vm3352 = vcmp.eq.s32.totalorder %v3347, 2
        %v3353 = vxor.u32 %v3343, 2147483648
        %v3354 = vsel %vm3352, %v3353, %v3344
        %v3355 = vsel %vm3348, %v3351, %v3354
        %v3356 = vsel %vm3345, nan, %v3355
        %v3357 = vand.u32 2147483647, %v816
        %vm3358 = vcmp.le.f32.partialorder %v3357, 0.7853982
        %vm3359 = vcmp.lt.s32.totalorder %v816, 0
        %v3360 = vand.u32 %v816, 2139095040
        %v3361 = vshrl.u32 %v3360, 23
        %v3362 = vsub.s32 %v3361, 127
        %v3363 = vand.u32 2147483647, %v816
        %v3364 = vand.u32 %v3363, 8388607
        %v3365 = vor.u32 %v3364, 8388608
        %v3366 = vsub.s32 0, %v3365
        %v3367 = vadd.s32 %v3362, 1
        %vm3368 = vcmp.gt.s32.totalorder %v3367, 0
        %v3369 = vsel %vm3368, %v3367, 0
        %v3370 = vshrl.u32 %v3369, 5
        %v3371 = vand.u32 %v3369, 31
        %v3372 = vsub.s32 32, %v3371
        %v3373 = vshrl.u32 683565275, %v3372
        %v3374 = vshll.u32 683565275, %v3371
        %v3375 = vshrl.u32 2475754826, %v3372
        %v3376 = vor.u32 %v3374, %v3375
        %v3377 = vshll.u32 2475754826, %v3371
        %v3378 = vshrl.u32 2131351028, %v3372
        %v3379 = vor.u32 %v3377, %v3378
        %v3380 = vshll.u32 2131351028, %v3371
        %v3381 = vshrl.u32 2102212464, %v3372
        %v3382 = vor.u32 %v3380, %v3381
        %v3383 = vshll.u32 2102212464, %v3371
        %v3384 = vshrl.u32 920167782, %v3372
        %v3385 = vor.u32 %v3383, %v3384
        %v3386 = vshll.u32 920167782, %v3371
        %v3387 = vshrl.u32 1326507024, %v3372
        %v3388 = vor.u32 %v3386, %v3387
        %vm3389 = vcmp.lt.s32.totalorder %v3370, 1
        %vm3390 = vcmp.lt.s32.totalorder %v3370, 2
        %vm3391 = vcmp.lt.s32.totalorder %v3370, 3
        %vm3392 = vcmp.lt.s32.totalorder %v3370, 4
        %v3393 = vsel %vm3389, %v3373, %v3376
        %v3394 = vsel %vm3392, %v3382, 2102212464
        %v3395 = vsel %vm3391, %v3379, %v3394
        %v3396 = vsel %vm3390, %v3393, %v3395
        %v3397 = vsel %vm3389, %v3376, %v3379
        %v3398 = vsel %vm3392, %v3385, 920167782
        %v3399 = vsel %vm3391, %v3382, %v3398
        %v3400 = vsel %vm3390, %v3397, %v3399
        %v3401 = vsel %vm3389, %v3379, %v3382
        %v3402 = vsel %vm3392, %v3388, 1326507024
        %v3403 = vsel %vm3391, %v3385, %v3402
        %v3404 = vsel %vm3390, %v3401, %v3403
        %v3405 = vshll.u32 %v3365, 8
        %v3406 = vmul.u32.u64.compose %v3405, %v3404
        %v3407 = vextract.low.u32 %v3406
        %v3408 = vextract.high.u32 %v3406
        %v3409 = vmul.u32.u64.compose %v3405, %v3400
        %v3410 = vextract.low.u32 %v3409
        %v3411 = vextract.high.u32 %v3409
        %v3412 = vmul.u32 %v3405, %v3396
        %v3413 = vadd.s32 %v3408, %v3410
        %vm3414 = vc.u32 %v3408, %v3410
        %v3415 = vadd.s32 %v3411, 1
        %v3416 = vsel %vm3414, %v3415, %v3411
        %v3417 = vadd.s32 %v3412, %v3416
        %v3418 = vadd.s32 %v3417, 536870912
        %v3419 = vshrl.u32 %v3418, 30
        %v3420 = vshll.u32 %v3419, 30
        %v3421 = vsub.s32 %v3417, %v3420
        %vm3422 = vcmp.lt.s32.totalorder %v3421, 0
        %v3423 = vsub.s32 0, %v3421
        %v3424 = vsel %vm3422, %v3423, %v3421
        %v3425 = vclz %v3424
        %v3426 = vsub.s32 %v3425, 2
        %vm3427 = vcmp.gt.s32.totalorder 0, %v3426
        %v3428 = vsel %vm3427, 0, %v3426
        %v3429 = vsub.s32 32, %v3428
        %v3430 = vshll.u32 %v3421, %v3428
        %v3431 = vshrl.u32 %v3413, %v3429
        %v3432 = vor.u32 %v3430, %v3431
        %v3433 = vsub.s32 4294967266, %v3428
        %v3434 = vadd.s32 %v3433, 127
        %v3435 = vshll.u32 %v3434, 23
        %v3436 = vor.u32 4788187, %v3435
        %v3437 = vand.u32 2147483647, %v3436
        %v3439 = vcvt.s32.f32 %v3432
        %v3440 = vmul.f32 %v3439, %v3437
        %v3441 = vxor.u32 %v3440, 2147483648
        %v3442 = vsel %vm3359, %v3441, %v3440
        %v3443 = vsub.s32 4, %v3419
        %v3444 = vsel %vm3359, %v3443, %v3419
        %v3445 = vsel %vm3358, %v816, %v3442
        %v3446 = vsel %vm3358, 0, %v3444
        %v3447 = vcosq.f32.pop %v3445
        %v3448 = vsinq.f32.pop %v3445
        %vm3449 = vweird.f32 %v816
        %v3450 = vadd.s32 %v3446, 3
        %v3451 = vand.u32 %v3450, 3
        %vm3452 = vcmp.lt.s32.totalorder %v3451, 2
        %vm3453 = vcmp.eq.s32.totalorder %v3451, 0
        %v3454 = vxor.u32 %v3448, 2147483648
        %v3455 = vsel %vm3453, %v3447, %v3454
        %vm3456 = vcmp.eq.s32.totalorder %v3451, 2
        %v3457 = vxor.u32 %v3447, 2147483648
        %v3458 = vsel %vm3456, %v3457, %v3448
        %v3459 = vsel %vm3452, %v3455, %v3458
        %v3460 = vsel %vm3449, nan, %v3459
        %v3461 = vand.u32 2147483647, %v817
        %vm3462 = vcmp.le.f32.partialorder %v3461, 0.7853982
        %vm3463 = vcmp.lt.s32.totalorder %v817, 0
        %v3464 = vand.u32 %v817, 2139095040
        %v3465 = vshrl.u32 %v3464, 23
        %v3466 = vsub.s32 %v3465, 127
        %v3467 = vand.u32 2147483647, %v817
        %v3468 = vand.u32 %v3467, 8388607
        %v3469 = vor.u32 %v3468, 8388608
        %v3470 = vsub.s32 0, %v3469
        %v3471 = vadd.s32 %v3466, 1
        %vm3472 = vcmp.gt.s32.totalorder %v3471, 0
        %v3473 = vsel %vm3472, %v3471, 0
        %v3474 = vshrl.u32 %v3473, 5
        %v3475 = vand.u32 %v3473, 31
        %v3476 = vsub.s32 32, %v3475
        %v3477 = vshrl.u32 683565275, %v3476
        %v3478 = vshll.u32 683565275, %v3475
        %v3479 = vshrl.u32 2475754826, %v3476
        %v3480 = vor.u32 %v3478, %v3479
        %v3481 = vshll.u32 2475754826, %v3475
        %v3482 = vshrl.u32 2131351028, %v3476
        %v3483 = vor.u32 %v3481, %v3482
        %v3484 = vshll.u32 2131351028, %v3475
        %v3485 = vshrl.u32 2102212464, %v3476
        %v3486 = vor.u32 %v3484, %v3485
        %v3487 = vshll.u32 2102212464, %v3475
        %v3488 = vshrl.u32 920167782, %v3476
        %v3489 = vor.u32 %v3487, %v3488
        %v3490 = vshll.u32 920167782, %v3475
        %v3491 = vshrl.u32 1326507024, %v3476
        %v3492 = vor.u32 %v3490, %v3491
        %vm3493 = vcmp.lt.s32.totalorder %v3474, 1
        %vm3494 = vcmp.lt.s32.totalorder %v3474, 2
        %vm3495 = vcmp.lt.s32.totalorder %v3474, 3
        %vm3496 = vcmp.lt.s32.totalorder %v3474, 4
        %v3497 = vsel %vm3493, %v3477, %v3480
        %v3498 = vsel %vm3496, %v3486, 2102212464
        %v3499 = vsel %vm3495, %v3483, %v3498
        %v3500 = vsel %vm3494, %v3497, %v3499
        %v3501 = vsel %vm3493, %v3480, %v3483
        %v3502 = vsel %vm3496, %v3489, 920167782
        %v3503 = vsel %vm3495, %v3486, %v3502
        %v3504 = vsel %vm3494, %v3501, %v3503
        %v3505 = vsel %vm3493, %v3483, %v3486
        %v3506 = vsel %vm3496, %v3492, 1326507024
        %v3507 = vsel %vm3495, %v3489, %v3506
        %v3508 = vsel %vm3494, %v3505, %v3507
        %v3509 = vshll.u32 %v3469, 8
        %v3510 = vmul.u32.u64.compose %v3509, %v3508
        %v3511 = vextract.low.u32 %v3510
        %v3512 = vextract.high.u32 %v3510
        %v3513 = vmul.u32.u64.compose %v3509, %v3504
        %v3514 = vextract.low.u32 %v3513
        %v3515 = vextract.high.u32 %v3513
        %v3516 = vmul.u32 %v3509, %v3500
        %v3517 = vadd.s32 %v3512, %v3514
        %vm3518 = vc.u32 %v3512, %v3514
        %v3519 = vadd.s32 %v3515, 1
        %v3520 = vsel %vm3518, %v3519, %v3515
        %v3521 = vadd.s32 %v3516, %v3520
        %v3522 = vadd.s32 %v3521, 536870912
        %v3523 = vshrl.u32 %v3522, 30
        %v3524 = vshll.u32 %v3523, 30
        %v3525 = vsub.s32 %v3521, %v3524
        %vm3526 = vcmp.lt.s32.totalorder %v3525, 0
        %v3527 = vsub.s32 0, %v3525
        %v3528 = vsel %vm3526, %v3527, %v3525
        %v3529 = vclz %v3528
        %v3530 = vsub.s32 %v3529, 2
        %vm3531 = vcmp.gt.s32.totalorder 0, %v3530
        %v3532 = vsel %vm3531, 0, %v3530
        %v3533 = vsub.s32 32, %v3532
        %v3534 = vshll.u32 %v3525, %v3532
        %v3535 = vshrl.u32 %v3517, %v3533
        %v3536 = vor.u32 %v3534, %v3535
        %v3537 = vsub.s32 4294967266, %v3532
        %v3538 = vadd.s32 %v3537, 127
        %v3539 = vshll.u32 %v3538, 23
        %v3540 = vor.u32 4788187, %v3539
        %v3541 = vand.u32 2147483647, %v3540
        %v3543 = vcvt.s32.f32 %v3536
        %v3544 = vmul.f32 %v3543, %v3541
        %v3545 = vxor.u32 %v3544, 2147483648
        %v3546 = vsel %vm3463, %v3545, %v3544
        %v3547 = vsub.s32 4, %v3523
        %v3548 = vsel %vm3463, %v3547, %v3523
        %v3549 = vsel %vm3462, %v817, %v3546
        %v3550 = vsel %vm3462, 0, %v3548
        %v3551 = vcosq.f32.pop %v3549
        %v3552 = vsinq.f32.pop %v3549
        %vm3553 = vweird.f32 %v817
        %v3554 = vadd.s32 %v3550, 3
        %v3555 = vand.u32 %v3554, 3
        %vm3556 = vcmp.lt.s32.totalorder %v3555, 2
        %vm3557 = vcmp.eq.s32.totalorder %v3555, 0
        %v3558 = vxor.u32 %v3552, 2147483648
        %v3559 = vsel %vm3557, %v3551, %v3558
        %vm3560 = vcmp.eq.s32.totalorder %v3555, 2
        %v3561 = vxor.u32 %v3551, 2147483648
        %v3562 = vsel %vm3560, %v3561, %v3552
        %v3563 = vsel %vm3556, %v3559, %v3562
        %v3564 = vsel %vm3553, nan, %v3563
        %v3565 = vand.u32 2147483647, %v818
        %vm3566 = vcmp.le.f32.partialorder %v3565, 0.7853982
        %vm3567 = vcmp.lt.s32.totalorder %v818, 0
        %v3568 = vand.u32 %v818, 2139095040
        %v3569 = vshrl.u32 %v3568, 23
        %v3570 = vsub.s32 %v3569, 127
        %v3571 = vand.u32 2147483647, %v818
        %v3572 = vand.u32 %v3571, 8388607
        %v3573 = vor.u32 %v3572, 8388608
        %v3574 = vsub.s32 0, %v3573
        %v3575 = vadd.s32 %v3570, 1
        %vm3576 = vcmp.gt.s32.totalorder %v3575, 0
        %v3577 = vsel %vm3576, %v3575, 0
        %v3578 = vshrl.u32 %v3577, 5
        %v3579 = vand.u32 %v3577, 31
        %v3580 = vsub.s32 32, %v3579
        %v3581 = vshrl.u32 683565275, %v3580
        %v3582 = vshll.u32 683565275, %v3579
        %v3583 = vshrl.u32 2475754826, %v3580
        %v3584 = vor.u32 %v3582, %v3583
        %v3585 = vshll.u32 2475754826, %v3579
        %v3586 = vshrl.u32 2131351028, %v3580
        %v3587 = vor.u32 %v3585, %v3586
        %v3588 = vshll.u32 2131351028, %v3579
        %v3589 = vshrl.u32 2102212464, %v3580
        %v3590 = vor.u32 %v3588, %v3589
        %v3591 = vshll.u32 2102212464, %v3579
        %v3592 = vshrl.u32 920167782, %v3580
        %v3593 = vor.u32 %v3591, %v3592
        %v3594 = vshll.u32 920167782, %v3579
        %v3595 = vshrl.u32 1326507024, %v3580
        %v3596 = vor.u32 %v3594, %v3595
        %vm3597 = vcmp.lt.s32.totalorder %v3578, 1
        %vm3598 = vcmp.lt.s32.totalorder %v3578, 2
        %vm3599 = vcmp.lt.s32.totalorder %v3578, 3
        %vm3600 = vcmp.lt.s32.totalorder %v3578, 4
        %v3601 = vsel %vm3597, %v3581, %v3584
        %v3602 = vsel %vm3600, %v3590, 2102212464
        %v3603 = vsel %vm3599, %v3587, %v3602
        %v3604 = vsel %vm3598, %v3601, %v3603
        %v3605 = vsel %vm3597, %v3584, %v3587
        %v3606 = vsel %vm3600, %v3593, 920167782
        %v3607 = vsel %vm3599, %v3590, %v3606
        %v3608 = vsel %vm3598, %v3605, %v3607
        %v3609 = vsel %vm3597, %v3587, %v3590
        %v3610 = vsel %vm3600, %v3596, 1326507024
        %v3611 = vsel %vm3599, %v3593, %v3610
        %v3612 = vsel %vm3598, %v3609, %v3611
        %v3613 = vshll.u32 %v3573, 8
        %v3614 = vmul.u32.u64.compose %v3613, %v3612
        %v3615 = vextract.low.u32 %v3614
        %v3616 = vextract.high.u32 %v3614
        %v3617 = vmul.u32.u64.compose %v3613, %v3608
        %v3618 = vextract.low.u32 %v3617
        %v3619 = vextract.high.u32 %v3617
        %v3620 = vmul.u32 %v3613, %v3604
        %v3621 = vadd.s32 %v3616, %v3618
        %vm3622 = vc.u32 %v3616, %v3618
        %v3623 = vadd.s32 %v3619, 1
        %v3624 = vsel %vm3622, %v3623, %v3619
        %v3625 = vadd.s32 %v3620, %v3624
        %v3626 = vadd.s32 %v3625, 536870912
        %v3627 = vshrl.u32 %v3626, 30
        %v3628 = vshll.u32 %v3627, 30
        %v3629 = vsub.s32 %v3625, %v3628
        %vm3630 = vcmp.lt.s32.totalorder %v3629, 0
        %v3631 = vsub.s32 0, %v3629
        %v3632 = vsel %vm3630, %v3631, %v3629
        %v3633 = vclz %v3632
        %v3634 = vsub.s32 %v3633, 2
        %vm3635 = vcmp.gt.s32.totalorder 0, %v3634
        %v3636 = vsel %vm3635, 0, %v3634
        %v3637 = vsub.s32 32, %v3636
        %v3638 = vshll.u32 %v3629, %v3636
        %v3639 = vshrl.u32 %v3621, %v3637
        %v3640 = vor.u32 %v3638, %v3639
        %v3641 = vsub.s32 4294967266, %v3636
        %v3642 = vadd.s32 %v3641, 127
        %v3643 = vshll.u32 %v3642, 23
        %v3644 = vor.u32 4788187, %v3643
        %v3645 = vand.u32 2147483647, %v3644
        %v3647 = vcvt.s32.f32 %v3640
        %v3648 = vmul.f32 %v3647, %v3645
        %v3649 = vxor.u32 %v3648, 2147483648
        %v3650 = vsel %vm3567, %v3649, %v3648
        %v3651 = vsub.s32 4, %v3627
        %v3652 = vsel %vm3567, %v3651, %v3627
        %v3653 = vsel %vm3566, %v818, %v3650
        %v3654 = vsel %vm3566, 0, %v3652
        %v3655 = vcosq.f32.pop %v3653
        %v3656 = vsinq.f32.pop %v3653
        %vm3657 = vweird.f32 %v818
        %v3658 = vadd.s32 %v3654, 3
        %v3659 = vand.u32 %v3658, 3
        %vm3660 = vcmp.lt.s32.totalorder %v3659, 2
        %vm3661 = vcmp.eq.s32.totalorder %v3659, 0
        %v3662 = vxor.u32 %v3656, 2147483648
        %v3663 = vsel %vm3661, %v3655, %v3662
        %vm3664 = vcmp.eq.s32.totalorder %v3659, 2
        %v3665 = vxor.u32 %v3655, 2147483648
        %v3666 = vsel %vm3664, %v3665, %v3656
        %v3667 = vsel %vm3660, %v3663, %v3666
        %v3668 = vsel %vm3657, nan, %v3667
        %v3669 = vand.u32 2147483647, %v819
        %vm3670 = vcmp.le.f32.partialorder %v3669, 0.7853982
        %vm3671 = vcmp.lt.s32.totalorder %v819, 0
        %v3672 = vand.u32 %v819, 2139095040
        %v3673 = vshrl.u32 %v3672, 23
        %v3674 = vsub.s32 %v3673, 127
        %v3675 = vand.u32 2147483647, %v819
        %v3676 = vand.u32 %v3675, 8388607
        %v3677 = vor.u32 %v3676, 8388608
        %v3678 = vsub.s32 0, %v3677
        %v3679 = vadd.s32 %v3674, 1
        %vm3680 = vcmp.gt.s32.totalorder %v3679, 0
        %v3681 = vsel %vm3680, %v3679, 0
        %v3682 = vshrl.u32 %v3681, 5
        %v3683 = vand.u32 %v3681, 31
        %v3684 = vsub.s32 32, %v3683
        %v3685 = vshrl.u32 683565275, %v3684
        %v3686 = vshll.u32 683565275, %v3683
        %v3687 = vshrl.u32 2475754826, %v3684
        %v3688 = vor.u32 %v3686, %v3687
        %v3689 = vshll.u32 2475754826, %v3683
        %v3690 = vshrl.u32 2131351028, %v3684
        %v3691 = vor.u32 %v3689, %v3690
        %v3692 = vshll.u32 2131351028, %v3683
        %v3693 = vshrl.u32 2102212464, %v3684
        %v3694 = vor.u32 %v3692, %v3693
        %v3695 = vshll.u32 2102212464, %v3683
        %v3696 = vshrl.u32 920167782, %v3684
        %v3697 = vor.u32 %v3695, %v3696
        %v3698 = vshll.u32 920167782, %v3683
        %v3699 = vshrl.u32 1326507024, %v3684
        %v3700 = vor.u32 %v3698, %v3699
        %vm3701 = vcmp.lt.s32.totalorder %v3682, 1
        %vm3702 = vcmp.lt.s32.totalorder %v3682, 2
        %vm3703 = vcmp.lt.s32.totalorder %v3682, 3
        %vm3704 = vcmp.lt.s32.totalorder %v3682, 4
        %v3705 = vsel %vm3701, %v3685, %v3688
        %v3706 = vsel %vm3704, %v3694, 2102212464
        %v3707 = vsel %vm3703, %v3691, %v3706
        %v3708 = vsel %vm3702, %v3705, %v3707
        %v3709 = vsel %vm3701, %v3688, %v3691
        %v3710 = vsel %vm3704, %v3697, 920167782
        %v3711 = vsel %vm3703, %v3694, %v3710
        %v3712 = vsel %vm3702, %v3709, %v3711
        %v3713 = vsel %vm3701, %v3691, %v3694
        %v3714 = vsel %vm3704, %v3700, 1326507024
        %v3715 = vsel %vm3703, %v3697, %v3714
        %v3716 = vsel %vm3702, %v3713, %v3715
        %v3717 = vshll.u32 %v3677, 8
        %v3718 = vmul.u32.u64.compose %v3717, %v3716
        %v3719 = vextract.low.u32 %v3718
        %v3720 = vextract.high.u32 %v3718
        %v3721 = vmul.u32.u64.compose %v3717, %v3712
        %v3722 = vextract.low.u32 %v3721
        %v3723 = vextract.high.u32 %v3721
        %v3724 = vmul.u32 %v3717, %v3708
        %v3725 = vadd.s32 %v3720, %v3722
        %vm3726 = vc.u32 %v3720, %v3722
        %v3727 = vadd.s32 %v3723, 1
        %v3728 = vsel %vm3726, %v3727, %v3723
        %v3729 = vadd.s32 %v3724, %v3728
        %v3730 = vadd.s32 %v3729, 536870912
        %v3731 = vshrl.u32 %v3730, 30
        %v3732 = vshll.u32 %v3731, 30
        %v3733 = vsub.s32 %v3729, %v3732
        %vm3734 = vcmp.lt.s32.totalorder %v3733, 0
        %v3735 = vsub.s32 0, %v3733
        %v3736 = vsel %vm3734, %v3735, %v3733
        %v3737 = vclz %v3736
        %v3738 = vsub.s32 %v3737, 2
        %vm3739 = vcmp.gt.s32.totalorder 0, %v3738
        %v3740 = vsel %vm3739, 0, %v3738
        %v3741 = vsub.s32 32, %v3740
        %v3742 = vshll.u32 %v3733, %v3740
        %v3743 = vshrl.u32 %v3725, %v3741
        %v3744 = vor.u32 %v3742, %v3743
        %v3745 = vsub.s32 4294967266, %v3740
        %v3746 = vadd.s32 %v3745, 127
        %v3747 = vshll.u32 %v3746, 23
        %v3748 = vor.u32 4788187, %v3747
        %v3749 = vand.u32 2147483647, %v3748
        %v3751 = vcvt.s32.f32 %v3744
        %v3752 = vmul.f32 %v3751, %v3749
        %v3753 = vxor.u32 %v3752, 2147483648
        %v3754 = vsel %vm3671, %v3753, %v3752
        %v3755 = vsub.s32 4, %v3731
        %v3756 = vsel %vm3671, %v3755, %v3731
        %v3757 = vsel %vm3670, %v819, %v3754
        %v3758 = vsel %vm3670, 0, %v3756
        %v3759 = vcosq.f32.pop %v3757
        %v3760 = vsinq.f32.pop %v3757
        %vm3761 = vweird.f32 %v819
        %v3762 = vadd.s32 %v3758, 3
        %v3763 = vand.u32 %v3762, 3
        %vm3764 = vcmp.lt.s32.totalorder %v3763, 2
        %vm3765 = vcmp.eq.s32.totalorder %v3763, 0
        %v3766 = vxor.u32 %v3760, 2147483648
        %v3767 = vsel %vm3765, %v3759, %v3766
        %vm3768 = vcmp.eq.s32.totalorder %v3763, 2
        %v3769 = vxor.u32 %v3759, 2147483648
        %v3770 = vsel %vm3768, %v3769, %v3760
        %v3771 = vsel %vm3764, %v3767, %v3770
        %v3772 = vsel %vm3761, nan, %v3771
        %v3773 = vand.u32 2147483647, %v820
        %vm3774 = vcmp.le.f32.partialorder %v3773, 0.7853982
        %vm3775 = vcmp.lt.s32.totalorder %v820, 0
        %v3776 = vand.u32 %v820, 2139095040
        %v3777 = vshrl.u32 %v3776, 23
        %v3778 = vsub.s32 %v3777, 127
        %v3779 = vand.u32 2147483647, %v820
        %v3780 = vand.u32 %v3779, 8388607
        %v3781 = vor.u32 %v3780, 8388608
        %v3782 = vsub.s32 0, %v3781
        %v3783 = vadd.s32 %v3778, 1
        %vm3784 = vcmp.gt.s32.totalorder %v3783, 0
        %v3785 = vsel %vm3784, %v3783, 0
        %v3786 = vshrl.u32 %v3785, 5
        %v3787 = vand.u32 %v3785, 31
        %v3788 = vsub.s32 32, %v3787
        %v3789 = vshrl.u32 683565275, %v3788
        %v3790 = vshll.u32 683565275, %v3787
        %v3791 = vshrl.u32 2475754826, %v3788
        %v3792 = vor.u32 %v3790, %v3791
        %v3793 = vshll.u32 2475754826, %v3787
        %v3794 = vshrl.u32 2131351028, %v3788
        %v3795 = vor.u32 %v3793, %v3794
        %v3796 = vshll.u32 2131351028, %v3787
        %v3797 = vshrl.u32 2102212464, %v3788
        %v3798 = vor.u32 %v3796, %v3797
        %v3799 = vshll.u32 2102212464, %v3787
        %v3800 = vshrl.u32 920167782, %v3788
        %v3801 = vor.u32 %v3799, %v3800
        %v3802 = vshll.u32 920167782, %v3787
        %v3803 = vshrl.u32 1326507024, %v3788
        %v3804 = vor.u32 %v3802, %v3803
        %vm3805 = vcmp.lt.s32.totalorder %v3786, 1
        %vm3806 = vcmp.lt.s32.totalorder %v3786, 2
        %vm3807 = vcmp.lt.s32.totalorder %v3786, 3
        %vm3808 = vcmp.lt.s32.totalorder %v3786, 4
        %v3809 = vsel %vm3805, %v3789, %v3792
        %v3810 = vsel %vm3808, %v3798, 2102212464
        %v3811 = vsel %vm3807, %v3795, %v3810
        %v3812 = vsel %vm3806, %v3809, %v3811
        %v3813 = vsel %vm3805, %v3792, %v3795
        %v3814 = vsel %vm3808, %v3801, 920167782
        %v3815 = vsel %vm3807, %v3798, %v3814
        %v3816 = vsel %vm3806, %v3813, %v3815
        %v3817 = vsel %vm3805, %v3795, %v3798
        %v3818 = vsel %vm3808, %v3804, 1326507024
        %v3819 = vsel %vm3807, %v3801, %v3818
        %v3820 = vsel %vm3806, %v3817, %v3819
        %v3821 = vshll.u32 %v3781, 8
        %v3822 = vmul.u32.u64.compose %v3821, %v3820
        %v3823 = vextract.low.u32 %v3822
        %v3824 = vextract.high.u32 %v3822
        %v3825 = vmul.u32.u64.compose %v3821, %v3816
        %v3826 = vextract.low.u32 %v3825
        %v3827 = vextract.high.u32 %v3825
        %v3828 = vmul.u32 %v3821, %v3812
        %v3829 = vadd.s32 %v3824, %v3826
        %vm3830 = vc.u32 %v3824, %v3826
        %v3831 = vadd.s32 %v3827, 1
        %v3832 = vsel %vm3830, %v3831, %v3827
        %v3833 = vadd.s32 %v3828, %v3832
        %v3834 = vadd.s32 %v3833, 536870912
        %v3835 = vshrl.u32 %v3834, 30
        %v3836 = vshll.u32 %v3835, 30
        %v3837 = vsub.s32 %v3833, %v3836
        %vm3838 = vcmp.lt.s32.totalorder %v3837, 0
        %v3839 = vsub.s32 0, %v3837
        %v3840 = vsel %vm3838, %v3839, %v3837
        %v3841 = vclz %v3840
        %v3842 = vsub.s32 %v3841, 2
        %vm3843 = vcmp.gt.s32.totalorder 0, %v3842
        %v3844 = vsel %vm3843, 0, %v3842
        %v3845 = vsub.s32 32, %v3844
        %v3846 = vshll.u32 %v3837, %v3844
        %v3847 = vshrl.u32 %v3829, %v3845
        %v3848 = vor.u32 %v3846, %v3847
        %v3849 = vsub.s32 4294967266, %v3844
        %v3850 = vadd.s32 %v3849, 127
        %v3851 = vshll.u32 %v3850, 23
        %v3852 = vor.u32 4788187, %v3851
        %v3853 = vand.u32 2147483647, %v3852
        %v3855 = vcvt.s32.f32 %v3848
        %v3856 = vmul.f32 %v3855, %v3853
        %v3857 = vxor.u32 %v3856, 2147483648
        %v3858 = vsel %vm3775, %v3857, %v3856
        %v3859 = vsub.s32 4, %v3835
        %v3860 = vsel %vm3775, %v3859, %v3835
        %v3861 = vsel %vm3774, %v820, %v3858
        %v3862 = vsel %vm3774, 0, %v3860
        %v3863 = vcosq.f32.pop %v3861
        %v3864 = vsinq.f32.pop %v3861
        %vm3865 = vweird.f32 %v820
        %v3866 = vadd.s32 %v3862, 3
        %v3867 = vand.u32 %v3866, 3
        %vm3868 = vcmp.lt.s32.totalorder %v3867, 2
        %vm3869 = vcmp.eq.s32.totalorder %v3867, 0
        %v3870 = vxor.u32 %v3864, 2147483648
        %v3871 = vsel %vm3869, %v3863, %v3870
        %vm3872 = vcmp.eq.s32.totalorder %v3867, 2
        %v3873 = vxor.u32 %v3863, 2147483648
        %v3874 = vsel %vm3872, %v3873, %v3864
        %v3875 = vsel %vm3868, %v3871, %v3874
        %v3876 = vsel %vm3865, nan, %v3875
        %v3877 = vand.u32 2147483647, %v821
        %vm3878 = vcmp.le.f32.partialorder %v3877, 0.7853982
        %vm3879 = vcmp.lt.s32.totalorder %v821, 0
        %v3880 = vand.u32 %v821, 2139095040
        %v3881 = vshrl.u32 %v3880, 23
        %v3882 = vsub.s32 %v3881, 127
        %v3883 = vand.u32 2147483647, %v821
        %v3884 = vand.u32 %v3883, 8388607
        %v3885 = vor.u32 %v3884, 8388608
        %v3886 = vsub.s32 0, %v3885
        %v3887 = vadd.s32 %v3882, 1
        %vm3888 = vcmp.gt.s32.totalorder %v3887, 0
        %v3889 = vsel %vm3888, %v3887, 0
        %v3890 = vshrl.u32 %v3889, 5
        %v3891 = vand.u32 %v3889, 31
        %v3892 = vsub.s32 32, %v3891
        %v3893 = vshrl.u32 683565275, %v3892
        %v3894 = vshll.u32 683565275, %v3891
        %v3895 = vshrl.u32 2475754826, %v3892
        %v3896 = vor.u32 %v3894, %v3895
        %v3897 = vshll.u32 2475754826, %v3891
        %v3898 = vshrl.u32 2131351028, %v3892
        %v3899 = vor.u32 %v3897, %v3898
        %v3900 = vshll.u32 2131351028, %v3891
        %v3901 = vshrl.u32 2102212464, %v3892
        %v3902 = vor.u32 %v3900, %v3901
        %v3903 = vshll.u32 2102212464, %v3891
        %v3904 = vshrl.u32 920167782, %v3892
        %v3905 = vor.u32 %v3903, %v3904
        %v3906 = vshll.u32 920167782, %v3891
        %v3907 = vshrl.u32 1326507024, %v3892
        %v3908 = vor.u32 %v3906, %v3907
        %vm3909 = vcmp.lt.s32.totalorder %v3890, 1
        %vm3910 = vcmp.lt.s32.totalorder %v3890, 2
        %vm3911 = vcmp.lt.s32.totalorder %v3890, 3
        %vm3912 = vcmp.lt.s32.totalorder %v3890, 4
        %v3913 = vsel %vm3909, %v3893, %v3896
        %v3914 = vsel %vm3912, %v3902, 2102212464
        %v3915 = vsel %vm3911, %v3899, %v3914
        %v3916 = vsel %vm3910, %v3913, %v3915
        %v3917 = vsel %vm3909, %v3896, %v3899
        %v3918 = vsel %vm3912, %v3905, 920167782
        %v3919 = vsel %vm3911, %v3902, %v3918
        %v3920 = vsel %vm3910, %v3917, %v3919
        %v3921 = vsel %vm3909, %v3899, %v3902
        %v3922 = vsel %vm3912, %v3908, 1326507024
        %v3923 = vsel %vm3911, %v3905, %v3922
        %v3924 = vsel %vm3910, %v3921, %v3923
        %v3925 = vshll.u32 %v3885, 8
        %v3926 = vmul.u32.u64.compose %v3925, %v3924
        %v3927 = vextract.low.u32 %v3926
        %v3928 = vextract.high.u32 %v3926
        %v3929 = vmul.u32.u64.compose %v3925, %v3920
        %v3930 = vextract.low.u32 %v3929
        %v3931 = vextract.high.u32 %v3929
        %v3932 = vmul.u32 %v3925, %v3916
        %v3933 = vadd.s32 %v3928, %v3930
        %vm3934 = vc.u32 %v3928, %v3930
        %v3935 = vadd.s32 %v3931, 1
        %v3936 = vsel %vm3934, %v3935, %v3931
        %v3937 = vadd.s32 %v3932, %v3936
        %v3938 = vadd.s32 %v3937, 536870912
        %v3939 = vshrl.u32 %v3938, 30
        %v3940 = vshll.u32 %v3939, 30
        %v3941 = vsub.s32 %v3937, %v3940
        %vm3942 = vcmp.lt.s32.totalorder %v3941, 0
        %v3943 = vsub.s32 0, %v3941
        %v3944 = vsel %vm3942, %v3943, %v3941
        %v3945 = vclz %v3944
        %v3946 = vsub.s32 %v3945, 2
        %vm3947 = vcmp.gt.s32.totalorder 0, %v3946
        %v3948 = vsel %vm3947, 0, %v3946
        %v3949 = vsub.s32 32, %v3948
        %v3950 = vshll.u32 %v3941, %v3948
        %v3951 = vshrl.u32 %v3933, %v3949
        %v3952 = vor.u32 %v3950, %v3951
        %v3953 = vsub.s32 4294967266, %v3948
        %v3954 = vadd.s32 %v3953, 127
        %v3955 = vshll.u32 %v3954, 23
        %v3956 = vor.u32 4788187, %v3955
        %v3957 = vand.u32 2147483647, %v3956
        %v3959 = vcvt.s32.f32 %v3952
        %v3960 = vmul.f32 %v3959, %v3957
        %v3961 = vxor.u32 %v3960, 2147483648
        %v3962 = vsel %vm3879, %v3961, %v3960
        %v3963 = vsub.s32 4, %v3939
        %v3964 = vsel %vm3879, %v3963, %v3939
        %v3965 = vsel %vm3878, %v821, %v3962
        %v3966 = vsel %vm3878, 0, %v3964
        %v3967 = vcosq.f32.pop %v3965
        %v3968 = vsinq.f32.pop %v3965
        %vm3969 = vweird.f32 %v821
        %v3970 = vadd.s32 %v3966, 3
        %v3971 = vand.u32 %v3970, 3
        %vm3972 = vcmp.lt.s32.totalorder %v3971, 2
        %vm3973 = vcmp.eq.s32.totalorder %v3971, 0
        %v3974 = vxor.u32 %v3968, 2147483648
        %v3975 = vsel %vm3973, %v3967, %v3974
        %vm3976 = vcmp.eq.s32.totalorder %v3971, 2
        %v3977 = vxor.u32 %v3967, 2147483648
        %v3978 = vsel %vm3976, %v3977, %v3968
        %v3979 = vsel %vm3972, %v3975, %v3978
        %v3980 = vsel %vm3969, nan, %v3979
        %v3981 = vand.u32 2147483647, %v822
        %vm3982 = vcmp.le.f32.partialorder %v3981, 0.7853982
        %vm3983 = vcmp.lt.s32.totalorder %v822, 0
        %v3984 = vand.u32 %v822, 2139095040
        %v3985 = vshrl.u32 %v3984, 23
        %v3986 = vsub.s32 %v3985, 127
        %v3987 = vand.u32 2147483647, %v822
        %v3988 = vand.u32 %v3987, 8388607
        %v3989 = vor.u32 %v3988, 8388608
        %v3990 = vsub.s32 0, %v3989
        %v3991 = vadd.s32 %v3986, 1
        %vm3992 = vcmp.gt.s32.totalorder %v3991, 0
        %v3993 = vsel %vm3992, %v3991, 0
        %v3994 = vshrl.u32 %v3993, 5
        %v3995 = vand.u32 %v3993, 31
        %v3996 = vsub.s32 32, %v3995
        %v3997 = vshrl.u32 683565275, %v3996
        %v3998 = vshll.u32 683565275, %v3995
        %v3999 = vshrl.u32 2475754826, %v3996
        %v4000 = vor.u32 %v3998, %v3999
        %v4001 = vshll.u32 2475754826, %v3995
        %v4002 = vshrl.u32 2131351028, %v3996
        %v4003 = vor.u32 %v4001, %v4002
        %v4004 = vshll.u32 2131351028, %v3995
        %v4005 = vshrl.u32 2102212464, %v3996
        %v4006 = vor.u32 %v4004, %v4005
        %v4007 = vshll.u32 2102212464, %v3995
        %v4008 = vshrl.u32 920167782, %v3996
        %v4009 = vor.u32 %v4007, %v4008
        %v4010 = vshll.u32 920167782, %v3995
        %v4011 = vshrl.u32 1326507024, %v3996
        %v4012 = vor.u32 %v4010, %v4011
        %vm4013 = vcmp.lt.s32.totalorder %v3994, 1
        %vm4014 = vcmp.lt.s32.totalorder %v3994, 2
        %vm4015 = vcmp.lt.s32.totalorder %v3994, 3
        %vm4016 = vcmp.lt.s32.totalorder %v3994, 4
        %v4017 = vsel %vm4013, %v3997, %v4000
        %v4018 = vsel %vm4016, %v4006, 2102212464
        %v4019 = vsel %vm4015, %v4003, %v4018
        %v4020 = vsel %vm4014, %v4017, %v4019
        %v4021 = vsel %vm4013, %v4000, %v4003
        %v4022 = vsel %vm4016, %v4009, 920167782
        %v4023 = vsel %vm4015, %v4006, %v4022
        %v4024 = vsel %vm4014, %v4021, %v4023
        %v4025 = vsel %vm4013, %v4003, %v4006
        %v4026 = vsel %vm4016, %v4012, 1326507024
        %v4027 = vsel %vm4015, %v4009, %v4026
        %v4028 = vsel %vm4014, %v4025, %v4027
        %v4029 = vshll.u32 %v3989, 8
        %v4030 = vmul.u32.u64.compose %v4029, %v4028
        %v4031 = vextract.low.u32 %v4030
        %v4032 = vextract.high.u32 %v4030
        %v4033 = vmul.u32.u64.compose %v4029, %v4024
        %v4034 = vextract.low.u32 %v4033
        %v4035 = vextract.high.u32 %v4033
        %v4036 = vmul.u32 %v4029, %v4020
        %v4037 = vadd.s32 %v4032, %v4034
        %vm4038 = vc.u32 %v4032, %v4034
        %v4039 = vadd.s32 %v4035, 1
        %v4040 = vsel %vm4038, %v4039, %v4035
        %v4041 = vadd.s32 %v4036, %v4040
        %v4042 = vadd.s32 %v4041, 536870912
        %v4043 = vshrl.u32 %v4042, 30
        %v4044 = vshll.u32 %v4043, 30
        %v4045 = vsub.s32 %v4041, %v4044
        %vm4046 = vcmp.lt.s32.totalorder %v4045, 0
        %v4047 = vsub.s32 0, %v4045
        %v4048 = vsel %vm4046, %v4047, %v4045
        %v4049 = vclz %v4048
        %v4050 = vsub.s32 %v4049, 2
        %vm4051 = vcmp.gt.s32.totalorder 0, %v4050
        %v4052 = vsel %vm4051, 0, %v4050
        %v4053 = vsub.s32 32, %v4052
        %v4054 = vshll.u32 %v4045, %v4052
        %v4055 = vshrl.u32 %v4037, %v4053
        %v4056 = vor.u32 %v4054, %v4055
        %v4057 = vsub.s32 4294967266, %v4052
        %v4058 = vadd.s32 %v4057, 127
        %v4059 = vshll.u32 %v4058, 23
        %v4060 = vor.u32 4788187, %v4059
        %v4061 = vand.u32 2147483647, %v4060
        %v4063 = vcvt.s32.f32 %v4056
        %v4064 = vmul.f32 %v4063, %v4061
        %v4065 = vxor.u32 %v4064, 2147483648
        %v4066 = vsel %vm3983, %v4065, %v4064
        %v4067 = vsub.s32 4, %v4043
        %v4068 = vsel %vm3983, %v4067, %v4043
        %v4069 = vsel %vm3982, %v822, %v4066
        %v4070 = vsel %vm3982, 0, %v4068
        %v4071 = vcosq.f32.pop %v4069
        %v4072 = vsinq.f32.pop %v4069
        %vm4073 = vweird.f32 %v822
        %v4074 = vadd.s32 %v4070, 3
        %v4075 = vand.u32 %v4074, 3
        %vm4076 = vcmp.lt.s32.totalorder %v4075, 2
        %vm4077 = vcmp.eq.s32.totalorder %v4075, 0
        %v4078 = vxor.u32 %v4072, 2147483648
        %v4079 = vsel %vm4077, %v4071, %v4078
        %vm4080 = vcmp.eq.s32.totalorder %v4075, 2
        %v4081 = vxor.u32 %v4071, 2147483648
        %v4082 = vsel %vm4080, %v4081, %v4072
        %v4083 = vsel %vm4076, %v4079, %v4082
        %v4084 = vsel %vm4073, nan, %v4083
        %v4085 = vand.u32 2147483647, %v823
        %vm4086 = vcmp.le.f32.partialorder %v4085, 0.7853982
        %vm4087 = vcmp.lt.s32.totalorder %v823, 0
        %v4088 = vand.u32 %v823, 2139095040
        %v4089 = vshrl.u32 %v4088, 23
        %v4090 = vsub.s32 %v4089, 127
        %v4091 = vand.u32 2147483647, %v823
        %v4092 = vand.u32 %v4091, 8388607
        %v4093 = vor.u32 %v4092, 8388608
        %v4094 = vsub.s32 0, %v4093
        %v4095 = vadd.s32 %v4090, 1
        %vm4096 = vcmp.gt.s32.totalorder %v4095, 0
        %v4097 = vsel %vm4096, %v4095, 0
        %v4098 = vshrl.u32 %v4097, 5
        %v4099 = vand.u32 %v4097, 31
        %v4100 = vsub.s32 32, %v4099
        %v4101 = vshrl.u32 683565275, %v4100
        %v4102 = vshll.u32 683565275, %v4099
        %v4103 = vshrl.u32 2475754826, %v4100
        %v4104 = vor.u32 %v4102, %v4103
        %v4105 = vshll.u32 2475754826, %v4099
        %v4106 = vshrl.u32 2131351028, %v4100
        %v4107 = vor.u32 %v4105, %v4106
        %v4108 = vshll.u32 2131351028, %v4099
        %v4109 = vshrl.u32 2102212464, %v4100
        %v4110 = vor.u32 %v4108, %v4109
        %v4111 = vshll.u32 2102212464, %v4099
        %v4112 = vshrl.u32 920167782, %v4100
        %v4113 = vor.u32 %v4111, %v4112
        %v4114 = vshll.u32 920167782, %v4099
        %v4115 = vshrl.u32 1326507024, %v4100
        %v4116 = vor.u32 %v4114, %v4115
        %vm4117 = vcmp.lt.s32.totalorder %v4098, 1
        %vm4118 = vcmp.lt.s32.totalorder %v4098, 2
        %vm4119 = vcmp.lt.s32.totalorder %v4098, 3
        %vm4120 = vcmp.lt.s32.totalorder %v4098, 4
        %v4121 = vsel %vm4117, %v4101, %v4104
        %v4122 = vsel %vm4120, %v4110, 2102212464
        %v4123 = vsel %vm4119, %v4107, %v4122
        %v4124 = vsel %vm4118, %v4121, %v4123
        %v4125 = vsel %vm4117, %v4104, %v4107
        %v4126 = vsel %vm4120, %v4113, 920167782
        %v4127 = vsel %vm4119, %v4110, %v4126
        %v4128 = vsel %vm4118, %v4125, %v4127
        %v4129 = vsel %vm4117, %v4107, %v4110
        %v4130 = vsel %vm4120, %v4116, 1326507024
        %v4131 = vsel %vm4119, %v4113, %v4130
        %v4132 = vsel %vm4118, %v4129, %v4131
        %v4133 = vshll.u32 %v4093, 8
        %v4134 = vmul.u32.u64.compose %v4133, %v4132
        %v4135 = vextract.low.u32 %v4134
        %v4136 = vextract.high.u32 %v4134
        %v4137 = vmul.u32.u64.compose %v4133, %v4128
        %v4138 = vextract.low.u32 %v4137
        %v4139 = vextract.high.u32 %v4137
        %v4140 = vmul.u32 %v4133, %v4124
        %v4141 = vadd.s32 %v4136, %v4138
        %vm4142 = vc.u32 %v4136, %v4138
        %v4143 = vadd.s32 %v4139, 1
        %v4144 = vsel %vm4142, %v4143, %v4139
        %v4145 = vadd.s32 %v4140, %v4144
        %v4146 = vadd.s32 %v4145, 536870912
        %v4147 = vshrl.u32 %v4146, 30
        %v4148 = vshll.u32 %v4147, 30
        %v4149 = vsub.s32 %v4145, %v4148
        %vm4150 = vcmp.lt.s32.totalorder %v4149, 0
        %v4151 = vsub.s32 0, %v4149
        %v4152 = vsel %vm4150, %v4151, %v4149
        %v4153 = vclz %v4152
        %v4154 = vsub.s32 %v4153, 2
        %vm4155 = vcmp.gt.s32.totalorder 0, %v4154
        %v4156 = vsel %vm4155, 0, %v4154
        %v4157 = vsub.s32 32, %v4156
        %v4158 = vshll.u32 %v4149, %v4156
        %v4159 = vshrl.u32 %v4141, %v4157
        %v4160 = vor.u32 %v4158, %v4159
        %v4161 = vsub.s32 4294967266, %v4156
        %v4162 = vadd.s32 %v4161, 127
        %v4163 = vshll.u32 %v4162, 23
        %v4164 = vor.u32 4788187, %v4163
        %v4165 = vand.u32 2147483647, %v4164
        %v4167 = vcvt.s32.f32 %v4160
        %v4168 = vmul.f32 %v4167, %v4165
        %v4169 = vxor.u32 %v4168, 2147483648
        %v4170 = vsel %vm4087, %v4169, %v4168
        %v4171 = vsub.s32 4, %v4147
        %v4172 = vsel %vm4087, %v4171, %v4147
        %v4173 = vsel %vm4086, %v823, %v4170
        %v4174 = vsel %vm4086, 0, %v4172
        %v4175 = vcosq.f32.pop %v4173
        %v4176 = vsinq.f32.pop %v4173
        %vm4177 = vweird.f32 %v823
        %v4178 = vadd.s32 %v4174, 3
        %v4179 = vand.u32 %v4178, 3
        %vm4180 = vcmp.lt.s32.totalorder %v4179, 2
        %vm4181 = vcmp.eq.s32.totalorder %v4179, 0
        %v4182 = vxor.u32 %v4176, 2147483648
        %v4183 = vsel %vm4181, %v4175, %v4182
        %vm4184 = vcmp.eq.s32.totalorder %v4179, 2
        %v4185 = vxor.u32 %v4175, 2147483648
        %v4186 = vsel %vm4184, %v4185, %v4176
        %v4187 = vsel %vm4180, %v4183, %v4186
        %v4188 = vsel %vm4177, nan, %v4187
        %v4189 = vand.u32 2147483647, %v824
        %vm4190 = vcmp.le.f32.partialorder %v4189, 0.7853982
        %vm4191 = vcmp.lt.s32.totalorder %v824, 0
        %v4192 = vand.u32 %v824, 2139095040
        %v4193 = vshrl.u32 %v4192, 23
        %v4194 = vsub.s32 %v4193, 127
        %v4195 = vand.u32 2147483647, %v824
        %v4196 = vand.u32 %v4195, 8388607
        %v4197 = vor.u32 %v4196, 8388608
        %v4198 = vsub.s32 0, %v4197
        %v4199 = vadd.s32 %v4194, 1
        %vm4200 = vcmp.gt.s32.totalorder %v4199, 0
        %v4201 = vsel %vm4200, %v4199, 0
        %v4202 = vshrl.u32 %v4201, 5
        %v4203 = vand.u32 %v4201, 31
        %v4204 = vsub.s32 32, %v4203
        %v4205 = vshrl.u32 683565275, %v4204
        %v4206 = vshll.u32 683565275, %v4203
        %v4207 = vshrl.u32 2475754826, %v4204
        %v4208 = vor.u32 %v4206, %v4207
        %v4209 = vshll.u32 2475754826, %v4203
        %v4210 = vshrl.u32 2131351028, %v4204
        %v4211 = vor.u32 %v4209, %v4210
        %v4212 = vshll.u32 2131351028, %v4203
        %v4213 = vshrl.u32 2102212464, %v4204
        %v4214 = vor.u32 %v4212, %v4213
        %v4215 = vshll.u32 2102212464, %v4203
        %v4216 = vshrl.u32 920167782, %v4204
        %v4217 = vor.u32 %v4215, %v4216
        %v4218 = vshll.u32 920167782, %v4203
        %v4219 = vshrl.u32 1326507024, %v4204
        %v4220 = vor.u32 %v4218, %v4219
        %vm4221 = vcmp.lt.s32.totalorder %v4202, 1
        %vm4222 = vcmp.lt.s32.totalorder %v4202, 2
        %vm4223 = vcmp.lt.s32.totalorder %v4202, 3
        %vm4224 = vcmp.lt.s32.totalorder %v4202, 4
        %v4225 = vsel %vm4221, %v4205, %v4208
        %v4226 = vsel %vm4224, %v4214, 2102212464
        %v4227 = vsel %vm4223, %v4211, %v4226
        %v4228 = vsel %vm4222, %v4225, %v4227
        %v4229 = vsel %vm4221, %v4208, %v4211
        %v4230 = vsel %vm4224, %v4217, 920167782
        %v4231 = vsel %vm4223, %v4214, %v4230
        %v4232 = vsel %vm4222, %v4229, %v4231
        %v4233 = vsel %vm4221, %v4211, %v4214
        %v4234 = vsel %vm4224, %v4220, 1326507024
        %v4235 = vsel %vm4223, %v4217, %v4234
        %v4236 = vsel %vm4222, %v4233, %v4235
        %v4237 = vshll.u32 %v4197, 8
        %v4238 = vmul.u32.u64.compose %v4237, %v4236
        %v4239 = vextract.low.u32 %v4238
        %v4240 = vextract.high.u32 %v4238
        %v4241 = vmul.u32.u64.compose %v4237, %v4232
        %v4242 = vextract.low.u32 %v4241
        %v4243 = vextract.high.u32 %v4241
        %v4244 = vmul.u32 %v4237, %v4228
        %v4245 = vadd.s32 %v4240, %v4242
        %vm4246 = vc.u32 %v4240, %v4242
        %v4247 = vadd.s32 %v4243, 1
        %v4248 = vsel %vm4246, %v4247, %v4243
        %v4249 = vadd.s32 %v4244, %v4248
        %v4250 = vadd.s32 %v4249, 536870912
        %v4251 = vshrl.u32 %v4250, 30
        %v4252 = vshll.u32 %v4251, 30
        %v4253 = vsub.s32 %v4249, %v4252
        %vm4254 = vcmp.lt.s32.totalorder %v4253, 0
        %v4255 = vsub.s32 0, %v4253
        %v4256 = vsel %vm4254, %v4255, %v4253
        %v4257 = vclz %v4256
        %v4258 = vsub.s32 %v4257, 2
        %vm4259 = vcmp.gt.s32.totalorder 0, %v4258
        %v4260 = vsel %vm4259, 0, %v4258
        %v4261 = vsub.s32 32, %v4260
        %v4262 = vshll.u32 %v4253, %v4260
        %v4263 = vshrl.u32 %v4245, %v4261
        %v4264 = vor.u32 %v4262, %v4263
        %v4265 = vsub.s32 4294967266, %v4260
        %v4266 = vadd.s32 %v4265, 127
        %v4267 = vshll.u32 %v4266, 23
        %v4268 = vor.u32 4788187, %v4267
        %v4269 = vand.u32 2147483647, %v4268
        %v4271 = vcvt.s32.f32 %v4264
        %v4272 = vmul.f32 %v4271, %v4269
        %v4273 = vxor.u32 %v4272, 2147483648
        %v4274 = vsel %vm4191, %v4273, %v4272
        %v4275 = vsub.s32 4, %v4251
        %v4276 = vsel %vm4191, %v4275, %v4251
        %v4277 = vsel %vm4190, %v824, %v4274
        %v4278 = vsel %vm4190, 0, %v4276
        %v4279 = vcosq.f32.pop %v4277
        %v4280 = vsinq.f32.pop %v4277
        %vm4281 = vweird.f32 %v824
        %v4282 = vadd.s32 %v4278, 3
        %v4283 = vand.u32 %v4282, 3
        %vm4284 = vcmp.lt.s32.totalorder %v4283, 2
        %vm4285 = vcmp.eq.s32.totalorder %v4283, 0
        %v4286 = vxor.u32 %v4280, 2147483648
        %v4287 = vsel %vm4285, %v4279, %v4286
        %vm4288 = vcmp.eq.s32.totalorder %v4283, 2
        %v4289 = vxor.u32 %v4279, 2147483648
        %v4290 = vsel %vm4288, %v4289, %v4280
        %v4291 = vsel %vm4284, %v4287, %v4290
        %v4292 = vsel %vm4281, nan, %v4291
        %v4293 = vand.u32 2147483647, %v825
        %vm4294 = vcmp.le.f32.partialorder %v4293, 0.7853982
        %vm4295 = vcmp.lt.s32.totalorder %v825, 0
        %v4296 = vand.u32 %v825, 2139095040
        %v4297 = vshrl.u32 %v4296, 23
        %v4298 = vsub.s32 %v4297, 127
        %v4299 = vand.u32 2147483647, %v825
        %v4300 = vand.u32 %v4299, 8388607
        %v4301 = vor.u32 %v4300, 8388608
        %v4302 = vsub.s32 0, %v4301
        %v4303 = vadd.s32 %v4298, 1
        %vm4304 = vcmp.gt.s32.totalorder %v4303, 0
        %v4305 = vsel %vm4304, %v4303, 0
        %v4306 = vshrl.u32 %v4305, 5
        %v4307 = vand.u32 %v4305, 31
        %v4308 = vsub.s32 32, %v4307
        %v4309 = vshrl.u32 683565275, %v4308
        %v4310 = vshll.u32 683565275, %v4307
        %v4311 = vshrl.u32 2475754826, %v4308
        %v4312 = vor.u32 %v4310, %v4311
        %v4313 = vshll.u32 2475754826, %v4307
        %v4314 = vshrl.u32 2131351028, %v4308
        %v4315 = vor.u32 %v4313, %v4314
        %v4316 = vshll.u32 2131351028, %v4307
        %v4317 = vshrl.u32 2102212464, %v4308
        %v4318 = vor.u32 %v4316, %v4317
        %v4319 = vshll.u32 2102212464, %v4307
        %v4320 = vshrl.u32 920167782, %v4308
        %v4321 = vor.u32 %v4319, %v4320
        %v4322 = vshll.u32 920167782, %v4307
        %v4323 = vshrl.u32 1326507024, %v4308
        %v4324 = vor.u32 %v4322, %v4323
        %vm4325 = vcmp.lt.s32.totalorder %v4306, 1
        %vm4326 = vcmp.lt.s32.totalorder %v4306, 2
        %vm4327 = vcmp.lt.s32.totalorder %v4306, 3
        %vm4328 = vcmp.lt.s32.totalorder %v4306, 4
        %v4329 = vsel %vm4325, %v4309, %v4312
        %v4330 = vsel %vm4328, %v4318, 2102212464
        %v4331 = vsel %vm4327, %v4315, %v4330
        %v4332 = vsel %vm4326, %v4329, %v4331
        %v4333 = vsel %vm4325, %v4312, %v4315
        %v4334 = vsel %vm4328, %v4321, 920167782
        %v4335 = vsel %vm4327, %v4318, %v4334
        %v4336 = vsel %vm4326, %v4333, %v4335
        %v4337 = vsel %vm4325, %v4315, %v4318
        %v4338 = vsel %vm4328, %v4324, 1326507024
        %v4339 = vsel %vm4327, %v4321, %v4338
        %v4340 = vsel %vm4326, %v4337, %v4339
        %v4341 = vshll.u32 %v4301, 8
        %v4342 = vmul.u32.u64.compose %v4341, %v4340
        %v4343 = vextract.low.u32 %v4342
        %v4344 = vextract.high.u32 %v4342
        %v4345 = vmul.u32.u64.compose %v4341, %v4336
        %v4346 = vextract.low.u32 %v4345
        %v4347 = vextract.high.u32 %v4345
        %v4348 = vmul.u32 %v4341, %v4332
        %v4349 = vadd.s32 %v4344, %v4346
        %vm4350 = vc.u32 %v4344, %v4346
        %v4351 = vadd.s32 %v4347, 1
        %v4352 = vsel %vm4350, %v4351, %v4347
        %v4353 = vadd.s32 %v4348, %v4352
        %v4354 = vadd.s32 %v4353, 536870912
        %v4355 = vshrl.u32 %v4354, 30
        %v4356 = vshll.u32 %v4355, 30
        %v4357 = vsub.s32 %v4353, %v4356
        %vm4358 = vcmp.lt.s32.totalorder %v4357, 0
        %v4359 = vsub.s32 0, %v4357
        %v4360 = vsel %vm4358, %v4359, %v4357
        %v4361 = vclz %v4360
        %v4362 = vsub.s32 %v4361, 2
        %vm4363 = vcmp.gt.s32.totalorder 0, %v4362
        %v4364 = vsel %vm4363, 0, %v4362
        %v4365 = vsub.s32 32, %v4364
        %v4366 = vshll.u32 %v4357, %v4364
        %v4367 = vshrl.u32 %v4349, %v4365
        %v4368 = vor.u32 %v4366, %v4367
        %v4369 = vsub.s32 4294967266, %v4364
        %v4370 = vadd.s32 %v4369, 127
        %v4371 = vshll.u32 %v4370, 23
        %v4372 = vor.u32 4788187, %v4371
        %v4373 = vand.u32 2147483647, %v4372
        %v4375 = vcvt.s32.f32 %v4368
        %v4376 = vmul.f32 %v4375, %v4373
        %v4377 = vxor.u32 %v4376, 2147483648
        %v4378 = vsel %vm4295, %v4377, %v4376
        %v4379 = vsub.s32 4, %v4355
        %v4380 = vsel %vm4295, %v4379, %v4355
        %v4381 = vsel %vm4294, %v825, %v4378
        %v4382 = vsel %vm4294, 0, %v4380
        %v4383 = vcosq.f32.pop %v4381
        %v4384 = vsinq.f32.pop %v4381
        %vm4385 = vweird.f32 %v825
        %v4386 = vadd.s32 %v4382, 3
        %v4387 = vand.u32 %v4386, 3
        %vm4388 = vcmp.lt.s32.totalorder %v4387, 2
        %vm4389 = vcmp.eq.s32.totalorder %v4387, 0
        %v4390 = vxor.u32 %v4384, 2147483648
        %v4391 = vsel %vm4389, %v4383, %v4390
        %vm4392 = vcmp.eq.s32.totalorder %v4387, 2
        %v4393 = vxor.u32 %v4383, 2147483648
        %v4394 = vsel %vm4392, %v4393, %v4384
        %v4395 = vsel %vm4388, %v4391, %v4394
        %v4396 = vsel %vm4385, nan, %v4395
        %v4397 = vand.u32 2147483647, %v826
        %vm4398 = vcmp.le.f32.partialorder %v4397, 0.7853982
        %vm4399 = vcmp.lt.s32.totalorder %v826, 0
        %v4400 = vand.u32 %v826, 2139095040
        %v4401 = vshrl.u32 %v4400, 23
        %v4402 = vsub.s32 %v4401, 127
        %v4403 = vand.u32 2147483647, %v826
        %v4404 = vand.u32 %v4403, 8388607
        %v4405 = vor.u32 %v4404, 8388608
        %v4406 = vsub.s32 0, %v4405
        %v4407 = vadd.s32 %v4402, 1
        %vm4408 = vcmp.gt.s32.totalorder %v4407, 0
        %v4409 = vsel %vm4408, %v4407, 0
        %v4410 = vshrl.u32 %v4409, 5
        %v4411 = vand.u32 %v4409, 31
        %v4412 = vsub.s32 32, %v4411
        %v4413 = vshrl.u32 683565275, %v4412
        %v4414 = vshll.u32 683565275, %v4411
        %v4415 = vshrl.u32 2475754826, %v4412
        %v4416 = vor.u32 %v4414, %v4415
        %v4417 = vshll.u32 2475754826, %v4411
        %v4418 = vshrl.u32 2131351028, %v4412
        %v4419 = vor.u32 %v4417, %v4418
        %v4420 = vshll.u32 2131351028, %v4411
        %v4421 = vshrl.u32 2102212464, %v4412
        %v4422 = vor.u32 %v4420, %v4421
        %v4423 = vshll.u32 2102212464, %v4411
        %v4424 = vshrl.u32 920167782, %v4412
        %v4425 = vor.u32 %v4423, %v4424
        %v4426 = vshll.u32 920167782, %v4411
        %v4427 = vshrl.u32 1326507024, %v4412
        %v4428 = vor.u32 %v4426, %v4427
        %vm4429 = vcmp.lt.s32.totalorder %v4410, 1
        %vm4430 = vcmp.lt.s32.totalorder %v4410, 2
        %vm4431 = vcmp.lt.s32.totalorder %v4410, 3
        %vm4432 = vcmp.lt.s32.totalorder %v4410, 4
        %v4433 = vsel %vm4429, %v4413, %v4416
        %v4434 = vsel %vm4432, %v4422, 2102212464
        %v4435 = vsel %vm4431, %v4419, %v4434
        %v4436 = vsel %vm4430, %v4433, %v4435
        %v4437 = vsel %vm4429, %v4416, %v4419
        %v4438 = vsel %vm4432, %v4425, 920167782
        %v4439 = vsel %vm4431, %v4422, %v4438
        %v4440 = vsel %vm4430, %v4437, %v4439
        %v4441 = vsel %vm4429, %v4419, %v4422
        %v4442 = vsel %vm4432, %v4428, 1326507024
        %v4443 = vsel %vm4431, %v4425, %v4442
        %v4444 = vsel %vm4430, %v4441, %v4443
        %v4445 = vshll.u32 %v4405, 8
        %v4446 = vmul.u32.u64.compose %v4445, %v4444
        %v4447 = vextract.low.u32 %v4446
        %v4448 = vextract.high.u32 %v4446
        %v4449 = vmul.u32.u64.compose %v4445, %v4440
        %v4450 = vextract.low.u32 %v4449
        %v4451 = vextract.high.u32 %v4449
        %v4452 = vmul.u32 %v4445, %v4436
        %v4453 = vadd.s32 %v4448, %v4450
        %vm4454 = vc.u32 %v4448, %v4450
        %v4455 = vadd.s32 %v4451, 1
        %v4456 = vsel %vm4454, %v4455, %v4451
        %v4457 = vadd.s32 %v4452, %v4456
        %v4458 = vadd.s32 %v4457, 536870912
        %v4459 = vshrl.u32 %v4458, 30
        %v4460 = vshll.u32 %v4459, 30
        %v4461 = vsub.s32 %v4457, %v4460
        %vm4462 = vcmp.lt.s32.totalorder %v4461, 0
        %v4463 = vsub.s32 0, %v4461
        %v4464 = vsel %vm4462, %v4463, %v4461
        %v4465 = vclz %v4464
        %v4466 = vsub.s32 %v4465, 2
        %vm4467 = vcmp.gt.s32.totalorder 0, %v4466
        %v4468 = vsel %vm4467, 0, %v4466
        %v4469 = vsub.s32 32, %v4468
        %v4470 = vshll.u32 %v4461, %v4468
        %v4471 = vshrl.u32 %v4453, %v4469
        %v4472 = vor.u32 %v4470, %v4471
        %v4473 = vsub.s32 4294967266, %v4468
        %v4474 = vadd.s32 %v4473, 127
        %v4475 = vshll.u32 %v4474, 23
        %v4476 = vor.u32 4788187, %v4475
        %v4477 = vand.u32 2147483647, %v4476
        %v4479 = vcvt.s32.f32 %v4472
        %v4480 = vmul.f32 %v4479, %v4477
        %v4481 = vxor.u32 %v4480, 2147483648
        %v4482 = vsel %vm4399, %v4481, %v4480
        %v4483 = vsub.s32 4, %v4459
        %v4484 = vsel %vm4399, %v4483, %v4459
        %v4485 = vsel %vm4398, %v826, %v4482
        %v4486 = vsel %vm4398, 0, %v4484
        %v4487 = vcosq.f32.pop %v4485
        %v4488 = vsinq.f32.pop %v4485
        %vm4489 = vweird.f32 %v826
        %v4490 = vadd.s32 %v4486, 3
        %v4491 = vand.u32 %v4490, 3
        %vm4492 = vcmp.lt.s32.totalorder %v4491, 2
        %vm4493 = vcmp.eq.s32.totalorder %v4491, 0
        %v4494 = vxor.u32 %v4488, 2147483648
        %v4495 = vsel %vm4493, %v4487, %v4494
        %vm4496 = vcmp.eq.s32.totalorder %v4491, 2
        %v4497 = vxor.u32 %v4487, 2147483648
        %v4498 = vsel %vm4496, %v4497, %v4488
        %v4499 = vsel %vm4492, %v4495, %v4498
        %v4500 = vsel %vm4489, nan, %v4499
        %v4501 = vand.u32 2147483647, %v827
        %vm4502 = vcmp.le.f32.partialorder %v4501, 0.7853982
        %vm4503 = vcmp.lt.s32.totalorder %v827, 0
        %v4504 = vand.u32 %v827, 2139095040
        %v4505 = vshrl.u32 %v4504, 23
        %v4506 = vsub.s32 %v4505, 127
        %v4507 = vand.u32 2147483647, %v827
        %v4508 = vand.u32 %v4507, 8388607
        %v4509 = vor.u32 %v4508, 8388608
        %v4510 = vsub.s32 0, %v4509
        %v4511 = vadd.s32 %v4506, 1
        %vm4512 = vcmp.gt.s32.totalorder %v4511, 0
        %v4513 = vsel %vm4512, %v4511, 0
        %v4514 = vshrl.u32 %v4513, 5
        %v4515 = vand.u32 %v4513, 31
        %v4516 = vsub.s32 32, %v4515
        %v4517 = vshrl.u32 683565275, %v4516
        %v4518 = vshll.u32 683565275, %v4515
        %v4519 = vshrl.u32 2475754826, %v4516
        %v4520 = vor.u32 %v4518, %v4519
        %v4521 = vshll.u32 2475754826, %v4515
        %v4522 = vshrl.u32 2131351028, %v4516
        %v4523 = vor.u32 %v4521, %v4522
        %v4524 = vshll.u32 2131351028, %v4515
        %v4525 = vshrl.u32 2102212464, %v4516
        %v4526 = vor.u32 %v4524, %v4525
        %v4527 = vshll.u32 2102212464, %v4515
        %v4528 = vshrl.u32 920167782, %v4516
        %v4529 = vor.u32 %v4527, %v4528
        %v4530 = vshll.u32 920167782, %v4515
        %v4531 = vshrl.u32 1326507024, %v4516
        %v4532 = vor.u32 %v4530, %v4531
        %vm4533 = vcmp.lt.s32.totalorder %v4514, 1
        %vm4534 = vcmp.lt.s32.totalorder %v4514, 2
        %vm4535 = vcmp.lt.s32.totalorder %v4514, 3
        %vm4536 = vcmp.lt.s32.totalorder %v4514, 4
        %v4537 = vsel %vm4533, %v4517, %v4520
        %v4538 = vsel %vm4536, %v4526, 2102212464
        %v4539 = vsel %vm4535, %v4523, %v4538
        %v4540 = vsel %vm4534, %v4537, %v4539
        %v4541 = vsel %vm4533, %v4520, %v4523
        %v4542 = vsel %vm4536, %v4529, 920167782
        %v4543 = vsel %vm4535, %v4526, %v4542
        %v4544 = vsel %vm4534, %v4541, %v4543
        %v4545 = vsel %vm4533, %v4523, %v4526
        %v4546 = vsel %vm4536, %v4532, 1326507024
        %v4547 = vsel %vm4535, %v4529, %v4546
        %v4548 = vsel %vm4534, %v4545, %v4547
        %v4549 = vshll.u32 %v4509, 8
        %v4550 = vmul.u32.u64.compose %v4549, %v4548
        %v4551 = vextract.low.u32 %v4550
        %v4552 = vextract.high.u32 %v4550
        %v4553 = vmul.u32.u64.compose %v4549, %v4544
        %v4554 = vextract.low.u32 %v4553
        %v4555 = vextract.high.u32 %v4553
        %v4556 = vmul.u32 %v4549, %v4540
        %v4557 = vadd.s32 %v4552, %v4554
        %vm4558 = vc.u32 %v4552, %v4554
        %v4559 = vadd.s32 %v4555, 1
        %v4560 = vsel %vm4558, %v4559, %v4555
        %v4561 = vadd.s32 %v4556, %v4560
        %v4562 = vadd.s32 %v4561, 536870912
        %v4563 = vshrl.u32 %v4562, 30
        %v4564 = vshll.u32 %v4563, 30
        %v4565 = vsub.s32 %v4561, %v4564
        %vm4566 = vcmp.lt.s32.totalorder %v4565, 0
        %v4567 = vsub.s32 0, %v4565
        %v4568 = vsel %vm4566, %v4567, %v4565
        %v4569 = vclz %v4568
        %v4570 = vsub.s32 %v4569, 2
        %vm4571 = vcmp.gt.s32.totalorder 0, %v4570
        %v4572 = vsel %vm4571, 0, %v4570
        %v4573 = vsub.s32 32, %v4572
        %v4574 = vshll.u32 %v4565, %v4572
        %v4575 = vshrl.u32 %v4557, %v4573
        %v4576 = vor.u32 %v4574, %v4575
        %v4577 = vsub.s32 4294967266, %v4572
        %v4578 = vadd.s32 %v4577, 127
        %v4579 = vshll.u32 %v4578, 23
        %v4580 = vor.u32 4788187, %v4579
        %v4581 = vand.u32 2147483647, %v4580
        %v4583 = vcvt.s32.f32 %v4576
        %v4584 = vmul.f32 %v4583, %v4581
        %v4585 = vxor.u32 %v4584, 2147483648
        %v4586 = vsel %vm4503, %v4585, %v4584
        %v4587 = vsub.s32 4, %v4563
        %v4588 = vsel %vm4503, %v4587, %v4563
        %v4589 = vsel %vm4502, %v827, %v4586
        %v4590 = vsel %vm4502, 0, %v4588
        %v4591 = vcosq.f32.pop %v4589
        %v4592 = vsinq.f32.pop %v4589
        %vm4593 = vweird.f32 %v827
        %v4594 = vadd.s32 %v4590, 3
        %v4595 = vand.u32 %v4594, 3
        %vm4596 = vcmp.lt.s32.totalorder %v4595, 2
        %vm4597 = vcmp.eq.s32.totalorder %v4595, 0
        %v4598 = vxor.u32 %v4592, 2147483648
        %v4599 = vsel %vm4597, %v4591, %v4598
        %vm4600 = vcmp.eq.s32.totalorder %v4595, 2
        %v4601 = vxor.u32 %v4591, 2147483648
        %v4602 = vsel %vm4600, %v4601, %v4592
        %v4603 = vsel %vm4596, %v4599, %v4602
        %v4604 = vsel %vm4593, nan, %v4603
        %v4605 = vand.u32 2147483647, %v1380
        %v4606 = vand.u32 2147483647, %v1484
        %v4607 = vand.u32 2147483647, %v1588
        %v4608 = vand.u32 2147483647, %v1692
        %v4609 = vand.u32 2147483647, %v1796
        %v4610 = vand.u32 2147483647, %v1900
        %v4611 = vand.u32 2147483647, %v2004
        %v4612 = vand.u32 2147483647, %v2108
        %v4613 = vand.u32 2147483647, %v2212
        %v4614 = vand.u32 2147483647, %v2316
        %v4615 = vand.u32 2147483647, %v2420
        %v4616 = vand.u32 2147483647, %v2524
        %v4617 = vand.u32 2147483647, %v2628
        %v4618 = vand.u32 2147483647, %v2732
        %v4619 = vand.u32 2147483647, %v2836
        %v4620 = vand.u32 2147483647, %v2940
        %v4621 = vand.u32 2147483647, %v3044
        %v4622 = vand.u32 2147483647, %v3148
        %v4623 = vand.u32 2147483647, %v3252
        %v4624 = vand.u32 2147483647, %v3356
        %v4625 = vand.u32 2147483647, %v3460
        %v4626 = vand.u32 2147483647, %v3564
        %v4627 = vand.u32 2147483647, %v3668
        %v4628 = vand.u32 2147483647, %v3772
        %v4629 = vand.u32 2147483647, %v3876
        %v4630 = vand.u32 2147483647, %v3980
        %v4631 = vand.u32 2147483647, %v4084
        %v4632 = vand.u32 2147483647, %v4188
        %v4633 = vand.u32 2147483647, %v4292
        %v4634 = vand.u32 2147483647, %v4396
        %v4635 = vand.u32 2147483647, %v4500
        %v4636 = vand.u32 2147483647, %v4604
        %vm4637 = vcmp.lt.f32.partialorder %v4605, 0.11111111
        %vm4638 = vcmp.lt.f32.partialorder %v4606, 0.11111111
        %vm4639 = vcmp.lt.f32.partialorder %v4607, 0.11111111
        %vm4640 = vcmp.lt.f32.partialorder %v4608, 0.11111111
        %vm4641 = vcmp.lt.f32.partialorder %v4609, 0.11111111
        %vm4642 = vcmp.lt.f32.partialorder %v4610, 0.11111111
        %vm4643 = vcmp.lt.f32.partialorder %v4611, 0.11111111
        %vm4644 = vcmp.lt.f32.partialorder %v4612, 0.11111111
        %vm4645 = vcmp.lt.f32.partialorder %v4613, 0.11111111
        %vm4646 = vcmp.lt.f32.partialorder %v4614, 0.11111111
        %vm4647 = vcmp.lt.f32.partialorder %v4615, 0.11111111
        %vm4648 = vcmp.lt.f32.partialorder %v4616, 0.11111111
        %vm4649 = vcmp.lt.f32.partialorder %v4617, 0.11111111
        %vm4650 = vcmp.lt.f32.partialorder %v4618, 0.11111111
        %vm4651 = vcmp.lt.f32.partialorder %v4619, 0.11111111
        %vm4652 = vcmp.lt.f32.partialorder %v4620, 0.11111111
        %vm4653 = vcmp.lt.f32.partialorder %v4621, 0.11111111
        %vm4654 = vcmp.lt.f32.partialorder %v4622, 0.11111111
        %vm4655 = vcmp.lt.f32.partialorder %v4623, 0.11111111
        %vm4656 = vcmp.lt.f32.partialorder %v4624, 0.11111111
        %vm4657 = vcmp.lt.f32.partialorder %v4625, 0.11111111
        %vm4658 = vcmp.lt.f32.partialorder %v4626, 0.11111111
        %vm4659 = vcmp.lt.f32.partialorder %v4627, 0.11111111
        %vm4660 = vcmp.lt.f32.partialorder %v4628, 0.11111111
        %vm4661 = vcmp.lt.f32.partialorder %v4629, 0.11111111
        %vm4662 = vcmp.lt.f32.partialorder %v4630, 0.11111111
        %vm4663 = vcmp.lt.f32.partialorder %v4631, 0.11111111
        %vm4664 = vcmp.lt.f32.partialorder %v4632, 0.11111111
        %vm4665 = vcmp.lt.f32.partialorder %v4633, 0.11111111
        %vm4666 = vcmp.lt.f32.partialorder %v4634, 0.11111111
        %vm4667 = vcmp.lt.f32.partialorder %v4635, 0.11111111
        %vm4668 = vcmp.lt.f32.partialorder %v4636, 0.11111111
        %v4669 = vmul.f32 %v4605, 4.5
        %v4670 = vmul.f32 %v4606, 4.5
        %v4671 = vmul.f32 %v4607, 4.5
        %v4672 = vmul.f32 %v4608, 4.5
        %v4673 = vmul.f32 %v4609, 4.5
        %v4674 = vmul.f32 %v4610, 4.5
        %v4675 = vmul.f32 %v4611, 4.5
        %v4676 = vmul.f32 %v4612, 4.5
        %v4677 = vmul.f32 %v4613, 4.5
        %v4678 = vmul.f32 %v4614, 4.5
        %v4679 = vmul.f32 %v4615, 4.5
        %v4680 = vmul.f32 %v4616, 4.5
        %v4681 = vmul.f32 %v4617, 4.5
        %v4682 = vmul.f32 %v4618, 4.5
        %v4683 = vmul.f32 %v4619, 4.5
        %v4684 = vmul.f32 %v4620, 4.5
        %v4685 = vmul.f32 %v4621, 4.5
        %v4686 = vmul.f32 %v4622, 4.5
        %v4687 = vmul.f32 %v4623, 4.5
        %v4688 = vmul.f32 %v4624, 4.5
        %v4689 = vmul.f32 %v4625, 4.5
        %v4690 = vmul.f32 %v4626, 4.5
        %v4691 = vmul.f32 %v4627, 4.5
        %v4692 = vmul.f32 %v4628, 4.5
        %v4693 = vmul.f32 %v4629, 4.5
        %v4694 = vmul.f32 %v4630, 4.5
        %v4695 = vmul.f32 %v4631, 4.5
        %v4696 = vmul.f32 %v4632, 4.5
        %v4697 = vmul.f32 %v4633, 4.5
        %v4698 = vmul.f32 %v4634, 4.5
        %v4699 = vmul.f32 %v4635, 4.5
        %v4700 = vmul.f32 %v4636, 4.5
        %v4701 = vmul.f32 %v4669, %v4605
        %v4702 = vmul.f32 %v4670, %v4606
        %v4703 = vmul.f32 %v4671, %v4607
        %v4704 = vmul.f32 %v4672, %v4608
        %v4705 = vmul.f32 %v4673, %v4609
        %v4706 = vmul.f32 %v4674, %v4610
        %v4707 = vmul.f32 %v4675, %v4611
        %v4708 = vmul.f32 %v4676, %v4612
        %v4709 = vmul.f32 %v4677, %v4613
        %v4710 = vmul.f32 %v4678, %v4614
        %v4711 = vmul.f32 %v4679, %v4615
        %v4712 = vmul.f32 %v4680, %v4616
        %v4713 = vmul.f32 %v4681, %v4617
        %v4714 = vmul.f32 %v4682, %v4618
        %v4715 = vmul.f32 %v4683, %v4619
        %v4716 = vmul.f32 %v4684, %v4620
        %v4717 = vmul.f32 %v4685, %v4621
        %v4718 = vmul.f32 %v4686, %v4622
        %v4719 = vmul.f32 %v4687, %v4623
        %v4720 = vmul.f32 %v4688, %v4624
        %v4721 = vmul.f32 %v4689, %v4625
        %v4722 = vmul.f32 %v4690, %v4626
        %v4723 = vmul.f32 %v4691, %v4627
        %v4724 = vmul.f32 %v4692, %v4628
        %v4725 = vmul.f32 %v4693, %v4629
        %v4726 = vmul.f32 %v4694, %v4630
        %v4727 = vmul.f32 %v4695, %v4631
        %v4728 = vmul.f32 %v4696, %v4632
        %v4729 = vmul.f32 %v4697, %v4633
        %v4730 = vmul.f32 %v4698, %v4634
        %v4731 = vmul.f32 %v4699, %v4635
        %v4732 = vmul.f32 %v4700, %v4636
        %v4733 = vsub.f32 %v4605, 0.055555556
        %v4734 = vsub.f32 %v4606, 0.055555556
        %v4735 = vsub.f32 %v4607, 0.055555556
        %v4736 = vsub.f32 %v4608, 0.055555556
        %v4737 = vsub.f32 %v4609, 0.055555556
        %v4738 = vsub.f32 %v4610, 0.055555556
        %v4739 = vsub.f32 %v4611, 0.055555556
        %v4740 = vsub.f32 %v4612, 0.055555556
        %v4741 = vsub.f32 %v4613, 0.055555556
        %v4742 = vsub.f32 %v4614, 0.055555556
        %v4743 = vsub.f32 %v4615, 0.055555556
        %v4744 = vsub.f32 %v4616, 0.055555556
        %v4745 = vsub.f32 %v4617, 0.055555556
        %v4746 = vsub.f32 %v4618, 0.055555556
        %v4747 = vsub.f32 %v4619, 0.055555556
        %v4748 = vsub.f32 %v4620, 0.055555556
        %v4749 = vsub.f32 %v4621, 0.055555556
        %v4750 = vsub.f32 %v4622, 0.055555556
        %v4751 = vsub.f32 %v4623, 0.055555556
        %v4752 = vsub.f32 %v4624, 0.055555556
        %v4753 = vsub.f32 %v4625, 0.055555556
        %v4754 = vsub.f32 %v4626, 0.055555556
        %v4755 = vsub.f32 %v4627, 0.055555556
        %v4756 = vsub.f32 %v4628, 0.055555556
        %v4757 = vsub.f32 %v4629, 0.055555556
        %v4758 = vsub.f32 %v4630, 0.055555556
        %v4759 = vsub.f32 %v4631, 0.055555556
        %v4760 = vsub.f32 %v4632, 0.055555556
        %v4761 = vsub.f32 %v4633, 0.055555556
        %v4762 = vsub.f32 %v4634, 0.055555556
        %v4763 = vsub.f32 %v4635, 0.055555556
        %v4764 = vsub.f32 %v4636, 0.055555556
        %v4765 = vsel %vm4637, %v4701, %v4733
        %v4766 = vsel %vm4638, %v4702, %v4734
        %v4767 = vsel %vm4639, %v4703, %v4735
        %v4768 = vsel %vm4640, %v4704, %v4736
        %v4769 = vsel %vm4641, %v4705, %v4737
        %v4770 = vsel %vm4642, %v4706, %v4738
        %v4771 = vsel %vm4643, %v4707, %v4739
        %v4772 = vsel %vm4644, %v4708, %v4740
        %v4773 = vsel %vm4645, %v4709, %v4741
        %v4774 = vsel %vm4646, %v4710, %v4742
        %v4775 = vsel %vm4647, %v4711, %v4743
        %v4776 = vsel %vm4648, %v4712, %v4744
        %v4777 = vsel %vm4649, %v4713, %v4745
        %v4778 = vsel %vm4650, %v4714, %v4746
        %v4779 = vsel %vm4651, %v4715, %v4747
        %v4780 = vsel %vm4652, %v4716, %v4748
        %v4781 = vsel %vm4653, %v4717, %v4749
        %v4782 = vsel %vm4654, %v4718, %v4750
        %v4783 = vsel %vm4655, %v4719, %v4751
        %v4784 = vsel %vm4656, %v4720, %v4752
        %v4785 = vsel %vm4657, %v4721, %v4753
        %v4786 = vsel %vm4658, %v4722, %v4754
        %v4787 = vsel %vm4659, %v4723, %v4755
        %v4788 = vsel %vm4660, %v4724, %v4756
        %v4789 = vsel %vm4661, %v4725, %v4757
        %v4790 = vsel %vm4662, %v4726, %v4758
        %v4791 = vsel %vm4663, %v4727, %v4759
        %v4792 = vsel %vm4664, %v4728, %v4760
        %v4793 = vsel %vm4665, %v4729, %v4761
        %v4794 = vsel %vm4666, %v4730, %v4762
        %v4795 = vsel %vm4667, %v4731, %v4763
        %v4796 = vsel %vm4668, %v4732, %v4764
        %v4797 = vadd.f32 %v1059, %v4765
        %v4798 = vadd.f32 %v1066, %v4766
        %v4799 = vadd.f32 %v1073, %v4767
        %v4800 = vadd.f32 %v1080, %v4768
        %v4801 = vadd.f32 %v1087, %v4769
        %v4802 = vadd.f32 %v1094, %v4770
        %v4803 = vadd.f32 %v1101, %v4771
        %v4804 = vadd.f32 %v1108, %v4772
        %v4805 = vadd.f32 %v1115, %v4773
        %v4806 = vadd.f32 %v1122, %v4774
        %v4807 = vadd.f32 %v1129, %v4775
        %v4808 = vadd.f32 %v1136, %v4776
        %v4809 = vadd.f32 %v1143, %v4777
        %v4810 = vadd.f32 %v1150, %v4778
        %v4811 = vadd.f32 %v1157, %v4779
        %v4812 = vadd.f32 %v1164, %v4780
        %v4813 = vadd.f32 %v1171, %v4781
        %v4814 = vadd.f32 %v1178, %v4782
        %v4815 = vadd.f32 %v1185, %v4783
        %v4816 = vadd.f32 %v1192, %v4784
        %v4817 = vadd.f32 %v1199, %v4785
        %v4818 = vadd.f32 %v1206, %v4786
        %v4819 = vadd.f32 %v1213, %v4787
        %v4820 = vadd.f32 %v1220, %v4788
        %v4821 = vadd.f32 %v1227, %v4789
        %v4822 = vadd.f32 %v1234, %v4790
        %v4823 = vadd.f32 %v1241, %v4791
        %v4824 = vadd.f32 %v1248, %v4792
        %v4825 = vadd.f32 %v1255, %v4793
        %v4826 = vadd.f32 %v1262, %v4794
        %v4827 = vadd.f32 %v1269, %v4795
        %v4828 = vadd.f32 %v1276, %v4796
        %v4829 = vld [vmem:[#allocation3] sm:$0xff]
        %v4830 = vld [vmem:[#allocation3 + $0x8] sm:$0xff]
        %v4831 = vld [vmem:[#allocation3 + $0x10] sm:$0xff]
        %v4832 = vld [vmem:[#allocation3 + $0x18] sm:$0xff]
        %v4837 = vcombine.low %v501, %v501
        %v4839 = vunpack.c.l.s4 1983009808
        %v4840 = vunpack.c.0.s8 %v4839
        %v4841 = vlaneseq
        %v4842 = vshrl.u32 %v4841, 7
        %v4843 = vsub.s32 %v4840, %v4842
        %v4844 = vrot.slane %v4837, %v4843
        %v4846 = vunpack.c.l.s4 1983009808
        %v4847 = vunpack.c.0.s8 %v4846
        %v4848 = vlaneseq
        %v4849 = vshrl.u32 %v4848, 7
        %v4850 = vsub.s32 %v4847, %v4849
        %v4851 = vrot.slane %v501, %v4850
        %v4852 = vcombine.low %v4844, %v4844
        %v4853 = vcombine.low %v4851, %v4851
        %v4854 = vcombine.low %v502, %v502
        %v4856 = vunpack.c.l.s4 1983009808
        %v4857 = vunpack.c.0.s8 %v4856
        %v4858 = vlaneseq
        %v4859 = vshrl.u32 %v4858, 7
        %v4860 = vsub.s32 %v4857, %v4859
        %v4861 = vrot.slane %v4854, %v4860
        %v4863 = vunpack.c.l.s4 1983009808
        %v4864 = vunpack.c.0.s8 %v4863
        %v4865 = vlaneseq
        %v4866 = vshrl.u32 %v4865, 7
        %v4867 = vsub.s32 %v4864, %v4866
        %v4868 = vrot.slane %v502, %v4867
        %v4869 = vcombine.low %v4861, %v4861
        %v4870 = vcombine.low %v4868, %v4868
        %v4871 = vcombine.low %v503, %v503
        %v4873 = vunpack.c.l.s4 1983009808
        %v4874 = vunpack.c.0.s8 %v4873
        %v4875 = vlaneseq
        %v4876 = vshrl.u32 %v4875, 7
        %v4877 = vsub.s32 %v4874, %v4876
        %v4878 = vrot.slane %v4871, %v4877
        %v4880 = vunpack.c.l.s4 1983009808
        %v4881 = vunpack.c.0.s8 %v4880
        %v4882 = vlaneseq
        %v4883 = vshrl.u32 %v4882, 7
        %v4884 = vsub.s32 %v4881, %v4883
        %v4885 = vrot.slane %v503, %v4884
        %v4886 = vcombine.low %v4878, %v4878
        %v4887 = vcombine.low %v4885, %v4885
        %v4888 = vcombine.low %v504, %v504
        %v4890 = vunpack.c.l.s4 1983009808
        %v4891 = vunpack.c.0.s8 %v4890
        %v4892 = vlaneseq
        %v4893 = vshrl.u32 %v4892, 7
        %v4894 = vsub.s32 %v4891, %v4893
        %v4895 = vrot.slane %v4888, %v4894
        %v4897 = vunpack.c.l.s4 1983009808
        %v4898 = vunpack.c.0.s8 %v4897
        %v4899 = vlaneseq
        %v4900 = vshrl.u32 %v4899, 7
        %v4901 = vsub.s32 %v4898, %v4900
        %v4902 = vrot.slane %v504, %v4901
        %v4903 = vcombine.low %v4895, %v4895
        %v4904 = vcombine.low %v4902, %v4902
        %v4905 = vrot.slane %v4852, 1
        %v4906 = vrot.slane %v4844, 1
        %v4907 = vrot.slane %v4853, 1
        %v4908 = vrot.slane %v4851, 1
        %v4909 = vrot.slane %v4869, 1
        %v4910 = vrot.slane %v4861, 1
        %v4911 = vrot.slane %v4870, 1
        %v4912 = vrot.slane %v4868, 1
        %v4913 = vrot.slane %v4886, 1
        %v4914 = vrot.slane %v4878, 1
        %v4915 = vrot.slane %v4887, 1
        %v4916 = vrot.slane %v4885, 1
        %v4917 = vrot.slane %v4903, 1
        %v4918 = vrot.slane %v4895, 1
        %v4919 = vrot.slane %v4904, 1
        %v4920 = vrot.slane %v4902, 1
        %v4953 = vmul.f32 %v4797, %v4852
        %v4954 = vmul.f32 %v4798, %v4844
        %v4955 = vmul.f32 %v4799, %v4853
        %v4956 = vmul.f32 %v4800, %v4851
        %v4957 = vmul.f32 %v4801, %v4869
        %v4958 = vmul.f32 %v4802, %v4861
        %v4959 = vmul.f32 %v4803, %v4870
        %v4960 = vmul.f32 %v4804, %v4868
        %v4961 = vmul.f32 %v4805, %v4886
        %v4962 = vmul.f32 %v4806, %v4878
        %v4963 = vmul.f32 %v4807, %v4887
        %v4964 = vmul.f32 %v4808, %v4885
        %v4965 = vmul.f32 %v4809, %v4903
        %v4966 = vmul.f32 %v4810, %v4895
        %v4967 = vmul.f32 %v4811, %v4904
        %v4968 = vmul.f32 %v4812, %v4902
        %v4969 = vmul.f32 %v4813, %v4905
        %v4970 = vmul.f32 %v4814, %v4906
        %v4971 = vmul.f32 %v4815, %v4907
        %v4972 = vmul.f32 %v4816, %v4908
        %v4973 = vmul.f32 %v4817, %v4909
        %v4974 = vmul.f32 %v4818, %v4910
        %v4975 = vmul.f32 %v4819, %v4911
        %v4976 = vmul.f32 %v4820, %v4912
        %v4977 = vmul.f32 %v4821, %v4913
        %v4978 = vmul.f32 %v4822, %v4914
        %v4979 = vmul.f32 %v4823, %v4915
        %v4980 = vmul.f32 %v4824, %v4916
        %v4981 = vmul.f32 %v4825, %v4917
        %v4982 = vmul.f32 %v4826, %v4918
        %v4983 = vmul.f32 %v4827, %v4919
        %v4984 = vmul.f32 %v4828, %v4920
        %v5017 = vcombine.high %v4953, %v4954
        %v5018 = vcombine.high %v4955, %v4956
        %v5020 = vunpack.c.l.s4 1983009808
        %v5021 = vunpack.c.0.s8 %v5020
        %v5022 = vlaneseq
        %v5023 = vshrl.u32 %v5022, 7
        %v5024 = vsub.s32 %v5021, %v5023
        %v5025 = vrot.slane %v5017, %v5024
        %v5027 = vunpack.c.l.s4 1983009808
        %v5028 = vunpack.c.0.s8 %v5027
        %v5029 = vlaneseq
        %v5030 = vshrl.u32 %v5029, 7
        %v5031 = vsub.s32 %v5028, %v5030
        %v5032 = vrot.slane %v5018, %v5031
        %v5033 = vcombine.high %v5025, %v5032
        %v5034 = vcombine.high %v4957, %v4958
        %v5035 = vcombine.high %v4959, %v4960
        %v5037 = vunpack.c.l.s4 1983009808
        %v5038 = vunpack.c.0.s8 %v5037
        %v5039 = vlaneseq
        %v5040 = vshrl.u32 %v5039, 7
        %v5041 = vsub.s32 %v5038, %v5040
        %v5042 = vrot.slane %v5034, %v5041
        %v5044 = vunpack.c.l.s4 1983009808
        %v5045 = vunpack.c.0.s8 %v5044
        %v5046 = vlaneseq
        %v5047 = vshrl.u32 %v5046, 7
        %v5048 = vsub.s32 %v5045, %v5047
        %v5049 = vrot.slane %v5035, %v5048
        %v5050 = vcombine.high %v5042, %v5049
        %v5051 = vcombine.high %v4961, %v4962
        %v5052 = vcombine.high %v4963, %v4964
        %v5054 = vunpack.c.l.s4 1983009808
        %v5055 = vunpack.c.0.s8 %v5054
        %v5056 = vlaneseq
        %v5057 = vshrl.u32 %v5056, 7
        %v5058 = vsub.s32 %v5055, %v5057
        %v5059 = vrot.slane %v5051, %v5058
        %v5061 = vunpack.c.l.s4 1983009808
        %v5062 = vunpack.c.0.s8 %v5061
        %v5063 = vlaneseq
        %v5064 = vshrl.u32 %v5063, 7
        %v5065 = vsub.s32 %v5062, %v5064
        %v5066 = vrot.slane %v5052, %v5065
        %v5067 = vcombine.high %v5059, %v5066
        %v5068 = vcombine.high %v4965, %v4966
        %v5069 = vcombine.high %v4967, %v4968
        %v5071 = vunpack.c.l.s4 1983009808
        %v5072 = vunpack.c.0.s8 %v5071
        %v5073 = vlaneseq
        %v5074 = vshrl.u32 %v5073, 7
        %v5075 = vsub.s32 %v5072, %v5074
        %v5076 = vrot.slane %v5068, %v5075
        %v5078 = vunpack.c.l.s4 1983009808
        %v5079 = vunpack.c.0.s8 %v5078
        %v5080 = vlaneseq
        %v5081 = vshrl.u32 %v5080, 7
        %v5082 = vsub.s32 %v5079, %v5081
        %v5083 = vrot.slane %v5069, %v5082
        %v5084 = vcombine.high %v5076, %v5083
        %v5085 = vcombine.high %v4969, %v4970
        %v5086 = vcombine.high %v4971, %v4972
        %v5088 = vunpack.c.l.s4 1983009808
        %v5089 = vunpack.c.0.s8 %v5088
        %v5090 = vlaneseq
        %v5091 = vshrl.u32 %v5090, 7
        %v5092 = vsub.s32 %v5089, %v5091
        %v5093 = vrot.slane %v5085, %v5092
        %v5095 = vunpack.c.l.s4 1983009808
        %v5096 = vunpack.c.0.s8 %v5095
        %v5097 = vlaneseq
        %v5098 = vshrl.u32 %v5097, 7
        %v5099 = vsub.s32 %v5096, %v5098
        %v5100 = vrot.slane %v5086, %v5099
        %v5101 = vcombine.high %v5093, %v5100
        %v5102 = vcombine.high %v4973, %v4974
        %v5103 = vcombine.high %v4975, %v4976
        %v5105 = vunpack.c.l.s4 1983009808
        %v5106 = vunpack.c.0.s8 %v5105
        %v5107 = vlaneseq
        %v5108 = vshrl.u32 %v5107, 7
        %v5109 = vsub.s32 %v5106, %v5108
        %v5110 = vrot.slane %v5102, %v5109
        %v5112 = vunpack.c.l.s4 1983009808
        %v5113 = vunpack.c.0.s8 %v5112
        %v5114 = vlaneseq
        %v5115 = vshrl.u32 %v5114, 7
        %v5116 = vsub.s32 %v5113, %v5115
        %v5117 = vrot.slane %v5103, %v5116
        %v5118 = vcombine.high %v5110, %v5117
        %v5119 = vcombine.high %v4977, %v4978
        %v5120 = vcombine.high %v4979, %v4980
        %v5122 = vunpack.c.l.s4 1983009808
        %v5123 = vunpack.c.0.s8 %v5122
        %v5124 = vlaneseq
        %v5125 = vshrl.u32 %v5124, 7
        %v5126 = vsub.s32 %v5123, %v5125
        %v5127 = vrot.slane %v5119, %v5126
        %v5129 = vunpack.c.l.s4 1983009808
        %v5130 = vunpack.c.0.s8 %v5129
        %v5131 = vlaneseq
        %v5132 = vshrl.u32 %v5131, 7
        %v5133 = vsub.s32 %v5130, %v5132
        %v5134 = vrot.slane %v5120, %v5133
        %v5135 = vcombine.high %v5127, %v5134
        %v5136 = vcombine.high %v4981, %v4982
        %v5137 = vcombine.high %v4983, %v4984
        %v5139 = vunpack.c.l.s4 1983009808
        %v5140 = vunpack.c.0.s8 %v5139
        %v5141 = vlaneseq
        %v5142 = vshrl.u32 %v5141, 7
        %v5143 = vsub.s32 %v5140, %v5142
        %v5144 = vrot.slane %v5136, %v5143
        %v5146 = vunpack.c.l.s4 1983009808
        %v5147 = vunpack.c.0.s8 %v5146
        %v5148 = vlaneseq
        %v5149 = vshrl.u32 %v5148, 7
        %v5150 = vsub.s32 %v5147, %v5149
        %v5151 = vrot.slane %v5137, %v5150
        %v5152 = vcombine.high %v5144, %v5151
        %vm5153 = vcmask 1044484
        %v5154 = vsel %vm5153, %v5033, %v5033
        %vm5155 = vcmask 1046534
        %v5156 = vsel %vm5155, %v5033, %v5154
        %v5157 = vrot.slane %v5101, 7
        %vm5158 = vcmask 1041409
        %v5159 = vsel %vm5158, %v5157, %v5156
        %vm5160 = vcmask 1043459
        %v5161 = vsel %vm5160, %v5157, %v5159
        %vm5162 = vcmask 1045509
        %v5163 = vsel %vm5162, %v5157, %v5161
        %vm5164 = vcmask 1047559
        %v5165 = vsel %vm5164, %v5157, %v5163
        %v5166 = vsel %vm5153, %v5050, %v5050
        %v5167 = vsel %vm5155, %v5050, %v5166
        %v5168 = vrot.slane %v5118, 7
        %v5169 = vsel %vm5158, %v5168, %v5167
        %v5170 = vsel %vm5160, %v5168, %v5169
        %v5171 = vsel %vm5162, %v5168, %v5170
        %v5172 = vsel %vm5164, %v5168, %v5171
        %v5173 = vsel %vm5153, %v5067, %v5067
        %v5174 = vsel %vm5155, %v5067, %v5173
        %v5175 = vrot.slane %v5135, 7
        %v5176 = vsel %vm5158, %v5175, %v5174
        %v5177 = vsel %vm5160, %v5175, %v5176
        %v5178 = vsel %vm5162, %v5175, %v5177
        %v5179 = vsel %vm5164, %v5175, %v5178
        %v5180 = vsel %vm5153, %v5084, %v5084
        %v5181 = vsel %vm5155, %v5084, %v5180
        %v5182 = vrot.slane %v5152, 7
        %v5183 = vsel %vm5158, %v5182, %v5181
        %v5184 = vsel %vm5160, %v5182, %v5183
        %v5185 = vsel %vm5162, %v5182, %v5184
        %v5186 = vsel %vm5164, %v5182, %v5185
        %v5191 = vadd.f32 %v4829, %v5165
        %v5192 = vadd.f32 %v4830, %v5172
        %v5193 = vadd.f32 %v4831, %v5179
        %v5194 = vadd.f32 %v4832, %v5186
        %5195 = vst [vmem:[#allocation3] sm:$0xff] %v5191
        %5196 = vst [vmem:[#allocation3 + $0x8] sm:$0xff] %v5192
        %5197 = vst [vmem:[#allocation3 + $0x10] sm:$0xff] %v5193
        %5198 = vst [vmem:[#allocation3 + $0x18] sm:$0xff] %v5194
        %p5199 = scmp.eq.s32.totalorder %s20, 1
        // Predicated region
        $region87: #{point_pillar_loss.1} parent=73 // pred_check
          %p5200 = pneg %p5199
        $region88: #{point_pillar_loss.1} parent=73 // pred_check_branch
          %5202 = sbr.rel (%p5200) target = $region90
        $region89: #{point_pillar_loss.1} parent=73 // pred_region
          %v5203 = vld [vmem:[#allocation2] sm:$0xff]
          %v5204 = vld [vmem:[#allocation2 + $0x8] sm:$0xff]
          %v5205 = vld [vmem:[#allocation2 + $0x10] sm:$0xff]
          %v5206 = vld [vmem:[#allocation2 + $0x18] sm:$0xff]
          %v5211 = vcombine.high %v5203, %v5203
          %v5213 = vunpack.c.l.s4 1983009808
          %v5214 = vunpack.c.0.s8 %v5213
          %v5215 = vlaneseq
          %v5216 = vshrl.u32 %v5215, 7
          %v5217 = vsub.s32 %v5214, %v5216
          %v5218 = vrot.slane %v5203, %v5217
          %v5220 = vunpack.c.l.s4 1983009808
          %v5221 = vunpack.c.0.s8 %v5220
          %v5222 = vlaneseq
          %v5223 = vshrl.u32 %v5222, 7
          %v5224 = vsub.s32 %v5221, %v5223
          %v5225 = vrot.slane %v5211, %v5224
          %v5226 = vcombine.high %v5218, %v5218
          %v5227 = vcombine.high %v5225, %v5225
          %v5228 = vcombine.high %v5204, %v5204
          %v5230 = vunpack.c.l.s4 1983009808
          %v5231 = vunpack.c.0.s8 %v5230
          %v5232 = vlaneseq
          %v5233 = vshrl.u32 %v5232, 7
          %v5234 = vsub.s32 %v5231, %v5233
          %v5235 = vrot.slane %v5204, %v5234
          %v5237 = vunpack.c.l.s4 1983009808
          %v5238 = vunpack.c.0.s8 %v5237
          %v5239 = vlaneseq
          %v5240 = vshrl.u32 %v5239, 7
          %v5241 = vsub.s32 %v5238, %v5240
          %v5242 = vrot.slane %v5228, %v5241
          %v5243 = vcombine.high %v5235, %v5235
          %v5244 = vcombine.high %v5242, %v5242
          %v5245 = vcombine.high %v5205, %v5205
          %v5247 = vunpack.c.l.s4 1983009808
          %v5248 = vunpack.c.0.s8 %v5247
          %v5249 = vlaneseq
          %v5250 = vshrl.u32 %v5249, 7
          %v5251 = vsub.s32 %v5248, %v5250
          %v5252 = vrot.slane %v5205, %v5251
          %v5254 = vunpack.c.l.s4 1983009808
          %v5255 = vunpack.c.0.s8 %v5254
          %v5256 = vlaneseq
          %v5257 = vshrl.u32 %v5256, 7
          %v5258 = vsub.s32 %v5255, %v5257
          %v5259 = vrot.slane %v5245, %v5258
          %v5260 = vcombine.high %v5252, %v5252
          %v5261 = vcombine.high %v5259, %v5259
          %v5262 = vcombine.high %v5206, %v5206
          %v5264 = vunpack.c.l.s4 1983009808
          %v5265 = vunpack.c.0.s8 %v5264
          %v5266 = vlaneseq
          %v5267 = vshrl.u32 %v5266, 7
          %v5268 = vsub.s32 %v5265, %v5267
          %v5269 = vrot.slane %v5206, %v5268
          %v5271 = vunpack.c.l.s4 1983009808
          %v5272 = vunpack.c.0.s8 %v5271
          %v5273 = vlaneseq
          %v5274 = vshrl.u32 %v5273, 7
          %v5275 = vsub.s32 %v5272, %v5274
          %v5276 = vrot.slane %v5262, %v5275
          %v5277 = vcombine.high %v5269, %v5269
          %v5278 = vcombine.high %v5276, %v5276
          %vm5295 = vcmask 1041408
          %v5296 = vsel %vm5295, %v5218, 0.0
          %v5297 = vsel %vm5295, %v5226, 0.0
          %v5298 = vadd.f32 %v5296, %v5297
          %v5299 = vsel %vm5295, %v5225, 0.0
          %v5300 = vadd.f32 %v5298, %v5299
          %v5301 = vsel %vm5295, %v5227, 0.0
          %v5302 = vadd.f32 %v5300, %v5301
          %v5303 = vsel %vm5295, %v5235, 0.0
          %v5304 = vadd.f32 %v5302, %v5303
          %v5305 = vsel %vm5295, %v5243, 0.0
          %v5306 = vadd.f32 %v5304, %v5305
          %v5307 = vsel %vm5295, %v5242, 0.0
          %v5308 = vadd.f32 %v5306, %v5307
          %v5309 = vsel %vm5295, %v5244, 0.0
          %v5310 = vadd.f32 %v5308, %v5309
          %v5311 = vsel %vm5295, %v5252, 0.0
          %v5312 = vadd.f32 %v5310, %v5311
          %v5313 = vsel %vm5295, %v5260, 0.0
          %v5314 = vadd.f32 %v5312, %v5313
          %v5315 = vsel %vm5295, %v5259, 0.0
          %v5316 = vadd.f32 %v5314, %v5315
          %v5317 = vsel %vm5295, %v5261, 0.0
          %v5318 = vadd.f32 %v5316, %v5317
          %v5319 = vsel %vm5295, %v5269, 0.0
          %v5320 = vadd.f32 %v5318, %v5319
          %v5321 = vsel %vm5295, %v5277, 0.0
          %v5322 = vadd.f32 %v5320, %v5321
          %v5323 = vsel %vm5295, %v5276, 0.0
          %v5324 = vadd.f32 %v5322, %v5323
          %v5325 = vsel %vm5295, %v5278, 0.0
          %v5326 = vadd.f32 %v5324, %v5325
          %5327 = vadd.xlane.f32.xlu0 %v5326
          %v5328 = vpop.xlane.xlu0 %5327
          %v5329 = vrot.slane %v5328, 4
          %v5330 = vadd.f32 %v5328, %v5329
          %v5331 = vrot.slane %v5330, 2
          %v5332 = vadd.f32 %v5330, %v5331
          %v5333 = vrot.slane %v5332, 1
          %v5334 = vadd.f32 %v5332, %v5333
          %s5335 = vtos %v5334
          %v5336 = vld [vmem:[#allocation3] sm:$0xff]
          %v5337 = vld [vmem:[#allocation3 + $0x8] sm:$0xff]
          %v5338 = vld [vmem:[#allocation3 + $0x10] sm:$0xff]
          %v5339 = vld [vmem:[#allocation3 + $0x18] sm:$0xff]
          %v5344 = vcombine.high %v5336, %v5336
          %v5346 = vunpack.c.l.s4 1983009808
          %v5347 = vunpack.c.0.s8 %v5346
          %v5348 = vlaneseq
          %v5349 = vshrl.u32 %v5348, 7
          %v5350 = vsub.s32 %v5347, %v5349
          %v5351 = vrot.slane %v5336, %v5350
          %v5353 = vunpack.c.l.s4 1983009808
          %v5354 = vunpack.c.0.s8 %v5353
          %v5355 = vlaneseq
          %v5356 = vshrl.u32 %v5355, 7
          %v5357 = vsub.s32 %v5354, %v5356
          %v5358 = vrot.slane %v5344, %v5357
          %v5359 = vcombine.high %v5351, %v5351
          %v5360 = vcombine.high %v5358, %v5358
          %v5361 = vcombine.high %v5337, %v5337
          %v5363 = vunpack.c.l.s4 1983009808
          %v5364 = vunpack.c.0.s8 %v5363
          %v5365 = vlaneseq
          %v5366 = vshrl.u32 %v5365, 7
          %v5367 = vsub.s32 %v5364, %v5366
          %v5368 = vrot.slane %v5337, %v5367
          %v5370 = vunpack.c.l.s4 1983009808
          %v5371 = vunpack.c.0.s8 %v5370
          %v5372 = vlaneseq
          %v5373 = vshrl.u32 %v5372, 7
          %v5374 = vsub.s32 %v5371, %v5373
          %v5375 = vrot.slane %v5361, %v5374
          %v5376 = vcombine.high %v5368, %v5368
          %v5377 = vcombine.high %v5375, %v5375
          %v5378 = vcombine.high %v5338, %v5338
          %v5380 = vunpack.c.l.s4 1983009808
          %v5381 = vunpack.c.0.s8 %v5380
          %v5382 = vlaneseq
          %v5383 = vshrl.u32 %v5382, 7
          %v5384 = vsub.s32 %v5381, %v5383
          %v5385 = vrot.slane %v5338, %v5384
          %v5387 = vunpack.c.l.s4 1983009808
          %v5388 = vunpack.c.0.s8 %v5387
          %v5389 = vlaneseq
          %v5390 = vshrl.u32 %v5389, 7
          %v5391 = vsub.s32 %v5388, %v5390
          %v5392 = vrot.slane %v5378, %v5391
          %v5393 = vcombine.high %v5385, %v5385
          %v5394 = vcombine.high %v5392, %v5392
          %v5395 = vcombine.high %v5339, %v5339
          %v5397 = vunpack.c.l.s4 1983009808
          %v5398 = vunpack.c.0.s8 %v5397
          %v5399 = vlaneseq
          %v5400 = vshrl.u32 %v5399, 7
          %v5401 = vsub.s32 %v5398, %v5400
          %v5402 = vrot.slane %v5339, %v5401
          %v5404 = vunpack.c.l.s4 1983009808
          %v5405 = vunpack.c.0.s8 %v5404
          %v5406 = vlaneseq
          %v5407 = vshrl.u32 %v5406, 7
          %v5408 = vsub.s32 %v5405, %v5407
          %v5409 = vrot.slane %v5395, %v5408
          %v5410 = vcombine.high %v5402, %v5402
          %v5411 = vcombine.high %v5409, %v5409
          %v5428 = vsel %vm5295, %v5351, 0.0
          %v5429 = vsel %vm5295, %v5359, 0.0
          %v5430 = vadd.f32 %v5428, %v5429
          %v5431 = vsel %vm5295, %v5358, 0.0
          %v5432 = vadd.f32 %v5430, %v5431
          %v5433 = vsel %vm5295, %v5360, 0.0
          %v5434 = vadd.f32 %v5432, %v5433
          %v5435 = vsel %vm5295, %v5368, 0.0
          %v5436 = vadd.f32 %v5434, %v5435
          %v5437 = vsel %vm5295, %v5376, 0.0
          %v5438 = vadd.f32 %v5436, %v5437
          %v5439 = vsel %vm5295, %v5375, 0.0
          %v5440 = vadd.f32 %v5438, %v5439
          %v5441 = vsel %vm5295, %v5377, 0.0
          %v5442 = vadd.f32 %v5440, %v5441
          %v5443 = vsel %vm5295, %v5385, 0.0
          %v5444 = vadd.f32 %v5442, %v5443
          %v5445 = vsel %vm5295, %v5393, 0.0
          %v5446 = vadd.f32 %v5444, %v5445
          %v5447 = vsel %vm5295, %v5392, 0.0
          %v5448 = vadd.f32 %v5446, %v5447
          %v5449 = vsel %vm5295, %v5394, 0.0
          %v5450 = vadd.f32 %v5448, %v5449
          %v5451 = vsel %vm5295, %v5402, 0.0
          %v5452 = vadd.f32 %v5450, %v5451
          %v5453 = vsel %vm5295, %v5410, 0.0
          %v5454 = vadd.f32 %v5452, %v5453
          %v5455 = vsel %vm5295, %v5409, 0.0
          %v5456 = vadd.f32 %v5454, %v5455
          %v5457 = vsel %vm5295, %v5411, 0.0
          %v5458 = vadd.f32 %v5456, %v5457
          %5459 = vadd.xlane.f32.xlu0 %v5458
          %v5460 = vpop.xlane.xlu0 %5459
          %v5461 = vrot.slane %v5460, 4
          %v5462 = vadd.f32 %v5460, %v5461
          %v5463 = vrot.slane %v5462, 2
          %v5464 = vadd.f32 %v5462, %v5463
          %v5465 = vrot.slane %v5464, 1
          %v5466 = vadd.f32 %v5464, %v5465
          %s5467 = vtos %v5466
          %v5468 = vld [vmem:[#allocation4] sm:$0xff]
          %v5469 = vld [vmem:[#allocation4 + $0x8] sm:$0xff]
          %v5470 = vld [vmem:[#allocation4 + $0x10] sm:$0xff]
          %v5471 = vld [vmem:[#allocation4 + $0x18] sm:$0xff]
          %v5476 = vcombine.high %v5468, %v5468
          %v5478 = vunpack.c.l.s4 1983009808
          %v5479 = vunpack.c.0.s8 %v5478
          %v5480 = vlaneseq
          %v5481 = vshrl.u32 %v5480, 7
          %v5482 = vsub.s32 %v5479, %v5481
          %v5483 = vrot.slane %v5468, %v5482
          %v5485 = vunpack.c.l.s4 1983009808
          %v5486 = vunpack.c.0.s8 %v5485
          %v5487 = vlaneseq
          %v5488 = vshrl.u32 %v5487, 7
          %v5489 = vsub.s32 %v5486, %v5488
          %v5490 = vrot.slane %v5476, %v5489
          %v5491 = vcombine.high %v5483, %v5483
          %v5492 = vcombine.high %v5490, %v5490
          %v5493 = vcombine.high %v5469, %v5469
          %v5495 = vunpack.c.l.s4 1983009808
          %v5496 = vunpack.c.0.s8 %v5495
          %v5497 = vlaneseq
          %v5498 = vshrl.u32 %v5497, 7
          %v5499 = vsub.s32 %v5496, %v5498
          %v5500 = vrot.slane %v5469, %v5499
          %v5502 = vunpack.c.l.s4 1983009808
          %v5503 = vunpack.c.0.s8 %v5502
          %v5504 = vlaneseq
          %v5505 = vshrl.u32 %v5504, 7
          %v5506 = vsub.s32 %v5503, %v5505
          %v5507 = vrot.slane %v5493, %v5506
          %v5508 = vcombine.high %v5500, %v5500
          %v5509 = vcombine.high %v5507, %v5507
          %v5510 = vcombine.high %v5470, %v5470
          %v5512 = vunpack.c.l.s4 1983009808
          %v5513 = vunpack.c.0.s8 %v5512
          %v5514 = vlaneseq
          %v5515 = vshrl.u32 %v5514, 7
          %v5516 = vsub.s32 %v5513, %v5515
          %v5517 = vrot.slane %v5470, %v5516
          %v5519 = vunpack.c.l.s4 1983009808
          %v5520 = vunpack.c.0.s8 %v5519
          %v5521 = vlaneseq
          %v5522 = vshrl.u32 %v5521, 7
          %v5523 = vsub.s32 %v5520, %v5522
          %v5524 = vrot.slane %v5510, %v5523
          %v5525 = vcombine.high %v5517, %v5517
          %v5526 = vcombine.high %v5524, %v5524
          %v5527 = vcombine.high %v5471, %v5471
          %v5529 = vunpack.c.l.s4 1983009808
          %v5530 = vunpack.c.0.s8 %v5529
          %v5531 = vlaneseq
          %v5532 = vshrl.u32 %v5531, 7
          %v5533 = vsub.s32 %v5530, %v5532
          %v5534 = vrot.slane %v5471, %v5533
          %v5536 = vunpack.c.l.s4 1983009808
          %v5537 = vunpack.c.0.s8 %v5536
          %v5538 = vlaneseq
          %v5539 = vshrl.u32 %v5538, 7
          %v5540 = vsub.s32 %v5537, %v5539
          %v5541 = vrot.slane %v5527, %v5540
          %v5542 = vcombine.high %v5534, %v5534
          %v5543 = vcombine.high %v5541, %v5541
          %v5560 = vsel %vm5295, %v5483, 0.0
          %v5561 = vsel %vm5295, %v5491, 0.0
          %v5562 = vadd.f32 %v5560, %v5561
          %v5563 = vsel %vm5295, %v5490, 0.0
          %v5564 = vadd.f32 %v5562, %v5563
          %v5565 = vsel %vm5295, %v5492, 0.0
          %v5566 = vadd.f32 %v5564, %v5565
          %v5567 = vsel %vm5295, %v5500, 0.0
          %v5568 = vadd.f32 %v5566, %v5567
          %v5569 = vsel %vm5295, %v5508, 0.0
          %v5570 = vadd.f32 %v5568, %v5569
          %v5571 = vsel %vm5295, %v5507, 0.0
          %v5572 = vadd.f32 %v5570, %v5571
          %v5573 = vsel %vm5295, %v5509, 0.0
          %v5574 = vadd.f32 %v5572, %v5573
          %v5575 = vsel %vm5295, %v5517, 0.0
          %v5576 = vadd.f32 %v5574, %v5575
          %v5577 = vsel %vm5295, %v5525, 0.0
          %v5578 = vadd.f32 %v5576, %v5577
          %v5579 = vsel %vm5295, %v5524, 0.0
          %v5580 = vadd.f32 %v5578, %v5579
          %v5581 = vsel %vm5295, %v5526, 0.0
          %v5582 = vadd.f32 %v5580, %v5581
          %v5583 = vsel %vm5295, %v5534, 0.0
          %v5584 = vadd.f32 %v5582, %v5583
          %v5585 = vsel %vm5295, %v5542, 0.0
          %v5586 = vadd.f32 %v5584, %v5585
          %v5587 = vsel %vm5295, %v5541, 0.0
          %v5588 = vadd.f32 %v5586, %v5587
          %v5589 = vsel %vm5295, %v5543, 0.0
          %v5590 = vadd.f32 %v5588, %v5589
          %5591 = vadd.xlane.f32.xlu0 %v5590
          %v5592 = vpop.xlane.xlu0 %5591
          %v5593 = vrot.slane %v5592, 4
          %v5594 = vadd.f32 %v5592, %v5593
          %v5595 = vrot.slane %v5594, 2
          %v5596 = vadd.f32 %v5594, %v5595
          %v5597 = vrot.slane %v5596, 1
          %v5598 = vadd.f32 %v5596, %v5597
          %s5599 = vtos %v5598
          %v5600 = vlaneseq
          %v5601 = vand.u32 %v5600, 127
          %vm5602 = vcmp.eq.s32.totalorder %v5601, 0
          %vm5603 = vcmp.eq.s32.totalorder %v5601, 1
          %vm5604 = vcmp.eq.s32.totalorder %v5601, 2
          %v5605 = vstv %s5599
          %v5606 = vsel %vm5604, %v5605, 0.0
          %v5607 = vstv %s5467
          %v5608 = vsel %vm5603, %v5607, %v5606
          %v5609 = vstv %s5335
          %v5610 = vsel %vm5602, %v5609, %v5608
          %5611 = vst [vmem:[%s471] sm:$0x1] %v5610
        $region90: #{point_pillar_loss.1} parent=73 // pred_fallthru
          _
        %p5612 = scmp.lt.s32.totalorder %s19, 1
        %s5613 = scalar_select %p5612, %s19, 1
        %s5614 = scalar_lea.vmem %s4, %s5613
        // Predicated region
        $region91: #{point_pillar_loss.1} parent=73 // pred_check
          %p5615 = pneg %p157
        $region92: #{point_pillar_loss.1} parent=73 // pred_check_branch
          %5617 = sbr.rel (%p5615) target = $region94
        $region93: #{point_pillar_loss.1} parent=73 // pred_region
          _
        $region94: #{point_pillar_loss.1} parent=73 // pred_fallthru
          _
      $region74: #{point_pillar_loss.1} parent=5 // pred_fallthru
        _
      %p5618 = scmp.le.s32.totalorder 2, %s10
      // Predicated region
      $region95: #{point_pillar_loss.1} parent=5 // pred_check
        %p5619 = pneg %p5618
      $region96: #{point_pillar_loss.1} parent=5 // pred_check_branch
        %5621 = sbr.rel (%p5619) target = $region98
      $region97: #{point_pillar_loss.1} parent=5 // pred_region
        %s5622 = ssub.s32 %s10, 2
        // Predicated region
        $region99: #{point_pillar_loss.1} parent=97 // pred_check
          %p5623 = pneg %p163
        $region100: #{point_pillar_loss.1} parent=97 // pred_check_branch
          %5625 = sbr.rel (%p5623) target = $region102
        $region101: #{point_pillar_loss.1} parent=97 // pred_region
          %p5626 = scmp.lt.s32.totalorder %s21, 1
          %s5627 = scalar_select %p5626, %s21, 1
          %s5628 = scalar_lea.vmem %s4, %s5627
        $region102: #{point_pillar_loss.1} parent=97 // pred_fallthru
          _
      $region98: #{point_pillar_loss.1} parent=5 // pred_fallthru
        _
    $region6: #{point_pillar_loss.1} parent=1 // loop_footer
      %s14 = sadd.s32 1, %s10
    $region7: #{point_pillar_loss.1} parent=1 // loop_footer_branch
      %9 = sbr.rel target = $region3
    $region8: #{point_pillar_loss.1} parent=1 // loop_exit
      _

</llo_original>
